<compile_context>
chip_gen: v5e
topology: v5e:2x2
jax: 0.10.0
libtpu: 0.0.40
codegen_flags: <defaults>
</compile_context>

<pallas_src>
import jax
import jax.numpy as jnp
from jax import lax
from jax.experimental import pallas as pl
from jax.experimental.pallas import tpu as pltpu


# ----------------------------------------------------------------------------
# Helpers: generation-aware VMEM budget and block-size picking
# ----------------------------------------------------------------------------
def _vmem_capacity_bytes():
    try:
        return int(pltpu.get_tpu_info().vmem_capacity_bytes)
    except Exception:
        return 64 * 1024 * 1024          # conservative default (v7x per-core)


def _compiler_params(*semantics):
    vmem = _vmem_capacity_bytes()
    # 96 MiB on 128 MiB parts (v5e/v6e), 48 MiB on 64 MiB parts (v7x).
    return pltpu.CompilerParams(
        dimension_semantics=tuple(semantics),
        vmem_limit_bytes=int(min(vmem * 3 // 4, 96 * 2 ** 20)))


def _pick_block(total, cap, multiple=1):
    """Largest divisor of `total` that is <= cap and a multiple of `multiple`;
    falls back to `total` (full dim is always legal for BlockSpec)."""
    cap = max(multiple, min(cap, total))
    for d in range(cap, 0, -1):
        if total % d == 0 and d % multiple == 0:
            return d
    return total


# ----------------------------------------------------------------------------
# Kernel 1: synthetic stem = 3x3 conv (3->512, via im2col K=27) + ReLU + fused
# 4x4 average pool. One (rows*W, 27) x (27, 512) MXU matmul per row block.
# ----------------------------------------------------------------------------
def _stem_conv_pool_kernel(x_ref, w_ref, b_ref, o_ref):
    # x_ref: (4*BPH, W, 27) bf16 im2col rows; w_ref: (27, 512) bf16
    # b_ref: (1, 512) f32 ; o_ref: (BPH, W//4, 512) bf16
    rc, w, k = x_ref.shape
    bph, wp, cout = o_ref.shape
    x = x_ref[...].reshape(rc * w, k)
    acc = jnp.dot(x, w_ref[...], preferred_element_type=jnp.float32)
    acc = jnp.maximum(acc + b_ref[...], 0.0)
    # fused 4x4 average pool via static slices (no gathers / multi-axis reduce)
    a = acc.reshape(rc, wp, 4, cout)
    a = a[:, :, 0, :] + a[:, :, 1, :] + a[:, :, 2, :] + a[:, :, 3, :]   # cols
    a = a.reshape(bph, 4, wp, cout)
    a = a[:, 0] + a[:, 1] + a[:, 2] + a[:, 3]                           # rows
    o_ref[...] = (a * 0.0625).astype(o_ref.dtype)


def stem_conv_relu_pool(x_nhwc, w, b, *, row_cap_bytes=4 * 2 ** 20):
    """x: [N,H,W,3] -> [N,H//4,W//4,512]: 3x3 'same' conv + ReLU + 4x4 avg pool."""
    N, H, W, Cin = x_nhwc.shape
    Cout = w.shape[-1]
    assert w.shape[:3] == (3, 3, Cin) and H % 4 == 0 and W % 4 == 0
    # im2col with the 3x3 halo baked in (cheap: Cin=3 -> 27 "channels")
    xp = jnp.pad(x_nhwc, ((0, 0), (1, 1), (1, 1), (0, 0)))
    taps = [xp[:, di:di + H, dj:dj + W, :] for di in range(3) for dj in range(3)]
    x27 = jnp.concatenate(taps, axis=-1).astype(jnp.bfloat16)
    K = 9 * Cin
    w27 = w.reshape(K, Cout).astype(jnp.bfloat16)
    b2 = b.reshape(1, Cout).astype(jnp.float32)

    Hp, Wp = H // 4, W // 4
    max_rows = max(4, row_cap_bytes // (W * K * 2))        # conv rows per block
    bph = _pick_block(Hp, min(max_rows // 4, max(1, Hp // 2)))
    grid = (N, Hp // bph)

    return pl.pallas_call(
        _stem_conv_pool_kernel,
        out_shape=jax.ShapeDtypeStruct((N, Hp, Wp, Cout), jnp.bfloat16),
        grid=grid,
        in_specs=[
            pl.BlockSpec((None, 4 * bph, W, K), lambda n, i: (n, i, 0, 0)),
            pl.BlockSpec((K, Cout), lambda n, i: (0, 0)),
            pl.BlockSpec((1, Cout), lambda n, i: (0, 0)),
        ],
        out_specs=pl.BlockSpec((None, bph, Wp, Cout), lambda n, i: (n, i, 0, 0)),
        compiler_params=_compiler_params("parallel", "parallel"),
    )(x27, w27, b2)


# ----------------------------------------------------------------------------
# Kernel 2: 3x3 "same" conv (512->128) over halo'd row blocks; 9 K=512 matmuls.
# ----------------------------------------------------------------------------
def _conv3x3_kernel(x_ref, w_ref, b_ref, o_ref):
    # x_ref: (BH+2, Wp+2, Cin) bf16 ; w_ref: (9, Cin, Cout) bf16
    # b_ref: (1, Cout) f32 ; o_ref: (BH, Wp, Cout) bf16
    bh, wp, cout = o_ref.shape
    cin = x_ref.shape[-1]
    acc = jnp.zeros((bh * wp, cout), jnp.float32)
    for tap in range(9):                    # static unroll: aligned slices
        di, dj = divmod(tap, 3)
        patch = x_ref[di:di + bh, dj:dj + wp, :].reshape(bh * wp, cin)
        acc = acc + jnp.dot(patch, w_ref[tap],
                            preferred_element_type=jnp.float32)
    acc = acc + b_ref[...]
    o_ref[...] = acc.reshape(bh, wp, cout).astype(o_ref.dtype)


def conv3x3_same(x_nhwc, w, b, *, out_dtype=jnp.bfloat16,
                 row_cap_bytes=8 * 2 ** 20):
    """x: [N,Hp,Wp,Cin], w: [3,3,Cin,Cout], b: [Cout] -> [N,Hp,Wp,Cout]."""
    N, Hp, Wp, Cin = x_nhwc.shape
    Cout = w.shape[-1]
    assert w.shape[:3] == (3, 3, Cin)
    xp = jnp.pad(x_nhwc, ((0, 0), (1, 1), (1, 1), (0, 0))).astype(jnp.bfloat16)

    max_rows = max(1, row_cap_bytes // ((Wp + 2) * Cin * 2))
    bh = _pick_block(Hp, min(max_rows, max(1, Hp // 2)))
    nblk = Hp // bh
    # Pre-gather overlapping (halo) row blocks once, so BlockSpec tiles are
    # rectangular and auto-pipelined with double buffering.
    rows = jnp.arange(nblk)[:, None] * bh + jnp.arange(bh + 2)[None, :]
    xb = xp[:, rows]                                   # [N, nblk, bh+2, Wp+2, Cin]
    w9 = w.reshape(9, Cin, Cout).astype(jnp.bfloat16)
    b2 = b.reshape(1, Cout).astype(jnp.float32)

    return pl.pallas_call(
        _conv3x3_kernel,
        out_shape=jax.ShapeDtypeStruct((N, Hp, Wp, Cout), out_dtype),
        grid=(N, nblk),
        in_specs=[
            pl.BlockSpec((None, None, bh + 2, Wp + 2, Cin),
                         lambda n, i: (n, i, 0, 0, 0)),
            pl.BlockSpec((9, Cin, Cout), lambda n, i: (0, 0, 0)),
            pl.BlockSpec((1, Cout), lambda n, i: (0, 0)),
        ],
        out_specs=pl.BlockSpec((None, bh, Wp, Cout), lambda n, i: (n, i, 0, 0)),
        compiler_params=_compiler_params("parallel", "parallel"),
    )(xb, w9, b2)


# ----------------------------------------------------------------------------
# Kernel 3: separable bilinear upsample (align_corners=False) fused with
# channel L2 normalization (F.normalize, p=2, eps=1e-12), tiled over out rows.
# ----------------------------------------------------------------------------
def _upsample_norm_kernel(r_ref, c_ref, d_ref, o_ref):
    # r_ref: (BR, Hp) bf16 row-interp weights for this output-row block
    # c_ref: (W, Wp)  bf16 column-interp weights
    # d_ref: (Hp, Wp*C) bf16 descriptors for this image (resident across rows)
    # o_ref: (BR, W, C) f32 L2-normalized output rows (lane-dense, C=128)
    br, w, c = o_ref.shape
    wp = c_ref.shape[1]
    # rows first: one MXU matmul (BR, Hp) x (Hp, Wp*C)
    tmp = jnp.dot(r_ref[...], d_ref[...], preferred_element_type=jnp.float32)
    tmp = tmp.astype(jnp.bfloat16).reshape(br, wp, c)
    cm = c_ref[...]                                  # hoisted: read once
    for r in range(br):                              # columns: (W, Wp) x (Wp, C)
        row = jnp.dot(cm, tmp[r], preferred_element_type=jnp.float32)
        ssq = jnp.sum(row * row, axis=-1, keepdims=True)
        # x / max(||x||, 1e-12)  ==  x * rsqrt(max(||x||^2, 1e-24))  (EUP rsqrt)
        row = row * lax.rsqrt(jnp.maximum(ssq, 1e-24))
        o_ref[r] = row.astype(o_ref.dtype)


def _bilinear_matrix(out_size, in_size):
    """Interpolation matrix matching torch F.interpolate(align_corners=False)."""
    if in_size == 1:
        return jnp.ones((out_size, 1), jnp.float32)
    scale = in_size / out_size
    dst = jnp.arange(out_size, dtype=jnp.float32)
    src = jnp.maximum((dst + 0.5) * scale - 0.5, 0.0)   # torch clamps negatives
    i0 = jnp.clip(jnp.floor(src).astype(jnp.int32), 0, in_size - 1)
    i1 = jnp.minimum(i0 + 1, in_size - 1)
    w1 = src - i0.astype(jnp.float32)
    w0 = 1.0 - w1
    return (w0[:, None] * jax.nn.one_hot(i0, in_size, dtype=jnp.float32) +
            w1[:, None] * jax.nn.one_hot(i1, in_size, dtype=jnp.float32))


def upsample_bilinear_normalize(d_nhwc, out_h, out_w, *,
                                out_block_bytes=8 * 2 ** 20):
    """d: [N,Hp,Wp,C] -> [N,out_h,out_w,C], bilinear resize then L2-norm over C."""
    N, Hp, Wp, C = d_nhwc.shape
    R = _bilinear_matrix(out_h, Hp).astype(jnp.bfloat16)    # (H, Hp)
    Cm = _bilinear_matrix(out_w, Wp).astype(jnp.bfloat16)   # (W, Wp)
    d2 = d_nhwc.reshape(N, Hp, Wp * C).astype(jnp.bfloat16)

    # Cap the output row block so (br, W, C) f32 (double-buffered) fits VMEM.
    row_cap = max(8, out_block_bytes // max(1, out_w * C * 4))
    br = _pick_block(out_h, min(row_cap, max(1, out_h // 2)), multiple=8)
    grid = (N, out_h // br)

    return pl.pallas_call(
        _upsample_norm_kernel,
        out_shape=jax.ShapeDtypeStruct((N, out_h, out_w, C), jnp.float32),
        grid=grid,
        in_specs=[
            pl.BlockSpec((br, Hp), lambda n, i: (i, 0)),
            pl.BlockSpec((out_w, Wp), lambda n, i: (0, 0)),
            pl.BlockSpec((None, Hp, Wp * C), lambda n, i: (n, 0, 0)),
        ],
        out_specs=pl.BlockSpec((None, br, out_w, C), lambda n, i: (n, i, 0, 0)),
        compiler_params=_compiler_params("parallel", "parallel"),
    )(R, Cm, d2)


# ----------------------------------------------------------------------------
# Model wrapper (plain-JAX glue around the Pallas kernels)
# ----------------------------------------------------------------------------
def init_params(key):
    k0, k1, k2, k3 = jax.random.split(key, 4)
    return {
        # TODO(synk): build_backbone(cfg) is external/unspecified; deterministic
        # synthetic stem (3x3 conv 3->512 + ReLU + fused 4x4 avg-pool) stands in.
        "stem_w": jax.random.normal(k0, (3, 3, 3, 512), jnp.float32) * 0.05,
        "stem_b": jax.random.normal(k1, (512,), jnp.float32) * 0.05,
        # conv_out = nn.Conv2d(512, 128, 3, 1, 1)
        "out_w": jax.random.normal(k2, (3, 3, 512, 128), jnp.float32) * 0.05,
        "out_b": jax.random.normal(k3, (128,), jnp.float32) * 0.05,
    }


def feature_extractor(params, images_nchw):
    """images: [N,3,H,W] (NCHW) -> descrs: [N,128,H,W] (NCHW, L2-normalized)."""
    N, C, H, W = images_nchw.shape
    assert H % 4 == 0 and W % 4 == 0
    x = jnp.transpose(images_nchw, (0, 2, 3, 1))                 # NCHW -> NHWC

    # synthetic backbone: conv+ReLU+pool fused in one Pallas kernel
    feats = stem_conv_relu_pool(x, params["stem_w"], params["stem_b"])

    # conv_out + bilinear upsample to (H, W) + channel L2 normalize
    descrs = conv3x3_same(feats, params["out_w"], params["out_b"])
    descrs = upsample_bilinear_normalize(descrs, H, W)

    return jnp.transpose(descrs, (0, 3, 1, 2))                   # NHWC -> NCHW


def matterport_forward(params, images0, images1):
    """Eval-mode Matterport.forward: returns dict(descrs0=..., descrs1=...)."""
    descrs0 = feature_extractor(params, images0)
    descrs1 = feature_extractor(params, images1)
    return {"descrs0": descrs0, "descrs1": descrs1}
    # TODO(synk): training branch (make_evaluator loss / logger) is external to
    # the provided module and not implemented.


if __name__ == "__main__":
    key = jax.random.PRNGKey(0)
    kp, k0, k1 = jax.random.split(key, 3)
    params = init_params(kp)

    N, H, W = 2, 16, 16
    images0 = jax.random.normal(k0, (N, 3, H, W), jnp.float32)
    images1 = jax.random.normal(k1, (N, 3, H, W), jnp.float32)

    results = jax.jit(matterport_forward)(params, images0, images1)
    jax.block_until_ready(results)

    assert results["descrs0"].shape == (N, 128, H, W)
    assert results["descrs1"].shape == (N, 128, H, W)
    assert bool(jnp.all(jnp.isfinite(results["descrs0"])))
    # F.normalize(dim=1) => unit channel norms
    norms = jnp.sqrt(jnp.sum(results["descrs0"] ** 2, axis=1))
    assert bool(jnp.all(jnp.abs(norms - 1.0) < 1e-2))
    print("KERNEL_OK")
</pallas_src>

<mosaic_0001>
module attributes {stable_mosaic.version = 11 : i64} {
  func.func @_stem_conv_pool_kernel(%arg0: i32, %arg1: i32, %arg2: memref<1x8x16x27xbf16, #tpu.memory_space<vmem>>, %arg3: memref<27x512xbf16, #tpu.memory_space<vmem>>, %arg4: memref<1x512xf32, #tpu.memory_space<vmem>>, %arg5: memref<1x2x4x512xbf16, #tpu.memory_space<vmem>>) attributes {dimension_semantics = [#tpu.dimension_semantics<parallel>, #tpu.dimension_semantics<parallel>], iteration_bounds = array<i64: 2, 2>, scalar_prefetch = 0 : i64, scratch_operands = 0 : i64, tpu.core_type = #tpu.core_type<tc>, window_params = [{transform_indices = @transform_0, window_bounds = array<i64: 1, 8, 16, 27>}, {pipeline_mode = #tpu.pipeline_mode<synchronous>, transform_indices = @transform_1, window_bounds = array<i64: 27, 512>}, {pipeline_mode = #tpu.pipeline_mode<synchronous>, transform_indices = @transform_2, window_bounds = array<i64: 1, 512>}, {transform_indices = @transform_3, window_bounds = array<i64: 1, 2, 4, 512>}]} {
    %c0 = arith.constant 0 : index
    %c0_0 = arith.constant 0 : index
    %c0_1 = arith.constant 0 : index
    %c0_2 = arith.constant 0 : index
    %0 = vector.load %arg2[%c0, %c0_0, %c0_1, %c0_2] : memref<1x8x16x27xbf16, #tpu.memory_space<vmem>>, vector<1x8x16x27xbf16>
    %1 = vector.shape_cast %0 : vector<1x8x16x27xbf16> to vector<8x16x27xbf16>
    %2 = vector.shape_cast %1 : vector<8x16x27xbf16> to vector<128x27xbf16>
    %c0_3 = arith.constant 0 : index
    %c0_4 = arith.constant 0 : index
    %3 = vector.load %arg3[%c0_3, %c0_4] : memref<27x512xbf16, #tpu.memory_space<vmem>>, vector<27x512xbf16>
    %cst = arith.constant dense<0.000000e+00> : vector<128x512xf32>
    %4 = tpu.matmul %2, %3, %cst {dimension_numbers = #tpu.dot_dimension_numbers<[1], [0], [0], [1], [0, 0, 1, 1], [], []>} : vector<128x27xbf16>, vector<27x512xbf16>, vector<128x512xf32> -> vector<128x512xf32>
    %c0_5 = arith.constant 0 : index
    %c0_6 = arith.constant 0 : index
    %5 = vector.load %arg4[%c0_5, %c0_6] : memref<1x512xf32, #tpu.memory_space<vmem>>, vector<1x512xf32>
    %6 = vector.broadcast %5 : vector<1x512xf32> to vector<128x512xf32>
    %7 = arith.addf %4, %6 : vector<128x512xf32>
    %cst_7 = arith.constant 0.000000e+00 : f32
    %8 = vector.broadcast %cst_7 : f32 to vector<128x512xf32>
    %9 = arith.maximumf %7, %8 : vector<128x512xf32>
    %10 = vector.shape_cast %9 : vector<128x512xf32> to vector<8x4x4x512xf32>
    %11 = vector.extract_strided_slice %10 {offsets = [0, 0, 0, 0], sizes = [8, 4, 1, 512], strides = [1, 1, 1, 1]} : vector<8x4x4x512xf32> to vector<8x4x1x512xf32>
    %12 = vector.shape_cast %11 : vector<8x4x1x512xf32> to vector<8x4x512xf32>
    %13 = vector.extract_strided_slice %10 {offsets = [0, 0, 1, 0], sizes = [8, 4, 1, 512], strides = [1, 1, 1, 1]} : vector<8x4x4x512xf32> to vector<8x4x1x512xf32>
    %14 = vector.shape_cast %13 : vector<8x4x1x512xf32> to vector<8x4x512xf32>
    %15 = arith.addf %12, %14 : vector<8x4x512xf32>
    %16 = vector.extract_strided_slice %10 {offsets = [0, 0, 2, 0], sizes = [8, 4, 1, 512], strides = [1, 1, 1, 1]} : vector<8x4x4x512xf32> to vector<8x4x1x512xf32>
    %17 = vector.shape_cast %16 : vector<8x4x1x512xf32> to vector<8x4x512xf32>
    %18 = arith.addf %15, %17 : vector<8x4x512xf32>
    %19 = vector.extract_strided_slice %10 {offsets = [0, 0, 3, 0], sizes = [8, 4, 1, 512], strides = [1, 1, 1, 1]} : vector<8x4x4x512xf32> to vector<8x4x1x512xf32>
    %20 = vector.shape_cast %19 : vector<8x4x1x512xf32> to vector<8x4x512xf32>
    %21 = arith.addf %18, %20 : vector<8x4x512xf32>
    %22 = vector.shape_cast %21 : vector<8x4x512xf32> to vector<2x4x4x512xf32>
    %23 = vector.extract_strided_slice %22 {offsets = [0, 0, 0, 0], sizes = [2, 1, 4, 512], strides = [1, 1, 1, 1]} : vector<2x4x4x512xf32> to vector<2x1x4x512xf32>
    %24 = vector.shape_cast %23 : vector<2x1x4x512xf32> to vector<2x4x512xf32>
    %25 = vector.extract_strided_slice %22 {offsets = [0, 1, 0, 0], sizes = [2, 1, 4, 512], strides = [1, 1, 1, 1]} : vector<2x4x4x512xf32> to vector<2x1x4x512xf32>
    %26 = vector.shape_cast %25 : vector<2x1x4x512xf32> to vector<2x4x512xf32>
    %27 = arith.addf %24, %26 : vector<2x4x512xf32>
    %28 = vector.extract_strided_slice %22 {offsets = [0, 2, 0, 0], sizes = [2, 1, 4, 512], strides = [1, 1, 1, 1]} : vector<2x4x4x512xf32> to vector<2x1x4x512xf32>
    %29 = vector.shape_cast %28 : vector<2x1x4x512xf32> to vector<2x4x512xf32>
    %30 = arith.addf %27, %29 : vector<2x4x512xf32>
    %31 = vector.extract_strided_slice %22 {offsets = [0, 3, 0, 0], sizes = [2, 1, 4, 512], strides = [1, 1, 1, 1]} : vector<2x4x4x512xf32> to vector<2x1x4x512xf32>
    %32 = vector.shape_cast %31 : vector<2x1x4x512xf32> to vector<2x4x512xf32>
    %33 = arith.addf %30, %32 : vector<2x4x512xf32>
    %cst_8 = arith.constant 6.250000e-02 : f32
    %34 = vector.broadcast %cst_8 : f32 to vector<2x4x512xf32>
    %35 = arith.mulf %33, %34 : vector<2x4x512xf32>
    %36 = arith.truncf %35 : vector<2x4x512xf32> to vector<2x4x512xbf16>
    %c0_9 = arith.constant 0 : index
    %c0_10 = arith.constant 0 : index
    %c0_11 = arith.constant 0 : index
    %c0_12 = arith.constant 0 : index
    %37 = vector.load %arg5[%c0_9, %c0_10, %c0_11, %c0_12] : memref<1x2x4x512xbf16, #tpu.memory_space<vmem>>, vector<1x2x4x512xbf16>
    %38 = vector.shape_cast %37 : vector<1x2x4x512xbf16> to vector<2x4x512xbf16>
    %39 = vector.shape_cast %36 : vector<2x4x512xbf16> to vector<1x2x4x512xbf16>
    tpu.vector_store %arg5[%c0_9, %c0_10, %c0_11, %c0_12], %39 {strides = array<i32>} : memref<1x2x4x512xbf16, #tpu.memory_space<vmem>>, vector<1x2x4x512xbf16>,
    return
  }
  func.func @transform_0(%arg0: i32, %arg1: i32) -> (i32, i32, i32, i32) {
    %c0_i32 = arith.constant 0 : i32
    %c0_i32_0 = arith.constant 0 : i32
    %c0_i32_1 = arith.constant 0 : i32
    return %arg0, %arg1, %c0_i32, %c0_i32_0 : i32, i32, i32, i32
  }
  func.func @transform_1(%arg0: i32, %arg1: i32) -> (i32, i32) {
    %c0_i32 = arith.constant 0 : i32
    %c0_i32_0 = arith.constant 0 : i32
    %c0_i32_1 = arith.constant 0 : i32
    return %c0_i32, %c0_i32_0 : i32, i32
  }
  func.func @transform_2(%arg0: i32, %arg1: i32) -> (i32, i32) {
    %c0_i32 = arith.constant 0 : i32
    %c0_i32_0 = arith.constant 0 : i32
    %c0_i32_1 = arith.constant 0 : i32
    return %c0_i32, %c0_i32_0 : i32, i32
  }
  func.func @transform_3(%arg0: i32, %arg1: i32) -> (i32, i32, i32, i32) {
    %c0_i32 = arith.constant 0 : i32
    %c0_i32_0 = arith.constant 0 : i32
    %c0_i32_1 = arith.constant 0 : i32
    return %arg0, %arg1, %c0_i32, %c0_i32_0 : i32, i32, i32, i32
  }
}

module attributes {stable_mosaic.version = 11 : i64} {
  func.func @_conv3x3_kernel(%arg0: i32, %arg1: i32, %arg2: memref<1x1x4x6x512xbf16, #tpu.memory_space<vmem>>, %arg3: memref<9x512x128xbf16, #tpu.memory_space<vmem>>, %arg4: memref<1x128xf32, #tpu.memory_space<vmem>>, %arg5: memref<1x2x4x128xbf16, #tpu.memory_space<vmem>>) attributes {dimension_semantics = [#tpu.dimension_semantics<parallel>, #tpu.dimension_semantics<parallel>], iteration_bounds = array<i64: 2, 2>, scalar_prefetch = 0 : i64, scratch_operands = 0 : i64, tpu.core_type = #tpu.core_type<tc>, window_params = [{transform_indices = @transform_0, window_bounds = array<i64: 1, 1, 4, 6, 512>}, {pipeline_mode = #tpu.pipeline_mode<synchronous>, transform_indices = @transform_1, window_bounds = array<i64: 9, 512, 128>}, {pipeline_mode = #tpu.pipeline_mode<synchronous>, transform_indices = @transform_2, window_bounds = array<i64: 1, 128>}, {transform_indices = @transform_3, window_bounds = array<i64: 1, 2, 4, 128>}]} {
    %cst = arith.constant 0.000000e+00 : f32
    %0 = vector.broadcast %cst : f32 to vector<8x128xf32>
    %c0 = arith.constant 0 : index
    %c0_0 = arith.constant 0 : index
    %c0_1 = arith.constant 0 : index
    %c0_2 = arith.constant 0 : index
    %c0_3 = arith.constant 0 : index
    %1 = vector.load %arg2[%c0, %c0_0, %c0_1, %c0_2, %c0_3] : memref<1x1x4x6x512xbf16, #tpu.memory_space<vmem>>, vector<1x1x2x4x512xbf16>
    %2 = vector.shape_cast %1 : vector<1x1x2x4x512xbf16> to vector<2x4x512xbf16>
    %3 = vector.shape_cast %2 : vector<2x4x512xbf16> to vector<8x512xbf16>
    %c0_4 = arith.constant 0 : index
    %c0_5 = arith.constant 0 : index
    %c0_6 = arith.constant 0 : index
    %4 = vector.load %arg3[%c0_4, %c0_5, %c0_6] : memref<9x512x128xbf16, #tpu.memory_space<vmem>>, vector<1x512x128xbf16>
    %5 = vector.shape_cast %4 : vector<1x512x128xbf16> to vector<512x128xbf16>
    %cst_7 = arith.constant dense<0.000000e+00> : vector<8x128xf32>
    %6 = tpu.matmul %3, %5, %cst_7 {dimension_numbers = #tpu.dot_dimension_numbers<[1], [0], [0], [1], [0, 0, 1, 1], [], []>} : vector<8x512xbf16>, vector<512x128xbf16>, vector<8x128xf32> -> vector<8x128xf32>
    %7 = arith.addf %0, %6 : vector<8x128xf32>
    %c0_8 = arith.constant 0 : index
    %c0_9 = arith.constant 0 : index
    %c0_10 = arith.constant 0 : index
    %c1 = arith.constant 1 : index
    %c0_11 = arith.constant 0 : index
    %8 = vector.load %arg2[%c0_8, %c0_9, %c0_10, %c1, %c0_11] : memref<1x1x4x6x512xbf16, #tpu.memory_space<vmem>>, vector<1x1x2x4x512xbf16>
    %9 = vector.shape_cast %8 : vector<1x1x2x4x512xbf16> to vector<2x4x512xbf16>
    %10 = vector.shape_cast %9 : vector<2x4x512xbf16> to vector<8x512xbf16>
    %c1_12 = arith.constant 1 : index
    %c0_13 = arith.constant 0 : index
    %c0_14 = arith.constant 0 : index
    %11 = vector.load %arg3[%c1_12, %c0_13, %c0_14] : memref<9x512x128xbf16, #tpu.memory_space<vmem>>, vector<1x512x128xbf16>
    %12 = vector.shape_cast %11 : vector<1x512x128xbf16> to vector<512x128xbf16>
    %cst_15 = arith.constant dense<0.000000e+00> : vector<8x128xf32>
    %13 = tpu.matmul %10, %12, %cst_15 {dimension_numbers = #tpu.dot_dimension_numbers<[1], [0], [0], [1], [0, 0, 1, 1], [], []>} : vector<8x512xbf16>, vector<512x128xbf16>, vector<8x128xf32> -> vector<8x128xf32>
    %14 = arith.addf %7, %13 : vector<8x128xf32>
    %c0_16 = arith.constant 0 : index
    %c0_17 = arith.constant 0 : index
    %c0_18 = arith.constant 0 : index
    %c2 = arith.constant 2 : index
    %c0_19 = arith.constant 0 : index
    %15 = vector.load %arg2[%c0_16, %c0_17, %c0_18, %c2, %c0_19] : memref<1x1x4x6x512xbf16, #tpu.memory_space<vmem>>, vector<1x1x2x4x512xbf16>
    %16 = vector.shape_cast %15 : vector<1x1x2x4x512xbf16> to vector<2x4x512xbf16>
    %17 = vector.shape_cast %16 : vector<2x4x512xbf16> to vector<8x512xbf16>
    %c2_20 = arith.constant 2 : index
    %c0_21 = arith.constant 0 : index
    %c0_22 = arith.constant 0 : index
    %18 = vector.load %arg3[%c2_20, %c0_21, %c0_22] : memref<9x512x128xbf16, #tpu.memory_space<vmem>>, vector<1x512x128xbf16>
    %19 = vector.shape_cast %18 : vector<1x512x128xbf16> to vector<512x128xbf16>
    %cst_23 = arith.constant dense<0.000000e+00> : vector<8x128xf32>
    %20 = tpu.matmul %17, %19, %cst_23 {dimension_numbers = #tpu.dot_dimension_numbers<[1], [0], [0], [1], [0, 0, 1, 1], [], []>} : vector<8x512xbf16>, vector<512x128xbf16>, vector<8x128xf32> -> vector<8x128xf32>
    %21 = arith.addf %14, %20 : vector<8x128xf32>
    %c0_24 = arith.constant 0 : index
    %c0_25 = arith.constant 0 : index
    %c1_26 = arith.constant 1 : index
    %c0_27 = arith.constant 0 : index
    %c0_28 = arith.constant 0 : index
    %22 = vector.load %arg2[%c0_24, %c0_25, %c1_26, %c0_27, %c0_28] : memref<1x1x4x6x512xbf16, #tpu.memory_space<vmem>>, vector<1x1x2x4x512xbf16>
    %23 = vector.shape_cast %22 : vector<1x1x2x4x512xbf16> to vector<2x4x512xbf16>
    %24 = vector.shape_cast %23 : vector<2x4x512xbf16> to vector<8x512xbf16>
    %c3 = arith.constant 3 : index
    %c0_29 = arith.constant 0 : index
    %c0_30 = arith.constant 0 : index
    %25 = vector.load %arg3[%c3, %c0_29, %c0_30] : memref<9x512x128xbf16, #tpu.memory_space<vmem>>, vector<1x512x128xbf16>
    %26 = vector.shape_cast %25 : vector<1x512x128xbf16> to vector<512x128xbf16>
    %cst_31 = arith.constant dense<0.000000e+00> : vector<8x128xf32>
    %27 = tpu.matmul %24, %26, %cst_31 {dimension_numbers = #tpu.dot_dimension_numbers<[1], [0], [0], [1], [0, 0, 1, 1], [], []>} : vector<8x512xbf16>, vector<512x128xbf16>, vector<8x128xf32> -> vector<8x128xf32>
    %28 = arith.addf %21, %27 : vector<8x128xf32>
    %c0_32 = arith.constant 0 : index
    %c0_33 = arith.constant 0 : index
    %c1_34 = arith.constant 1 : index
    %c1_35 = arith.constant 1 : index
    %c0_36 = arith.constant 0 : index
    %29 = vector.load %arg2[%c0_32, %c0_33, %c1_34, %c1_35, %c0_36] : memref<1x1x4x6x512xbf16, #tpu.memory_space<vmem>>, vector<1x1x2x4x512xbf16>
    %30 = vector.shape_cast %29 : vector<1x1x2x4x512xbf16> to vector<2x4x512xbf16>
    %31 = vector.shape_cast %30 : vector<2x4x512xbf16> to vector<8x512xbf16>
    %c4 = arith.constant 4 : index
    %c0_37 = arith.constant 0 : index
    %c0_38 = arith.constant 0 : index
    %32 = vector.load %arg3[%c4, %c0_37, %c0_38] : memref<9x512x128xbf16, #tpu.memory_space<vmem>>, vector<1x512x128xbf16>
    %33 = vector.shape_cast %32 : vector<1x512x128xbf16> to vector<512x128xbf16>
    %cst_39 = arith.constant dense<0.000000e+00> : vector<8x128xf32>
    %34 = tpu.matmul %31, %33, %cst_39 {dimension_numbers = #tpu.dot_dimension_numbers<[1], [0], [0], [1], [0, 0, 1, 1], [], []>} : vector<8x512xbf16>, vector<512x128xbf16>, vector<8x128xf32> -> vector<8x128xf32>
    %35 = arith.addf %28, %34 : vector<8x128xf32>
    %c0_40 = arith.constant 0 : index
    %c0_41 = arith.constant 0 : index
    %c1_42 = arith.constant 1 : index
    %c2_43 = arith.constant 2 : index
    %c0_44 = arith.constant 0 : index
    %36 = vector.load %arg2[%c0_40, %c0_41, %c1_42, %c2_43, %c0_44] : memref<1x1x4x6x512xbf16, #tpu.memory_space<vmem>>, vector<1x1x2x4x512xbf16>
    %37 = vector.shape_cast %36 : vector<1x1x2x4x512xbf16> to vector<2x4x512xbf16>
    %38 = vector.shape_cast %37 : vector<2x4x512xbf16> to vector<8x512xbf16>
    %c5 = arith.constant 5 : index
    %c0_45 = arith.constant 0 : index
    %c0_46 = arith.constant 0 : index
    %39 = vector.load %arg3[%c5, %c0_45, %c0_46] : memref<9x512x128xbf16, #tpu.memory_space<vmem>>, vector<1x512x128xbf16>
    %40 = vector.shape_cast %39 : vector<1x512x128xbf16> to vector<512x128xbf16>
    %cst_47 = arith.constant dense<0.000000e+00> : vector<8x128xf32>
    %41 = tpu.matmul %38, %40, %cst_47 {dimension_numbers = #tpu.dot_dimension_numbers<[1], [0], [0], [1], [0, 0, 1, 1], [], []>} : vector<8x512xbf16>, vector<512x128xbf16>, vector<8x128xf32> -> vector<8x128xf32>
    %42 = arith.addf %35, %41 : vector<8x128xf32>
    %c0_48 = arith.constant 0 : index
    %c0_49 = arith.constant 0 : index
    %c2_50 = arith.constant 2 : index
    %c0_51 = arith.constant 0 : index
    %c0_52 = arith.constant 0 : index
    %43 = vector.load %arg2[%c0_48, %c0_49, %c2_50, %c0_51, %c0_52] : memref<1x1x4x6x512xbf16, #tpu.memory_space<vmem>>, vector<1x1x2x4x512xbf16>
    %44 = vector.shape_cast %43 : vector<1x1x2x4x512xbf16> to vector<2x4x512xbf16>
    %45 = vector.shape_cast %44 : vector<2x4x512xbf16> to vector<8x512xbf16>
    %c6 = arith.constant 6 : index
    %c0_53 = arith.constant 0 : index
    %c0_54 = arith.constant 0 : index
    %46 = vector.load %arg3[%c6, %c0_53, %c0_54] : memref<9x512x128xbf16, #tpu.memory_space<vmem>>, vector<1x512x128xbf16>
    %47 = vector.shape_cast %46 : vector<1x512x128xbf16> to vector<512x128xbf16>
    %cst_55 = arith.constant dense<0.000000e+00> : vector<8x128xf32>
    %48 = tpu.matmul %45, %47, %cst_55 {dimension_numbers = #tpu.dot_dimension_numbers<[1], [0], [0], [1], [0, 0, 1, 1], [], []>} : vector<8x512xbf16>, vector<512x128xbf16>, vector<8x128xf32> -> vector<8x128xf32>
    %49 = arith.addf %42, %48 : vector<8x128xf32>
    %c0_56 = arith.constant 0 : index
    %c0_57 = arith.constant 0 : index
    %c2_58 = arith.constant 2 : index
    %c1_59 = arith.constant 1 : index
    %c0_60 = arith.constant 0 : index
    %50 = vector.load %arg2[%c0_56, %c0_57, %c2_58, %c1_59, %c0_60] : memref<1x1x4x6x512xbf16, #tpu.memory_space<vmem>>, vector<1x1x2x4x512xbf16>
    %51 = vector.shape_cast %50 : vector<1x1x2x4x512xbf16> to vector<2x4x512xbf16>
    %52 = vector.shape_cast %51 : vector<2x4x512xbf16> to vector<8x512xbf16>
    %c7 = arith.constant 7 : index
    %c0_61 = arith.constant 0 : index
    %c0_62 = arith.constant 0 : index
    %53 = vector.load %arg3[%c7, %c0_61, %c0_62] : memref<9x512x128xbf16, #tpu.memory_space<vmem>>, vector<1x512x128xbf16>
    %54 = vector.shape_cast %53 : vector<1x512x128xbf16> to vector<512x128xbf16>
    %cst_63 = arith.constant dense<0.000000e+00> : vector<8x128xf32>
    %55 = tpu.matmul %52, %54, %cst_63 {dimension_numbers = #tpu.dot_dimension_numbers<[1], [0], [0], [1], [0, 0, 1, 1], [], []>} : vector<8x512xbf16>, vector<512x128xbf16>, vector<8x128xf32> -> vector<8x128xf32>
    %56 = arith.addf %49, %55 : vector<8x128xf32>
    %c0_64 = arith.constant 0 : index
    %c0_65 = arith.constant 0 : index
    %c2_66 = arith.constant 2 : index
    %c2_67 = arith.constant 2 : index
    %c0_68 = arith.constant 0 : index
    %57 = vector.load %arg2[%c0_64, %c0_65, %c2_66, %c2_67, %c0_68] : memref<1x1x4x6x512xbf16, #tpu.memory_space<vmem>>, vector<1x1x2x4x512xbf16>
    %58 = vector.shape_cast %57 : vector<1x1x2x4x512xbf16> to vector<2x4x512xbf16>
    %59 = vector.shape_cast %58 : vector<2x4x512xbf16> to vector<8x512xbf16>
    %c8 = arith.constant 8 : index
    %c0_69 = arith.constant 0 : index
    %c0_70 = arith.constant 0 : index
    %60 = vector.load %arg3[%c8, %c0_69, %c0_70] : memref<9x512x128xbf16, #tpu.memory_space<vmem>>, vector<1x512x128xbf16>
    %61 = vector.shape_cast %60 : vector<1x512x128xbf16> to vector<512x128xbf16>
    %cst_71 = arith.constant dense<0.000000e+00> : vector<8x128xf32>
    %62 = tpu.matmul %59, %61, %cst_71 {dimension_numbers = #tpu.dot_dimension_numbers<[1], [0], [0], [1], [0, 0, 1, 1], [], []>} : vector<8x512xbf16>, vector<512x128xbf16>, vector<8x128xf32> -> vector<8x128xf32>
    %63 = arith.addf %56, %62 : vector<8x128xf32>
    %c0_72 = arith.constant 0 : index
    %c0_73 = arith.constant 0 : index
    %64 = vector.load %arg4[%c0_72, %c0_73] : memref<1x128xf32, #tpu.memory_space<vmem>>, vector<1x128xf32>
    %65 = vector.broadcast %64 : vector<1x128xf32> to vector<8x128xf32>
    %66 = arith.addf %63, %65 : vector<8x128xf32>
    %67 = vector.shape_cast %66 : vector<8x128xf32> to vector<2x4x128xf32>
    %68 = arith.truncf %67 : vector<2x4x128xf32> to vector<2x4x128xbf16>
    %c0_74 = arith.constant 0 : index
    %c0_75 = arith.constant 0 : index
    %c0_76 = arith.constant 0 : index
    %c0_77 = arith.constant 0 : index
    %69 = vector.load %arg5[%c0_74, %c0_75, %c0_76, %c0_77] : memref<1x2x4x128xbf16, #tpu.memory_space<vmem>>, vector<1x2x4x128xbf16>
    %70 = vector.shape_cast %69 : vector<1x2x4x128xbf16> to vector<2x4x128xbf16>
    %71 = vector.shape_cast %68 : vector<2x4x128xbf16> to vector<1x2x4x128xbf16>
    tpu.vector_store %arg5[%c0_74, %c0_75, %c0_76, %c0_77], %71 {strides = array<i32>} : memref<1x2x4x128xbf16, #tpu.memory_space<vmem>>, vector<1x2x4x128xbf16>,
    return
  }
  func.func @transform_0(%arg0: i32, %arg1: i32) -> (i32, i32, i32, i32, i32) {
    %c0_i32 = arith.constant 0 : i32
    %c0_i32_0 = arith.constant 0 : i32
    %c0_i32_1 = arith.constant 0 : i32
    %c0_i32_2 = arith.constant 0 : i32
    return %arg0, %arg1, %c0_i32, %c0_i32_0, %c0_i32_1 : i32, i32, i32, i32, i32
  }
  func.func @transform_1(%arg0: i32, %arg1: i32) -> (i32, i32, i32) {
    %c0_i32 = arith.constant 0 : i32
    %c0_i32_0 = arith.constant 0 : i32
    %c0_i32_1 = arith.constant 0 : i32
    %c0_i32_2 = arith.constant 0 : i32
    return %c0_i32, %c0_i32_0, %c0_i32_1 : i32, i32, i32
  }
  func.func @transform_2(%arg0: i32, %arg1: i32) -> (i32, i32) {
    %c0_i32 = arith.constant 0 : i32
    %c0_i32_0 = arith.constant 0 : i32
    %c0_i32_1 = arith.constant 0 : i32
    return %c0_i32, %c0_i32_0 : i32, i32
  }
  func.func @transform_3(%arg0: i32, %arg1: i32) -> (i32, i32, i32, i32) {
    %c0_i32 = arith.constant 0 : i32
    %c0_i32_0 = arith.constant 0 : i32
    %c0_i32_1 = arith.constant 0 : i32
    return %arg0, %arg1, %c0_i32, %c0_i32_0 : i32, i32, i32, i32
  }
}

module attributes {stable_mosaic.version = 11 : i64} {
  func.func @_upsample_norm_kernel(%arg0: i32, %arg1: i32, %arg2: memref<8x4xbf16, #tpu.memory_space<vmem>>, %arg3: memref<16x4xbf16, #tpu.memory_space<vmem>>, %arg4: memref<1x4x512xbf16, #tpu.memory_space<vmem>>, %arg5: memref<1x8x16x128xf32, #tpu.memory_space<vmem>>) attributes {dimension_semantics = [#tpu.dimension_semantics<parallel>, #tpu.dimension_semantics<parallel>], iteration_bounds = array<i64: 2, 2>, scalar_prefetch = 0 : i64, scratch_operands = 0 : i64, tpu.core_type = #tpu.core_type<tc>, window_params = [{transform_indices = @transform_0, window_bounds = array<i64: 8, 4>}, {pipeline_mode = #tpu.pipeline_mode<synchronous>, transform_indices = @transform_1, window_bounds = array<i64: 16, 4>}, {transform_indices = @transform_2, window_bounds = array<i64: 1, 4, 512>}, {transform_indices = @transform_3, window_bounds = array<i64: 1, 8, 16, 128>}]} {
    %c0 = arith.constant 0 : index
    %c0_0 = arith.constant 0 : index
    %0 = vector.load %arg2[%c0, %c0_0] : memref<8x4xbf16, #tpu.memory_space<vmem>>, vector<8x4xbf16>
    %c0_1 = arith.constant 0 : index
    %c0_2 = arith.constant 0 : index
    %c0_3 = arith.constant 0 : index
    %1 = vector.load %arg4[%c0_1, %c0_2, %c0_3] : memref<1x4x512xbf16, #tpu.memory_space<vmem>>, vector<1x4x512xbf16>
    %2 = vector.shape_cast %1 : vector<1x4x512xbf16> to vector<4x512xbf16>
    %cst = arith.constant dense<0.000000e+00> : vector<8x512xf32>
    %3 = tpu.matmul %0, %2, %cst {dimension_numbers = #tpu.dot_dimension_numbers<[1], [0], [0], [1], [0, 0, 1, 1], [], []>} : vector<8x4xbf16>, vector<4x512xbf16>, vector<8x512xf32> -> vector<8x512xf32>
    %4 = arith.truncf %3 : vector<8x512xf32> to vector<8x512xbf16>
    %5 = vector.shape_cast %4 : vector<8x512xbf16> to vector<8x4x128xbf16>
    %c0_4 = arith.constant 0 : index
    %c0_5 = arith.constant 0 : index
    %6 = vector.load %arg3[%c0_4, %c0_5] : memref<16x4xbf16, #tpu.memory_space<vmem>>, vector<16x4xbf16>
    %7 = vector.extract_strided_slice %5 {offsets = [0, 0, 0], sizes = [1, 4, 128], strides = [1, 1, 1]} : vector<8x4x128xbf16> to vector<1x4x128xbf16>
    %8 = vector.shape_cast %7 : vector<1x4x128xbf16> to vector<4x128xbf16>
    %cst_6 = arith.constant dense<0.000000e+00> : vector<16x128xf32>
    %9 = tpu.matmul %6, %8, %cst_6 {dimension_numbers = #tpu.dot_dimension_numbers<[1], [0], [0], [1], [0, 0, 1, 1], [], []>} : vector<16x4xbf16>, vector<4x128xbf16>, vector<16x128xf32> -> vector<16x128xf32>
    %10 = arith.mulf %9, %9 : vector<16x128xf32>
    %cst_7 = arith.constant dense<0.000000e+00> : vector<16xf32>
    %11 = vector.multi_reduction <add>, %10, %cst_7 [1] : vector<16x128xf32> to vector<16xf32>
    %12 = vector.shape_cast %11 : vector<16xf32> to vector<16x1xf32>
    %cst_8 = arith.constant 1.000000e-24 : f32
    %13 = vector.broadcast %cst_8 : f32 to vector<16x1xf32>
    %14 = arith.maximumf %12, %13 : vector<16x1xf32>
    %15 = math.rsqrt %14 : vector<16x1xf32>
    %16 = vector.broadcast %15 : vector<16x1xf32> to vector<16x128xf32>
    %17 = arith.mulf %9, %16 : vector<16x128xf32>
    %c0_9 = arith.constant 0 : index
    %c0_10 = arith.constant 0 : index
    %c0_11 = arith.constant 0 : index
    %c0_12 = arith.constant 0 : index
    %18 = vector.load %arg5[%c0_9, %c0_10, %c0_11, %c0_12] : memref<1x8x16x128xf32, #tpu.memory_space<vmem>>, vector<1x1x16x128xf32>
    %19 = vector.shape_cast %18 : vector<1x1x16x128xf32> to vector<16x128xf32>
    %20 = vector.shape_cast %17 : vector<16x128xf32> to vector<1x1x16x128xf32>
    tpu.vector_store %arg5[%c0_9, %c0_10, %c0_11, %c0_12], %20 {strides = array<i32>} : memref<1x8x16x128xf32, #tpu.memory_space<vmem>>, vector<1x1x16x128xf32>,
    %21 = vector.extract_strided_slice %5 {offsets = [1, 0, 0], sizes = [1, 4, 128], strides = [1, 1, 1]} : vector<8x4x128xbf16> to vector<1x4x128xbf16>
    %22 = vector.shape_cast %21 : vector<1x4x128xbf16> to vector<4x128xbf16>
    %cst_13 = arith.constant dense<0.000000e+00> : vector<16x128xf32>
    %23 = tpu.matmul %6, %22, %cst_13 {dimension_numbers = #tpu.dot_dimension_numbers<[1], [0], [0], [1], [0, 0, 1, 1], [], []>} : vector<16x4xbf16>, vector<4x128xbf16>, vector<16x128xf32> -> vector<16x128xf32>
    %24 = arith.mulf %23, %23 : vector<16x128xf32>
    %cst_14 = arith.constant dense<0.000000e+00> : vector<16xf32>
    %25 = vector.multi_reduction <add>, %24, %cst_14 [1] : vector<16x128xf32> to vector<16xf32>
    %26 = vector.shape_cast %25 : vector<16xf32> to vector<16x1xf32>
    %cst_15 = arith.constant 1.000000e-24 : f32
    %27 = vector.broadcast %cst_15 : f32 to vector<16x1xf32>
    %28 = arith.maximumf %26, %27 : vector<16x1xf32>
    %29 = math.rsqrt %28 : vector<16x1xf32>
    %30 = vector.broadcast %29 : vector<16x1xf32> to vector<16x128xf32>
    %31 = arith.mulf %23, %30 : vector<16x128xf32>
    %c0_16 = arith.constant 0 : index
    %c1 = arith.constant 1 : index
    %c0_17 = arith.constant 0 : index
    %c0_18 = arith.constant 0 : index
    %32 = vector.load %arg5[%c0_16, %c1, %c0_17, %c0_18] : memref<1x8x16x128xf32, #tpu.memory_space<vmem>>, vector<1x1x16x128xf32>
    %33 = vector.shape_cast %32 : vector<1x1x16x128xf32> to vector<16x128xf32>
    %34 = vector.shape_cast %31 : vector<16x128xf32> to vector<1x1x16x128xf32>
    tpu.vector_store %arg5[%c0_16, %c1, %c0_17, %c0_18], %34 {strides = array<i32>} : memref<1x8x16x128xf32, #tpu.memory_space<vmem>>, vector<1x1x16x128xf32>,
    %35 = vector.extract_strided_slice %5 {offsets = [2, 0, 0], sizes = [1, 4, 128], strides = [1, 1, 1]} : vector<8x4x128xbf16> to vector<1x4x128xbf16>
    %36 = vector.shape_cast %35 : vector<1x4x128xbf16> to vector<4x128xbf16>
    %cst_19 = arith.constant dense<0.000000e+00> : vector<16x128xf32>
    %37 = tpu.matmul %6, %36, %cst_19 {dimension_numbers = #tpu.dot_dimension_numbers<[1], [0], [0], [1], [0, 0, 1, 1], [], []>} : vector<16x4xbf16>, vector<4x128xbf16>, vector<16x128xf32> -> vector<16x128xf32>
    %38 = arith.mulf %37, %37 : vector<16x128xf32>
    %cst_20 = arith.constant dense<0.000000e+00> : vector<16xf32>
    %39 = vector.multi_reduction <add>, %38, %cst_20 [1] : vector<16x128xf32> to vector<16xf32>
    %40 = vector.shape_cast %39 : vector<16xf32> to vector<16x1xf32>
    %cst_21 = arith.constant 1.000000e-24 : f32
    %41 = vector.broadcast %cst_21 : f32 to vector<16x1xf32>
    %42 = arith.maximumf %40, %41 : vector<16x1xf32>
    %43 = math.rsqrt %42 : vector<16x1xf32>
    %44 = vector.broadcast %43 : vector<16x1xf32> to vector<16x128xf32>
    %45 = arith.mulf %37, %44 : vector<16x128xf32>
    %c0_22 = arith.constant 0 : index
    %c2 = arith.constant 2 : index
    %c0_23 = arith.constant 0 : index
    %c0_24 = arith.constant 0 : index
    %46 = vector.load %arg5[%c0_22, %c2, %c0_23, %c0_24] : memref<1x8x16x128xf32, #tpu.memory_space<vmem>>, vector<1x1x16x128xf32>
    %47 = vector.shape_cast %46 : vector<1x1x16x128xf32> to vector<16x128xf32>
    %48 = vector.shape_cast %45 : vector<16x128xf32> to vector<1x1x16x128xf32>
    tpu.vector_store %arg5[%c0_22, %c2, %c0_23, %c0_24], %48 {strides = array<i32>} : memref<1x8x16x128xf32, #tpu.memory_space<vmem>>, vector<1x1x16x128xf32>,
    %49 = vector.extract_strided_slice %5 {offsets = [3, 0, 0], sizes = [1, 4, 128], strides = [1, 1, 1]} : vector<8x4x128xbf16> to vector<1x4x128xbf16>
    %50 = vector.shape_cast %49 : vector<1x4x128xbf16> to vector<4x128xbf16>
    %cst_25 = arith.constant dense<0.000000e+00> : vector<16x128xf32>
    %51 = tpu.matmul %6, %50, %cst_25 {dimension_numbers = #tpu.dot_dimension_numbers<[1], [0], [0], [1], [0, 0, 1, 1], [], []>} : vector<16x4xbf16>, vector<4x128xbf16>, vector<16x128xf32> -> vector<16x128xf32>
    %52 = arith.mulf %51, %51 : vector<16x128xf32>
    %cst_26 = arith.constant dense<0.000000e+00> : vector<16xf32>
    %53 = vector.multi_reduction <add>, %52, %cst_26 [1] : vector<16x128xf32> to vector<16xf32>
    %54 = vector.shape_cast %53 : vector<16xf32> to vector<16x1xf32>
    %cst_27 = arith.constant 1.000000e-24 : f32
    %55 = vector.broadcast %cst_27 : f32 to vector<16x1xf32>
    %56 = arith.maximumf %54, %55 : vector<16x1xf32>
    %57 = math.rsqrt %56 : vector<16x1xf32>
    %58 = vector.broadcast %57 : vector<16x1xf32> to vector<16x128xf32>
    %59 = arith.mulf %51, %58 : vector<16x128xf32>
    %c0_28 = arith.constant 0 : index
    %c3 = arith.constant 3 : index
    %c0_29 = arith.constant 0 : index
    %c0_30 = arith.constant 0 : index
    %60 = vector.load %arg5[%c0_28, %c3, %c0_29, %c0_30] : memref<1x8x16x128xf32, #tpu.memory_space<vmem>>, vector<1x1x16x128xf32>
    %61 = vector.shape_cast %60 : vector<1x1x16x128xf32> to vector<16x128xf32>
    %62 = vector.shape_cast %59 : vector<16x128xf32> to vector<1x1x16x128xf32>
    tpu.vector_store %arg5[%c0_28, %c3, %c0_29, %c0_30], %62 {strides = array<i32>} : memref<1x8x16x128xf32, #tpu.memory_space<vmem>>, vector<1x1x16x128xf32>,
    %63 = vector.extract_strided_slice %5 {offsets = [4, 0, 0], sizes = [1, 4, 128], strides = [1, 1, 1]} : vector<8x4x128xbf16> to vector<1x4x128xbf16>
    %64 = vector.shape_cast %63 : vector<1x4x128xbf16> to vector<4x128xbf16>
    %cst_31 = arith.constant dense<0.000000e+00> : vector<16x128xf32>
    %65 = tpu.matmul %6, %64, %cst_31 {dimension_numbers = #tpu.dot_dimension_numbers<[1], [0], [0], [1], [0, 0, 1, 1], [], []>} : vector<16x4xbf16>, vector<4x128xbf16>, vector<16x128xf32> -> vector<16x128xf32>
    %66 = arith.mulf %65, %65 : vector<16x128xf32>
    %cst_32 = arith.constant dense<0.000000e+00> : vector<16xf32>
    %67 = vector.multi_reduction <add>, %66, %cst_32 [1] : vector<16x128xf32> to vector<16xf32>
    %68 = vector.shape_cast %67 : vector<16xf32> to vector<16x1xf32>
    %cst_33 = arith.constant 1.000000e-24 : f32
    %69 = vector.broadcast %cst_33 : f32 to vector<16x1xf32>
    %70 = arith.maximumf %68, %69 : vector<16x1xf32>
    %71 = math.rsqrt %70 : vector<16x1xf32>
    %72 = vector.broadcast %71 : vector<16x1xf32> to vector<16x128xf32>
    %73 = arith.mulf %65, %72 : vector<16x128xf32>
    %c0_34 = arith.constant 0 : index
    %c4 = arith.constant 4 : index
    %c0_35 = arith.constant 0 : index
    %c0_36 = arith.constant 0 : index
    %74 = vector.load %arg5[%c0_34, %c4, %c0_35, %c0_36] : memref<1x8x16x128xf32, #tpu.memory_space<vmem>>, vector<1x1x16x128xf32>
    %75 = vector.shape_cast %74 : vector<1x1x16x128xf32> to vector<16x128xf32>
    %76 = vector.shape_cast %73 : vector<16x128xf32> to vector<1x1x16x128xf32>
    tpu.vector_store %arg5[%c0_34, %c4, %c0_35, %c0_36], %76 {strides = array<i32>} : memref<1x8x16x128xf32, #tpu.memory_space<vmem>>, vector<1x1x16x128xf32>,
    %77 = vector.extract_strided_slice %5 {offsets = [5, 0, 0], sizes = [1, 4, 128], strides = [1, 1, 1]} : vector<8x4x128xbf16> to vector<1x4x128xbf16>
    %78 = vector.shape_cast %77 : vector<1x4x128xbf16> to vector<4x128xbf16>
    %cst_37 = arith.constant dense<0.000000e+00> : vector<16x128xf32>
    %79 = tpu.matmul %6, %78, %cst_37 {dimension_numbers = #tpu.dot_dimension_numbers<[1], [0], [0], [1], [0, 0, 1, 1], [], []>} : vector<16x4xbf16>, vector<4x128xbf16>, vector<16x128xf32> -> vector<16x128xf32>
    %80 = arith.mulf %79, %79 : vector<16x128xf32>
    %cst_38 = arith.constant dense<0.000000e+00> : vector<16xf32>
    %81 = vector.multi_reduction <add>, %80, %cst_38 [1] : vector<16x128xf32> to vector<16xf32>
    %82 = vector.shape_cast %81 : vector<16xf32> to vector<16x1xf32>
    %cst_39 = arith.constant 1.000000e-24 : f32
    %83 = vector.broadcast %cst_39 : f32 to vector<16x1xf32>
    %84 = arith.maximumf %82, %83 : vector<16x1xf32>
    %85 = math.rsqrt %84 : vector<16x1xf32>
    %86 = vector.broadcast %85 : vector<16x1xf32> to vector<16x128xf32>
    %87 = arith.mulf %79, %86 : vector<16x128xf32>
    %c0_40 = arith.constant 0 : index
    %c5 = arith.constant 5 : index
    %c0_41 = arith.constant 0 : index
    %c0_42 = arith.constant 0 : index
    %88 = vector.load %arg5[%c0_40, %c5, %c0_41, %c0_42] : memref<1x8x16x128xf32, #tpu.memory_space<vmem>>, vector<1x1x16x128xf32>
    %89 = vector.shape_cast %88 : vector<1x1x16x128xf32> to vector<16x128xf32>
    %90 = vector.shape_cast %87 : vector<16x128xf32> to vector<1x1x16x128xf32>
    tpu.vector_store %arg5[%c0_40, %c5, %c0_41, %c0_42], %90 {strides = array<i32>} : memref<1x8x16x128xf32, #tpu.memory_space<vmem>>, vector<1x1x16x128xf32>,
    %91 = vector.extract_strided_slice %5 {offsets = [6, 0, 0], sizes = [1, 4, 128], strides = [1, 1, 1]} : vector<8x4x128xbf16> to vector<1x4x128xbf16>
    %92 = vector.shape_cast %91 : vector<1x4x128xbf16> to vector<4x128xbf16>
    %cst_43 = arith.constant dense<0.000000e+00> : vector<16x128xf32>
    %93 = tpu.matmul %6, %92, %cst_43 {dimension_numbers = #tpu.dot_dimension_numbers<[1], [0], [0], [1], [0, 0, 1, 1], [], []>} : vector<16x4xbf16>, vector<4x128xbf16>, vector<16x128xf32> -> vector<16x128xf32>
    %94 = arith.mulf %93, %93 : vector<16x128xf32>
    %cst_44 = arith.constant dense<0.000000e+00> : vector<16xf32>
    %95 = vector.multi_reduction <add>, %94, %cst_44 [1] : vector<16x128xf32> to vector<16xf32>
    %96 = vector.shape_cast %95 : vector<16xf32> to vector<16x1xf32>
    %cst_45 = arith.constant 1.000000e-24 : f32
    %97 = vector.broadcast %cst_45 : f32 to vector<16x1xf32>
    %98 = arith.maximumf %96, %97 : vector<16x1xf32>
    %99 = math.rsqrt %98 : vector<16x1xf32>
    %100 = vector.broadcast %99 : vector<16x1xf32> to vector<16x128xf32>
    %101 = arith.mulf %93, %100 : vector<16x128xf32>
    %c0_46 = arith.constant 0 : index
    %c6 = arith.constant 6 : index
    %c0_47 = arith.constant 0 : index
    %c0_48 = arith.constant 0 : index
    %102 = vector.load %arg5[%c0_46, %c6, %c0_47, %c0_48] : memref<1x8x16x128xf32, #tpu.memory_space<vmem>>, vector<1x1x16x128xf32>
    %103 = vector.shape_cast %102 : vector<1x1x16x128xf32> to vector<16x128xf32>
    %104 = vector.shape_cast %101 : vector<16x128xf32> to vector<1x1x16x128xf32>
    tpu.vector_store %arg5[%c0_46, %c6, %c0_47, %c0_48], %104 {strides = array<i32>} : memref<1x8x16x128xf32, #tpu.memory_space<vmem>>, vector<1x1x16x128xf32>,
    %105 = vector.extract_strided_slice %5 {offsets = [7, 0, 0], sizes = [1, 4, 128], strides = [1, 1, 1]} : vector<8x4x128xbf16> to vector<1x4x128xbf16>
    %106 = vector.shape_cast %105 : vector<1x4x128xbf16> to vector<4x128xbf16>
    %cst_49 = arith.constant dense<0.000000e+00> : vector<16x128xf32>
    %107 = tpu.matmul %6, %106, %cst_49 {dimension_numbers = #tpu.dot_dimension_numbers<[1], [0], [0], [1], [0, 0, 1, 1], [], []>} : vector<16x4xbf16>, vector<4x128xbf16>, vector<16x128xf32> -> vector<16x128xf32>
    %108 = arith.mulf %107, %107 : vector<16x128xf32>
    %cst_50 = arith.constant dense<0.000000e+00> : vector<16xf32>
    %109 = vector.multi_reduction <add>, %108, %cst_50 [1] : vector<16x128xf32> to vector<16xf32>
    %110 = vector.shape_cast %109 : vector<16xf32> to vector<16x1xf32>
    %cst_51 = arith.constant 1.000000e-24 : f32
    %111 = vector.broadcast %cst_51 : f32 to vector<16x1xf32>
    %112 = arith.maximumf %110, %111 : vector<16x1xf32>
    %113 = math.rsqrt %112 : vector<16x1xf32>
    %114 = vector.broadcast %113 : vector<16x1xf32> to vector<16x128xf32>
    %115 = arith.mulf %107, %114 : vector<16x128xf32>
    %c0_52 = arith.constant 0 : index
    %c7 = arith.constant 7 : index
    %c0_53 = arith.constant 0 : index
    %c0_54 = arith.constant 0 : index
    %116 = vector.load %arg5[%c0_52, %c7, %c0_53, %c0_54] : memref<1x8x16x128xf32, #tpu.memory_space<vmem>>, vector<1x1x16x128xf32>
    %117 = vector.shape_cast %116 : vector<1x1x16x128xf32> to vector<16x128xf32>
    %118 = vector.shape_cast %115 : vector<16x128xf32> to vector<1x1x16x128xf32>
    tpu.vector_store %arg5[%c0_52, %c7, %c0_53, %c0_54], %118 {strides = array<i32>} : memref<1x8x16x128xf32, #tpu.memory_space<vmem>>, vector<1x1x16x128xf32>,
    return
  }
  func.func @transform_0(%arg0: i32, %arg1: i32) -> (i32, i32) {
    %c0_i32 = arith.constant 0 : i32
    %c0_i32_0 = arith.constant 0 : i32
    return %arg1, %c0_i32 : i32, i32
  }
  func.func @transform_1(%arg0: i32, %arg1: i32) -> (i32, i32) {
    %c0_i32 = arith.constant 0 : i32
    %c0_i32_0 = arith.constant 0 : i32
    %c0_i32_1 = arith.constant 0 : i32
    return %c0_i32, %c0_i32_0 : i32, i32
  }
  func.func @transform_2(%arg0: i32, %arg1: i32) -> (i32, i32, i32) {
    %c0_i32 = arith.constant 0 : i32
    %c0_i32_0 = arith.constant 0 : i32
    %c0_i32_1 = arith.constant 0 : i32
    return %arg0, %c0_i32, %c0_i32_0 : i32, i32, i32
  }
  func.func @transform_3(%arg0: i32, %arg1: i32) -> (i32, i32, i32, i32) {
    %c0_i32 = arith.constant 0 : i32
    %c0_i32_0 = arith.constant 0 : i32
    %c0_i32_1 = arith.constant 0 : i32
    return %arg0, %arg1, %c0_i32, %c0_i32_0 : i32, i32, i32, i32
  }
}

</mosaic_0001>

<llo_original>
// kernel: matterport_forward.6
$region0: #{matterport_forward.6}
  #allocation0 [shape = 'u32[]', space=smem, size = 0x4, offset = 0x4, fixed_abs, tag = 'smem constant byte address 0x4 - core index']
  #allocation1 [shape = 'u32[72,128]{1,0:T(1,128)}', space=vmem, size = 0x9000, scoped, tag = 'internal scratch']
  %s0 = inlined_call_operand.vmem [shape: bf16[2,16,16,27], index: 0, kind: input, shape index: {}]
  %s1 = inlined_call_operand.vmem [shape: bf16[27,512], index: 1, kind: input, shape index: {}]
  %s2 = inlined_call_operand.vmem [shape: f32[1,512], index: 2, kind: input, shape index: {}]
  %s3 = inlined_call_operand.vmem [shape: bf16[2,4,4,512], index: 3, kind: output, shape index: {}]
  %s4 = sld [smem:[#allocation0]]
  $region45: #{matterport_forward.6} parent=0
    _
  %s6 = ssub.s32 1, %s4
  %s7 = scalar_select 0, %s6, %s4
  loop: start=0, step=1, limit=6
  $region2: #{matterport_forward.6} parent=0 // loop_pre_header
    _
  $region3: #{matterport_forward.6} parent=0 // loop_header
    %s9 = sphi 0, %s13
    %p10 = scmp.ge.s32.totalorder %s9, 6
    %s16 = sphi 0, %s28
    %s17 = sphi 0, %s24
    %s18 = sphi 0, %s16
    %s19 = sphi 0, %s17
    %s20 = sphi 0, %s18
    %s21 = sphi 0, %s19
    %s33 = sphi 0, %s35
    %s36 = sphi 0, %s33
    %s37 = sphi 0, %s36
    %s53 = sphi 0, %s37
    %s57 = sphi 0, %s57
    %s59 = sphi 0, %s57
    %s60 = sphi 0, %s59
    %s74 = sphi 0, %s60
    %s78 = sphi 0, %s78
    %s80 = sphi 0, %s78
    %s81 = sphi 0, %s80
    %s95 = sphi 0, %s81
    %s103 = sphi 0, %s105
    %s106 = sphi 0, %s103
    %s107 = sphi 0, %s106
    %s123 = sphi 0, %s107
  $region4: #{matterport_forward.6} parent=0 // loop_header_branch
    %12 = sbr.rel (%p10) target = $region8
  $region5: #{matterport_forward.6} parent=0 // loop_body
    %s14 = ssub.s32 %s9, 1
    %s15 = ssub.s32 %s9, 2
    %s22 = sadd.s32 1, %s17
    %p23 = scmp.ge.s32.totalorder %s22, 2
    %s24 = scalar_select %p23, 0, %s22
    %s25 = sadd.s32 1, %s16
    %s26 = scalar_select %p23, %s25, %s16
    %p27 = scmp.ge.s32.totalorder %s26, 2
    %s28 = scalar_select %p27, 0, %s26
    %s29 = ssub.s32 %s16, %s28
    %s30 = ssub.s32 %s17, %s24
    %s31 = sor.u32 %s29, %s30
    %p32 = scmp.eq.s32.totalorder %s31, 0
    %s34 = sadd.s32 %s33, 1
    %s35 = scalar_select %p32, %s33, %s34
    %p38 = pneg %p32
    %p39 = scmp.eq.s32.totalorder %s9, 3
    %p40 = por %p38, %p39
    %p41 = scmp.ne.s32.totalorder %s33, %s36
    %p42 = scmp.eq.s32.totalorder %s9, 0
    %p43 = por %p41, %p42
    %p44 = scmp.ne.s32.totalorder %s33, %s36
    %p45 = scmp.eq.s32.totalorder %s14, 3
    %p46 = por %p44, %p45
    %p47 = scmp.ne.s32.totalorder %s36, %s37
    %p48 = scmp.eq.s32.totalorder %s14, 0
    %p49 = por %p47, %p48
    %p50 = scmp.ne.s32.totalorder %s36, %s37
    %p51 = scmp.eq.s32.totalorder %s15, 3
    %p52 = por %p50, %p51
    %p54 = scmp.ne.s32.totalorder %s37, %s53
    %p55 = scmp.eq.s32.totalorder %s15, 0
    %p56 = por %p54, %p55
    %s58 = sadd.s32 %s57, 1
    %p61 = scmp.eq.s32.totalorder %s9, 3
    %p62 = scmp.ne.s32.totalorder %s57, %s59
    %p63 = scmp.eq.s32.totalorder %s9, 0
    %p64 = por %p62, %p63
    %p65 = scmp.ne.s32.totalorder %s57, %s59
    %p66 = scmp.eq.s32.totalorder %s14, 3
    %p67 = por %p65, %p66
    %p68 = scmp.ne.s32.totalorder %s59, %s60
    %p69 = scmp.eq.s32.totalorder %s14, 0
    %p70 = por %p68, %p69
    %p71 = scmp.ne.s32.totalorder %s59, %s60
    %p72 = scmp.eq.s32.totalorder %s15, 3
    %p73 = por %p71, %p72
    %p75 = scmp.ne.s32.totalorder %s60, %s74
    %p76 = scmp.eq.s32.totalorder %s15, 0
    %p77 = por %p75, %p76
    %s79 = sadd.s32 %s78, 1
    %p82 = scmp.eq.s32.totalorder %s9, 3
    %p83 = scmp.ne.s32.totalorder %s78, %s80
    %p84 = scmp.eq.s32.totalorder %s9, 0
    %p85 = por %p83, %p84
    %p86 = scmp.ne.s32.totalorder %s78, %s80
    %p87 = scmp.eq.s32.totalorder %s14, 3
    %p88 = por %p86, %p87
    %p89 = scmp.ne.s32.totalorder %s80, %s81
    %p90 = scmp.eq.s32.totalorder %s14, 0
    %p91 = por %p89, %p90
    %p92 = scmp.ne.s32.totalorder %s80, %s81
    %p93 = scmp.eq.s32.totalorder %s15, 3
    %p94 = por %p92, %p93
    %p96 = scmp.ne.s32.totalorder %s81, %s95
    %p97 = scmp.eq.s32.totalorder %s15, 0
    %p98 = por %p96, %p97
    %s99 = ssub.s32 %s16, %s28
    %s100 = ssub.s32 %s17, %s24
    %s101 = sor.u32 %s99, %s100
    %p102 = scmp.eq.s32.totalorder %s101, 0
    %s104 = sadd.s32 %s103, 1
    %s105 = scalar_select %p102, %s103, %s104
    %p108 = pneg %p102
    %p109 = scmp.eq.s32.totalorder %s9, 3
    %p110 = por %p108, %p109
    %p111 = scmp.ne.s32.totalorder %s103, %s106
    %p112 = scmp.eq.s32.totalorder %s9, 0
    %p113 = por %p111, %p112
    %p114 = scmp.ne.s32.totalorder %s103, %s106
    %p115 = scmp.eq.s32.totalorder %s14, 3
    %p116 = por %p114, %p115
    %p117 = scmp.ne.s32.totalorder %s106, %s107
    %p118 = scmp.eq.s32.totalorder %s14, 0
    %p119 = por %p117, %p118
    %p120 = scmp.ne.s32.totalorder %s106, %s107
    %p121 = scmp.eq.s32.totalorder %s15, 3
    %p122 = por %p120, %p121
    %p124 = scmp.ne.s32.totalorder %s107, %s123
    %p125 = scmp.eq.s32.totalorder %s15, 0
    %p126 = por %p124, %p125
    %p127 = scmp.le.s32.totalorder 1, %s9
    %p128 = scmp.lt.s32.totalorder %s9, 5
    %p129 = pnand %p127, %p128
    %p130 = pneg %p129
    // Predicated region
    $region9: #{matterport_forward.6} parent=5 // pred_check
      _
    $region10: #{matterport_forward.6} parent=5 // pred_check_branch
      %132 = sbr.rel (%p129) target = $region12
    $region11: #{matterport_forward.6} parent=5 // pred_region
      %s133 = ssub.s32 %s9, 1
      // Predicated region
      $region13: #{matterport_forward.6} parent=11 // pred_check
        %p134 = pneg %p70
      $region14: #{matterport_forward.6} parent=11 // pred_check_branch
        %136 = sbr.rel (%p134) target = $region16
      $region15: #{matterport_forward.6} parent=11 // pred_region
        _
      $region16: #{matterport_forward.6} parent=11 // pred_fallthru
        _
      // Predicated region
      $region17: #{matterport_forward.6} parent=11 // pred_check
        %p137 = pneg %p91
      $region18: #{matterport_forward.6} parent=11 // pred_check_branch
        %139 = sbr.rel (%p137) target = $region20
      $region19: #{matterport_forward.6} parent=11 // pred_region
        _
      $region20: #{matterport_forward.6} parent=11 // pred_fallthru
        _
    $region12: #{matterport_forward.6} parent=5 // pred_fallthru
      _
    %p140 = scmp.lt.s32.totalorder %s9, 4
    // Predicated region
    $region21: #{matterport_forward.6} parent=5 // pred_check
      %p141 = pneg %p140
    $region22: #{matterport_forward.6} parent=5 // pred_check_branch
      %143 = sbr.rel (%p141) target = $region24
    $region23: #{matterport_forward.6} parent=5 // pred_region
      // Predicated region
      $region25: #{matterport_forward.6} parent=23 // pred_check
        %p144 = pneg %p43
      $region26: #{matterport_forward.6} parent=23 // pred_check_branch
        %146 = sbr.rel (%p144) target = $region28
      $region27: #{matterport_forward.6} parent=23 // pred_region
        %s147 = smul.u32 8, %s17
        %p148 = scmp.lt.s32.totalorder %s16, 1
        %s149 = scalar_select %p148, %s16, 1
        %p150 = scmp.lt.s32.totalorder %s147, 15
        %s151 = scalar_select %p150, %s147, 15
        %s152 = smul.addr %s151, 2
        %s153 = smul.addr %s149, 32
        %s154 = sadd.s32 %s152, %s153
        %s155 = smul.addr %s154, 4
        %s156 = scalar_lea.vmem %s0, %s155
        %s157 = smul.u32 8, %s17
      $region28: #{matterport_forward.6} parent=23 // pred_fallthru
        _
    $region24: #{matterport_forward.6} parent=5 // pred_fallthru
      _
    %p158 = scmp.le.s32.totalorder 1, %s9
    %p159 = scmp.lt.s32.totalorder %s9, 5
    %p160 = pnand %p158, %p159
    %p161 = pneg %p160
    // Predicated region
    $region29: #{matterport_forward.6} parent=5 // pred_check
      _
    $region30: #{matterport_forward.6} parent=5 // pred_check_branch
      %163 = sbr.rel (%p160) target = $region32
    $region31: #{matterport_forward.6} parent=5 // pred_region
      %s164 = ssub.s32 %s9, 1
      %s165 = smul.u32 8, %s19
      %p166 = scmp.lt.s32.totalorder %s18, 1
      %s167 = scalar_select %p166, %s18, 1
      %p168 = scmp.lt.s32.totalorder %s165, 15
      %s169 = scalar_select %p168, %s165, 15
      %s170 = smul.addr %s169, 2
      %s171 = smul.addr %s167, 32
      %s172 = sadd.s32 %s170, %s171
      %s173 = smul.addr %s172, 4
      %s174 = scalar_lea.vmem %s0, %s173
      %p175 = pneg %p49
      %p176 = pneg %p46
      %p177 = pneg %p70
      %p178 = pneg %p67
      %p179 = pneg %p91
      %p180 = pneg %p88
      %p181 = pneg %p119
      %p182 = pneg %p116
      %s183 = smul.u32 2, %s19
      %p184 = scmp.lt.s32.totalorder %s18, 1
      %s185 = scalar_select %p184, %s18, 1
      %p186 = scmp.lt.s32.totalorder %s183, 3
      %s187 = scalar_select %p186, %s183, 3
      %s188 = smul.addr %s187, 4
      %s189 = smul.addr %s185, 16
      %s190 = sadd.s32 %s188, %s189
      %s191 = smul.addr %s190, 2
      %s192 = scalar_lea.vmem %s3, %s191
      %s193 = smul.u32 8, %s19
      %p194 = scmp.lt.s32.totalorder %s18, 1
      %s195 = scalar_select %p194, %s18, 1
      %p196 = scmp.lt.s32.totalorder %s193, 15
      %s197 = scalar_select %p196, %s193, 15
      %s198 = smul.addr %s197, 2
      %s199 = smul.addr %s195, 32
      %s200 = sadd.s32 %s198, %s199
      %s201 = smul.addr %s200, 4
      %s202 = scalar_lea.vmem %s0, %s201
      %s203 = smul.u32 8, %s19
      %s204 = smul.u32 2, %s19
      %p205 = scmp.lt.s32.totalorder %s18, 1
      %s206 = scalar_select %p205, %s18, 1
      %p207 = scmp.lt.s32.totalorder %s204, 3
      %s208 = scalar_select %p207, %s204, 3
      %s209 = smul.addr %s208, 4
      %s210 = smul.addr %s206, 16
      %s211 = sadd.s32 %s209, %s210
      %s212 = smul.addr %s211, 2
      %s213 = scalar_lea.vmem %s3, %s212
      %s214 = smul.u32 2, %s19
      %v216 = vld [vmem:[%s202] sm:$0xf]
      %v217 = vld [vmem:[%s202 + $0x4] sm:$0xf]
      %v218 = vld [vmem:[%s202 + $0x8] sm:$0xf]
      %v219 = vld [vmem:[%s202 + $0xc] sm:$0xf]
      %v220 = vld [vmem:[%s202 + $0x10] sm:$0xf]
      %v221 = vld [vmem:[%s202 + $0x14] sm:$0xf]
      %v222 = vld [vmem:[%s202 + $0x18] sm:$0xf]
      %v223 = vld [vmem:[%s202 + $0x1c] sm:$0xf]
      %v224 = vld [vmem:[%s202 + $0x20] sm:$0xf]
      %v225 = vld [vmem:[%s202 + $0x24] sm:$0xf]
      %v226 = vld [vmem:[%s202 + $0x28] sm:$0xf]
      %v227 = vld [vmem:[%s202 + $0x2c] sm:$0xf]
      %v228 = vld [vmem:[%s202 + $0x30] sm:$0xf]
      %v229 = vld [vmem:[%s202 + $0x34] sm:$0xf]
      %v230 = vld [vmem:[%s202 + $0x38] sm:$0xf]
      %v231 = vld [vmem:[%s202 + $0x3c] sm:$0xf]
      %v232 = vld [vmem:[%s1] sm:$0xff]
      %v233 = vld [vmem:[%s1 + $0x8] sm:$0xff]
      %v234 = vld [vmem:[%s1 + $0x10] sm:$0xff]
      %v235 = vld [vmem:[%s1 + $0x18] sm:$0xff]
      %v236 = vld [vmem:[%s1 + $0x20] sm:$0xff]
      %v237 = vld [vmem:[%s1 + $0x28] sm:$0xff]
      %v238 = vld [vmem:[%s1 + $0x30] sm:$0x33]
      %v239 = vld [vmem:[%s1 + $0x38] sm:$0x33]
      %v240 = vld [vmem:[%s2] sm:$0xf]
      %v242 = vperm.slane %v240, 0
      %v243 = vperm.slane %v240, 1
      %v244 = vperm.slane %v240, 2
      %v245 = vperm.slane %v240, 3
      %v266 = vunpack.c.l.b16 %v216
      %v267 = vunpack.c.l.b16 %v217
      %v268 = vunpack.c.l.b16 %v218
      %v269 = vunpack.c.l.b16 %v219
      %v270 = vunpack.c.l.b16 %v220
      %v271 = vunpack.c.l.b16 %v221
      %v272 = vunpack.c.l.b16 %v222
      %v273 = vunpack.c.l.b16 %v223
      %v274 = vunpack.c.l.b16 %v224
      %v275 = vunpack.c.l.b16 %v225
      %v276 = vunpack.c.l.b16 %v226
      %v277 = vunpack.c.l.b16 %v227
      %v278 = vunpack.c.l.b16 %v228
      %v279 = vunpack.c.l.b16 %v229
      %v280 = vunpack.c.l.b16 %v230
      %v281 = vunpack.c.l.b16 %v231
      %v282 = vpack.c.b16 %v267, %v266
      %v283 = vpack.c.b16 %v269, %v268
      %v284 = vpack.c.b16 %v271, %v270
      %v285 = vpack.c.b16 %v273, %v272
      %v286 = vpack.c.b16 %v275, %v274
      %v287 = vpack.c.b16 %v277, %v276
      %v288 = vpack.c.b16 %v279, %v278
      %v289 = vpack.c.b16 %v281, %v280
      %v298 = vunpack.c.l.b16 %v232
      %v299 = vunpack.c.h.b16 %v232
      %v300 = vunpack.c.l.b16 %v233
      %v301 = vunpack.c.h.b16 %v233
      %v302 = vunpack.c.l.b16 %v234
      %v303 = vunpack.c.h.b16 %v234
      %v304 = vunpack.c.l.b16 %v235
      %v305 = vunpack.c.h.b16 %v235
      %v306 = vunpack.c.l.b16 %v236
      %v307 = vunpack.c.h.b16 %v236
      %v308 = vunpack.c.l.b16 %v237
      %v309 = vunpack.c.h.b16 %v237
      %v310 = vunpack.c.l.b16 %v238
      %v311 = vunpack.c.h.b16 %v238
      %v312 = vunpack.c.l.b16 %v239
      %v313 = vunpack.c.h.b16 %v239
      %v314 = vpack.c.b16 %v302, %v298
      %v315 = vpack.c.b16 %v303, %v299
      %v316 = vpack.c.b16 %v304, %v300
      %v317 = vpack.c.b16 %v305, %v301
      %v318 = vpack.c.b16 %v310, %v306
      %v319 = vpack.c.b16 %v311, %v307
      %v320 = vpack.c.b16 %v312, %v308
      %v321 = vpack.c.b16 %v313, %v309
      %vm326 = vcmask 220160
      %v328 = vsel %vm326, %v282, 0
      %v331 = vsel %vm326, %v283, 0
      %v334 = vsel %vm326, %v284, 0
      %v337 = vsel %vm326, %v285, 0
      %v340 = vsel %vm326, %v286, 0
      %v343 = vsel %vm326, %v287, 0
      %v346 = vsel %vm326, %v288, 0
      %v349 = vsel %vm326, %v289, 0
      %vm351 = vcmask 1044480
      %vm352 = vcmask 1045504
      %v353 = vsel %vm351, 4294967295, 65535
      %v354 = vsel %vm352, %v353, 0
      %v356 = vand.u32 %v318, %v354
      %v359 = vand.u32 %v319, %v354
      %v362 = vand.u32 %v320, %v354
      %v365 = vand.u32 %v321, %v354
      %367 = vmatpush.bf16.msra.mxu0 0
      %368 = vmatpush.bf16.msra.mxu0 0
      %369 = vmatpush.bf16.msra.mxu0 0
      %370 = vmatpush.bf16.msra.mxu0 0
      %371 = vmatpush.bf16.msra.mxu0 0
      %372 = vmatpush.bf16.msra.mxu0 0
      %373 = vmatpush.bf16.msra.mxu0 %v356
      %374 = vmatpush.bf16.msra.mxu0 %v314
      %375 = vmatmul.bf16.gmra.mxu0 %v328
      %v376 = vpop.f32.mrf.mxu0
      %v377 = vadd.f32 %v242, %v376
      %v378 = vpop.f32.mrf.mxu0
      %v379 = vadd.f32 %v242, %v378
      %380 = vmatmul.bf16.gmra.mxu0 %v331
      %v381 = vpop.f32.mrf.mxu0
      %v382 = vadd.f32 %v242, %v381
      %v383 = vpop.f32.mrf.mxu0
      %v384 = vadd.f32 %v242, %v383
      %385 = vmatmul.bf16.gmra.mxu0 %v334
      %v386 = vpop.f32.mrf.mxu0
      %v387 = vadd.f32 %v242, %v386
      %v388 = vpop.f32.mrf.mxu0
      %v389 = vadd.f32 %v242, %v388
      %390 = vmatmul.bf16.gmra.mxu0 %v337
      %v391 = vpop.f32.mrf.mxu0
      %v392 = vadd.f32 %v242, %v391
      %v393 = vpop.f32.mrf.mxu0
      %v394 = vadd.f32 %v242, %v393
      %395 = vmatmul.bf16.gmra.mxu0 %v340
      %v396 = vpop.f32.mrf.mxu0
      %v397 = vadd.f32 %v242, %v396
      %v398 = vpop.f32.mrf.mxu0
      %v399 = vadd.f32 %v242, %v398
      %400 = vmatmul.bf16.gmra.mxu0 %v343
      %v401 = vpop.f32.mrf.mxu0
      %v402 = vadd.f32 %v242, %v401
      %v403 = vpop.f32.mrf.mxu0
      %v404 = vadd.f32 %v242, %v403
      %405 = vmatmul.bf16.gmra.mxu0 %v346
      %v406 = vpop.f32.mrf.mxu0
      %v407 = vadd.f32 %v242, %v406
      %v408 = vpop.f32.mrf.mxu0
      %v409 = vadd.f32 %v242, %v408
      %410 = vmatmul.bf16.gmra.mxu0 %v349
      %v411 = vpop.f32.mrf.mxu0
      %v412 = vadd.f32 %v242, %v411
      %v413 = vpop.f32.mrf.mxu0
      %v414 = vadd.f32 %v242, %v413
      %415 = vdwg.mxu0
      %416 = vmatpush.bf16.msra.mxu0 0
      %417 = vmatpush.bf16.msra.mxu0 0
      %418 = vmatpush.bf16.msra.mxu0 0
      %419 = vmatpush.bf16.msra.mxu0 0
      %420 = vmatpush.bf16.msra.mxu0 0
      %421 = vmatpush.bf16.msra.mxu0 0
      %422 = vmatpush.bf16.msra.mxu0 %v359
      %423 = vmatpush.bf16.msra.mxu0 %v315
      %424 = vmatmul.bf16.gmra.mxu0 %v328
      %v425 = vpop.f32.mrf.mxu0
      %v426 = vadd.f32 %v243, %v425
      %v427 = vpop.f32.mrf.mxu0
      %v428 = vadd.f32 %v243, %v427
      %429 = vmatmul.bf16.gmra.mxu0 %v331
      %v430 = vpop.f32.mrf.mxu0
      %v431 = vadd.f32 %v243, %v430
      %v432 = vpop.f32.mrf.mxu0
      %v433 = vadd.f32 %v243, %v432
      %434 = vmatmul.bf16.gmra.mxu0 %v334
      %v435 = vpop.f32.mrf.mxu0
      %v436 = vadd.f32 %v243, %v435
      %v437 = vpop.f32.mrf.mxu0
      %v438 = vadd.f32 %v243, %v437
      %439 = vmatmul.bf16.gmra.mxu0 %v337
      %v440 = vpop.f32.mrf.mxu0
      %v441 = vadd.f32 %v243, %v440
      %v442 = vpop.f32.mrf.mxu0
      %v443 = vadd.f32 %v243, %v442
      %444 = vmatmul.bf16.gmra.mxu0 %v340
      %v445 = vpop.f32.mrf.mxu0
      %v446 = vadd.f32 %v243, %v445
      %v447 = vpop.f32.mrf.mxu0
      %v448 = vadd.f32 %v243, %v447
      %449 = vmatmul.bf16.gmra.mxu0 %v343
      %v450 = vpop.f32.mrf.mxu0
      %v451 = vadd.f32 %v243, %v450
      %v452 = vpop.f32.mrf.mxu0
      %v453 = vadd.f32 %v243, %v452
      %454 = vmatmul.bf16.gmra.mxu0 %v346
      %v455 = vpop.f32.mrf.mxu0
      %v456 = vadd.f32 %v243, %v455
      %v457 = vpop.f32.mrf.mxu0
      %v458 = vadd.f32 %v243, %v457
      %459 = vmatmul.bf16.gmra.mxu0 %v349
      %v460 = vpop.f32.mrf.mxu0
      %v461 = vadd.f32 %v243, %v460
      %v462 = vpop.f32.mrf.mxu0
      %v463 = vadd.f32 %v243, %v462
      %464 = vdwg.mxu0
      %465 = vmatpush.bf16.msra.mxu0 0
      %466 = vmatpush.bf16.msra.mxu0 0
      %467 = vmatpush.bf16.msra.mxu0 0
      %468 = vmatpush.bf16.msra.mxu0 0
      %469 = vmatpush.bf16.msra.mxu0 0
      %470 = vmatpush.bf16.msra.mxu0 0
      %471 = vmatpush.bf16.msra.mxu0 %v362
      %472 = vmatpush.bf16.msra.mxu0 %v316
      %473 = vmatmul.bf16.gmra.mxu0 %v328
      %v474 = vpop.f32.mrf.mxu0
      %v475 = vadd.f32 %v244, %v474
      %v476 = vpop.f32.mrf.mxu0
      %v477 = vadd.f32 %v244, %v476
      %478 = vmatmul.bf16.gmra.mxu0 %v331
      %v479 = vpop.f32.mrf.mxu0
      %v480 = vadd.f32 %v244, %v479
      %v481 = vpop.f32.mrf.mxu0
      %v482 = vadd.f32 %v244, %v481
      %483 = vmatmul.bf16.gmra.mxu0 %v334
      %v484 = vpop.f32.mrf.mxu0
      %v485 = vadd.f32 %v244, %v484
      %v486 = vpop.f32.mrf.mxu0
      %v487 = vadd.f32 %v244, %v486
      %488 = vmatmul.bf16.gmra.mxu0 %v337
      %v489 = vpop.f32.mrf.mxu0
      %v490 = vadd.f32 %v244, %v489
      %v491 = vpop.f32.mrf.mxu0
      %v492 = vadd.f32 %v244, %v491
      %493 = vmatmul.bf16.gmra.mxu0 %v340
      %v494 = vpop.f32.mrf.mxu0
      %v495 = vadd.f32 %v244, %v494
      %v496 = vpop.f32.mrf.mxu0
      %v497 = vadd.f32 %v244, %v496
      %498 = vmatmul.bf16.gmra.mxu0 %v343
      %v499 = vpop.f32.mrf.mxu0
      %v500 = vadd.f32 %v244, %v499
      %v501 = vpop.f32.mrf.mxu0
      %v502 = vadd.f32 %v244, %v501
      %503 = vmatmul.bf16.gmra.mxu0 %v346
      %v504 = vpop.f32.mrf.mxu0
      %v505 = vadd.f32 %v244, %v504
      %v506 = vpop.f32.mrf.mxu0
      %v507 = vadd.f32 %v244, %v506
      %508 = vmatmul.bf16.gmra.mxu0 %v349
      %v509 = vpop.f32.mrf.mxu0
      %v510 = vadd.f32 %v244, %v509
      %v511 = vpop.f32.mrf.mxu0
      %v512 = vadd.f32 %v244, %v511
      %513 = vdwg.mxu0
      %514 = vmatpush.bf16.msra.mxu0 0
      %515 = vmatpush.bf16.msra.mxu0 0
      %516 = vmatpush.bf16.msra.mxu0 0
      %517 = vmatpush.bf16.msra.mxu0 0
      %518 = vmatpush.bf16.msra.mxu0 0
      %519 = vmatpush.bf16.msra.mxu0 0
      %520 = vmatpush.bf16.msra.mxu0 %v365
      %521 = vmatpush.bf16.msra.mxu0 %v317
      %522 = vmatmul.bf16.gmra.mxu0 %v328
      %v523 = vpop.f32.mrf.mxu0
      %v524 = vadd.f32 %v245, %v523
      %v525 = vpop.f32.mrf.mxu0
      %v526 = vadd.f32 %v245, %v525
      %527 = vmatmul.bf16.gmra.mxu0 %v331
      %v528 = vpop.f32.mrf.mxu0
      %v529 = vadd.f32 %v245, %v528
      %v530 = vpop.f32.mrf.mxu0
      %v531 = vadd.f32 %v245, %v530
      %532 = vmatmul.bf16.gmra.mxu0 %v334
      %v533 = vpop.f32.mrf.mxu0
      %v534 = vadd.f32 %v245, %v533
      %v535 = vpop.f32.mrf.mxu0
      %v536 = vadd.f32 %v245, %v535
      %537 = vmatmul.bf16.gmra.mxu0 %v337
      %v538 = vpop.f32.mrf.mxu0
      %v539 = vadd.f32 %v245, %v538
      %v540 = vpop.f32.mrf.mxu0
      %v541 = vadd.f32 %v245, %v540
      %542 = vmatmul.bf16.gmra.mxu0 %v340
      %v543 = vpop.f32.mrf.mxu0
      %v544 = vadd.f32 %v245, %v543
      %v545 = vpop.f32.mrf.mxu0
      %v546 = vadd.f32 %v245, %v545
      %547 = vmatmul.bf16.gmra.mxu0 %v343
      %v548 = vpop.f32.mrf.mxu0
      %v549 = vadd.f32 %v245, %v548
      %v550 = vpop.f32.mrf.mxu0
      %v551 = vadd.f32 %v245, %v550
      %552 = vmatmul.bf16.gmra.mxu0 %v346
      %v553 = vpop.f32.mrf.mxu0
      %v554 = vadd.f32 %v245, %v553
      %v555 = vpop.f32.mrf.mxu0
      %v556 = vadd.f32 %v245, %v555
      %557 = vmatmul.bf16.gmra.mxu0 %v349
      %v558 = vpop.f32.mrf.mxu0
      %v559 = vadd.f32 %v245, %v558
      %v560 = vpop.f32.mrf.mxu0
      %v561 = vadd.f32 %v245, %v560
      %562 = vdwg.mxu0
      %v563 = vmax.f32 %v377, 0.0
      %v564 = vmax.f32 %v426, 0.0
      %v565 = vmax.f32 %v475, 0.0
      %v566 = vmax.f32 %v524, 0.0
      %v567 = vmax.f32 %v379, 0.0
      %v568 = vmax.f32 %v428, 0.0
      %v569 = vmax.f32 %v477, 0.0
      %v570 = vmax.f32 %v526, 0.0
      %v571 = vmax.f32 %v382, 0.0
      %v572 = vmax.f32 %v431, 0.0
      %v573 = vmax.f32 %v480, 0.0
      %v574 = vmax.f32 %v529, 0.0
      %v575 = vmax.f32 %v384, 0.0
      %v576 = vmax.f32 %v433, 0.0
      %v577 = vmax.f32 %v482, 0.0
      %v578 = vmax.f32 %v531, 0.0
      %v579 = vmax.f32 %v387, 0.0
      %v580 = vmax.f32 %v436, 0.0
      %v581 = vmax.f32 %v485, 0.0
      %v582 = vmax.f32 %v534, 0.0
      %v583 = vmax.f32 %v389, 0.0
      %v584 = vmax.f32 %v438, 0.0
      %v585 = vmax.f32 %v487, 0.0
      %v586 = vmax.f32 %v536, 0.0
      %v587 = vmax.f32 %v392, 0.0
      %v588 = vmax.f32 %v441, 0.0
      %v589 = vmax.f32 %v490, 0.0
      %v590 = vmax.f32 %v539, 0.0
      %v591 = vmax.f32 %v394, 0.0
      %v592 = vmax.f32 %v443, 0.0
      %v593 = vmax.f32 %v492, 0.0
      %v594 = vmax.f32 %v541, 0.0
      %v595 = vmax.f32 %v397, 0.0
      %v596 = vmax.f32 %v446, 0.0
      %v597 = vmax.f32 %v495, 0.0
      %v598 = vmax.f32 %v544, 0.0
      %v599 = vmax.f32 %v399, 0.0
      %v600 = vmax.f32 %v448, 0.0
      %v601 = vmax.f32 %v497, 0.0
      %v602 = vmax.f32 %v546, 0.0
      %v603 = vmax.f32 %v402, 0.0
      %v604 = vmax.f32 %v451, 0.0
      %v605 = vmax.f32 %v500, 0.0
      %v606 = vmax.f32 %v549, 0.0
      %v607 = vmax.f32 %v404, 0.0
      %v608 = vmax.f32 %v453, 0.0
      %v609 = vmax.f32 %v502, 0.0
      %v610 = vmax.f32 %v551, 0.0
      %v611 = vmax.f32 %v407, 0.0
      %v612 = vmax.f32 %v456, 0.0
      %v613 = vmax.f32 %v505, 0.0
      %v614 = vmax.f32 %v554, 0.0
      %v615 = vmax.f32 %v409, 0.0
      %v616 = vmax.f32 %v458, 0.0
      %v617 = vmax.f32 %v507, 0.0
      %v618 = vmax.f32 %v556, 0.0
      %v619 = vmax.f32 %v412, 0.0
      %v620 = vmax.f32 %v461, 0.0
      %v621 = vmax.f32 %v510, 0.0
      %v622 = vmax.f32 %v559, 0.0
      %v623 = vmax.f32 %v414, 0.0
      %v624 = vmax.f32 %v463, 0.0
      %v625 = vmax.f32 %v512, 0.0
      %v626 = vmax.f32 %v561, 0.0
      %v691 = vrot.slane %v564, 4
      %v692 = vrot.slane %v566, 4
      %v693 = vrot.slane %v568, 4
      %v694 = vrot.slane %v570, 4
      %v695 = vrot.slane %v572, 4
      %v696 = vrot.slane %v574, 4
      %v697 = vrot.slane %v576, 4
      %v698 = vrot.slane %v578, 4
      %v699 = vrot.slane %v580, 4
      %v700 = vrot.slane %v582, 4
      %v701 = vrot.slane %v584, 4
      %v702 = vrot.slane %v586, 4
      %v703 = vrot.slane %v588, 4
      %v704 = vrot.slane %v590, 4
      %v705 = vrot.slane %v592, 4
      %v706 = vrot.slane %v594, 4
      %v707 = vrot.slane %v596, 4
      %v708 = vrot.slane %v598, 4
      %v709 = vrot.slane %v600, 4
      %v710 = vrot.slane %v602, 4
      %v711 = vrot.slane %v604, 4
      %v712 = vrot.slane %v606, 4
      %v713 = vrot.slane %v608, 4
      %v714 = vrot.slane %v610, 4
      %v715 = vrot.slane %v612, 4
      %v716 = vrot.slane %v614, 4
      %v717 = vrot.slane %v616, 4
      %v718 = vrot.slane %v618, 4
      %v719 = vrot.slane %v620, 4
      %v720 = vrot.slane %v622, 4
      %v721 = vrot.slane %v624, 4
      %v722 = vrot.slane %v626, 4
      %vm723 = vcmask 1043456
      %v724 = vsel %vm723, %v563, %v691
      %v725 = vsel %vm723, %v565, %v692
      %v726 = vsel %vm723, %v691, %v563
      %v727 = vrot.slane %v726, 4
      %v728 = vsel %vm723, %v692, %v565
      %v729 = vrot.slane %v728, 4
      %v730 = vsel %vm723, %v567, %v693
      %v731 = vsel %vm723, %v569, %v694
      %v732 = vsel %vm723, %v693, %v567
      %v733 = vrot.slane %v732, 4
      %v734 = vsel %vm723, %v694, %v569
      %v735 = vrot.slane %v734, 4
      %v736 = vsel %vm723, %v571, %v695
      %v737 = vsel %vm723, %v573, %v696
      %v738 = vsel %vm723, %v695, %v571
      %v739 = vrot.slane %v738, 4
      %v740 = vsel %vm723, %v696, %v573
      %v741 = vrot.slane %v740, 4
      %v742 = vsel %vm723, %v575, %v697
      %v743 = vsel %vm723, %v577, %v698
      %v744 = vsel %vm723, %v697, %v575
      %v745 = vrot.slane %v744, 4
      %v746 = vsel %vm723, %v698, %v577
      %v747 = vrot.slane %v746, 4
      %v748 = vsel %vm723, %v579, %v699
      %v749 = vsel %vm723, %v581, %v700
      %v750 = vsel %vm723, %v699, %v579
      %v751 = vrot.slane %v750, 4
      %v752 = vsel %vm723, %v700, %v581
      %v753 = vrot.slane %v752, 4
      %v754 = vsel %vm723, %v583, %v701
      %v755 = vsel %vm723, %v585, %v702
      %v756 = vsel %vm723, %v701, %v583
      %v757 = vrot.slane %v756, 4
      %v758 = vsel %vm723, %v702, %v585
      %v759 = vrot.slane %v758, 4
      %v760 = vsel %vm723, %v587, %v703
      %v761 = vsel %vm723, %v589, %v704
      %v762 = vsel %vm723, %v703, %v587
      %v763 = vrot.slane %v762, 4
      %v764 = vsel %vm723, %v704, %v589
      %v765 = vrot.slane %v764, 4
      %v766 = vsel %vm723, %v591, %v705
      %v767 = vsel %vm723, %v593, %v706
      %v768 = vsel %vm723, %v705, %v591
      %v769 = vrot.slane %v768, 4
      %v770 = vsel %vm723, %v706, %v593
      %v771 = vrot.slane %v770, 4
      %v772 = vsel %vm723, %v595, %v707
      %v773 = vsel %vm723, %v597, %v708
      %v774 = vsel %vm723, %v707, %v595
      %v775 = vrot.slane %v774, 4
      %v776 = vsel %vm723, %v708, %v597
      %v777 = vrot.slane %v776, 4
      %v778 = vsel %vm723, %v599, %v709
      %v779 = vsel %vm723, %v601, %v710
      %v780 = vsel %vm723, %v709, %v599
      %v781 = vrot.slane %v780, 4
      %v782 = vsel %vm723, %v710, %v601
      %v783 = vrot.slane %v782, 4
      %v784 = vsel %vm723, %v603, %v711
      %v785 = vsel %vm723, %v605, %v712
      %v786 = vsel %vm723, %v711, %v603
      %v787 = vrot.slane %v786, 4
      %v788 = vsel %vm723, %v712, %v605
      %v789 = vrot.slane %v788, 4
      %v790 = vsel %vm723, %v607, %v713
      %v791 = vsel %vm723, %v609, %v714
      %v792 = vsel %vm723, %v713, %v607
      %v793 = vrot.slane %v792, 4
      %v794 = vsel %vm723, %v714, %v609
      %v795 = vrot.slane %v794, 4
      %v796 = vsel %vm723, %v611, %v715
      %v797 = vsel %vm723, %v613, %v716
      %v798 = vsel %vm723, %v715, %v611
      %v799 = vrot.slane %v798, 4
      %v800 = vsel %vm723, %v716, %v613
      %v801 = vrot.slane %v800, 4
      %v802 = vsel %vm723, %v615, %v717
      %v803 = vsel %vm723, %v617, %v718
      %v804 = vsel %vm723, %v717, %v615
      %v805 = vrot.slane %v804, 4
      %v806 = vsel %vm723, %v718, %v617
      %v807 = vrot.slane %v806, 4
      %v808 = vsel %vm723, %v619, %v719
      %v809 = vsel %vm723, %v621, %v720
      %v810 = vsel %vm723, %v719, %v619
      %v811 = vrot.slane %v810, 4
      %v812 = vsel %vm723, %v720, %v621
      %v813 = vrot.slane %v812, 4
      %v814 = vsel %vm723, %v623, %v721
      %v815 = vsel %vm723, %v625, %v722
      %v816 = vsel %vm723, %v721, %v623
      %v817 = vrot.slane %v816, 4
      %v818 = vsel %vm723, %v722, %v625
      %v819 = vrot.slane %v818, 4
      %v884 = vrot.slane %v724, 5
      %v885 = vrot.slane %v884, 4
      %v886 = vrot.slane %v725, 5
      %v887 = vrot.slane %v886, 4
      %v888 = vrot.slane %v727, 5
      %v889 = vrot.slane %v888, 4
      %v890 = vrot.slane %v729, 5
      %v891 = vrot.slane %v890, 4
      %v892 = vrot.slane %v730, 5
      %v893 = vrot.slane %v892, 4
      %v894 = vrot.slane %v731, 5
      %v895 = vrot.slane %v894, 4
      %v896 = vrot.slane %v733, 5
      %v897 = vrot.slane %v896, 4
      %v898 = vrot.slane %v735, 5
      %v899 = vrot.slane %v898, 4
      %v900 = vrot.slane %v736, 5
      %v901 = vrot.slane %v900, 4
      %v902 = vrot.slane %v737, 5
      %v903 = vrot.slane %v902, 4
      %v904 = vrot.slane %v739, 5
      %v905 = vrot.slane %v904, 4
      %v906 = vrot.slane %v741, 5
      %v907 = vrot.slane %v906, 4
      %v908 = vrot.slane %v742, 5
      %v909 = vrot.slane %v908, 4
      %v910 = vrot.slane %v743, 5
      %v911 = vrot.slane %v910, 4
      %v912 = vrot.slane %v745, 5
      %v913 = vrot.slane %v912, 4
      %v914 = vrot.slane %v747, 5
      %v915 = vrot.slane %v914, 4
      %v916 = vrot.slane %v748, 5
      %v917 = vrot.slane %v916, 4
      %v918 = vrot.slane %v749, 5
      %v919 = vrot.slane %v918, 4
      %v920 = vrot.slane %v751, 5
      %v921 = vrot.slane %v920, 4
      %v922 = vrot.slane %v753, 5
      %v923 = vrot.slane %v922, 4
      %v924 = vrot.slane %v754, 5
      %v925 = vrot.slane %v924, 4
      %v926 = vrot.slane %v755, 5
      %v927 = vrot.slane %v926, 4
      %v928 = vrot.slane %v757, 5
      %v929 = vrot.slane %v928, 4
      %v930 = vrot.slane %v759, 5
      %v931 = vrot.slane %v930, 4
      %v932 = vrot.slane %v760, 5
      %v933 = vrot.slane %v932, 4
      %v934 = vrot.slane %v761, 5
      %v935 = vrot.slane %v934, 4
      %v936 = vrot.slane %v763, 5
      %v937 = vrot.slane %v936, 4
      %v938 = vrot.slane %v765, 5
      %v939 = vrot.slane %v938, 4
      %v940 = vrot.slane %v766, 5
      %v941 = vrot.slane %v940, 4
      %v942 = vrot.slane %v767, 5
      %v943 = vrot.slane %v942, 4
      %v944 = vrot.slane %v769, 5
      %v945 = vrot.slane %v944, 4
      %v946 = vrot.slane %v771, 5
      %v947 = vrot.slane %v946, 4
      %v948 = vrot.slane %v772, 5
      %v949 = vrot.slane %v948, 4
      %v950 = vrot.slane %v773, 5
      %v951 = vrot.slane %v950, 4
      %v952 = vrot.slane %v775, 5
      %v953 = vrot.slane %v952, 4
      %v954 = vrot.slane %v777, 5
      %v955 = vrot.slane %v954, 4
      %v956 = vrot.slane %v778, 5
      %v957 = vrot.slane %v956, 4
      %v958 = vrot.slane %v779, 5
      %v959 = vrot.slane %v958, 4
      %v960 = vrot.slane %v781, 5
      %v961 = vrot.slane %v960, 4
      %v962 = vrot.slane %v783, 5
      %v963 = vrot.slane %v962, 4
      %v964 = vrot.slane %v784, 5
      %v965 = vrot.slane %v964, 4
      %v966 = vrot.slane %v785, 5
      %v967 = vrot.slane %v966, 4
      %v968 = vrot.slane %v787, 5
      %v969 = vrot.slane %v968, 4
      %v970 = vrot.slane %v789, 5
      %v971 = vrot.slane %v970, 4
      %v972 = vrot.slane %v790, 5
      %v973 = vrot.slane %v972, 4
      %v974 = vrot.slane %v791, 5
      %v975 = vrot.slane %v974, 4
      %v976 = vrot.slane %v793, 5
      %v977 = vrot.slane %v976, 4
      %v978 = vrot.slane %v795, 5
      %v979 = vrot.slane %v978, 4
      %v980 = vrot.slane %v796, 5
      %v981 = vrot.slane %v980, 4
      %v982 = vrot.slane %v797, 5
      %v983 = vrot.slane %v982, 4
      %v984 = vrot.slane %v799, 5
      %v985 = vrot.slane %v984, 4
      %v986 = vrot.slane %v801, 5
      %v987 = vrot.slane %v986, 4
      %v988 = vrot.slane %v802, 5
      %v989 = vrot.slane %v988, 4
      %v990 = vrot.slane %v803, 5
      %v991 = vrot.slane %v990, 4
      %v992 = vrot.slane %v805, 5
      %v993 = vrot.slane %v992, 4
      %v994 = vrot.slane %v807, 5
      %v995 = vrot.slane %v994, 4
      %v996 = vrot.slane %v808, 5
      %v997 = vrot.slane %v996, 4
      %v998 = vrot.slane %v809, 5
      %v999 = vrot.slane %v998, 4
      %v1000 = vrot.slane %v811, 5
      %v1001 = vrot.slane %v1000, 4
      %v1002 = vrot.slane %v813, 5
      %v1003 = vrot.slane %v1002, 4
      %v1004 = vrot.slane %v814, 5
      %v1005 = vrot.slane %v1004, 4
      %v1006 = vrot.slane %v815, 5
      %v1007 = vrot.slane %v1006, 4
      %v1008 = vrot.slane %v817, 5
      %v1009 = vrot.slane %v1008, 4
      %v1010 = vrot.slane %v819, 5
      %v1011 = vrot.slane %v1010, 4
      %v1076 = vadd.f32 %v724, %v885
      %v1077 = vadd.f32 %v725, %v887
      %v1078 = vadd.f32 %v727, %v889
      %v1079 = vadd.f32 %v729, %v891
      %v1080 = vadd.f32 %v730, %v893
      %v1081 = vadd.f32 %v731, %v895
      %v1082 = vadd.f32 %v733, %v897
      %v1083 = vadd.f32 %v735, %v899
      %v1084 = vadd.f32 %v736, %v901
      %v1085 = vadd.f32 %v737, %v903
      %v1086 = vadd.f32 %v739, %v905
      %v1087 = vadd.f32 %v741, %v907
      %v1088 = vadd.f32 %v742, %v909
      %v1089 = vadd.f32 %v743, %v911
      %v1090 = vadd.f32 %v745, %v913
      %v1091 = vadd.f32 %v747, %v915
      %v1092 = vadd.f32 %v748, %v917
      %v1093 = vadd.f32 %v749, %v919
      %v1094 = vadd.f32 %v751, %v921
      %v1095 = vadd.f32 %v753, %v923
      %v1096 = vadd.f32 %v754, %v925
      %v1097 = vadd.f32 %v755, %v927
      %v1098 = vadd.f32 %v757, %v929
      %v1099 = vadd.f32 %v759, %v931
      %v1100 = vadd.f32 %v760, %v933
      %v1101 = vadd.f32 %v761, %v935
      %v1102 = vadd.f32 %v763, %v937
      %v1103 = vadd.f32 %v765, %v939
      %v1104 = vadd.f32 %v766, %v941
      %v1105 = vadd.f32 %v767, %v943
      %v1106 = vadd.f32 %v769, %v945
      %v1107 = vadd.f32 %v771, %v947
      %v1108 = vadd.f32 %v772, %v949
      %v1109 = vadd.f32 %v773, %v951
      %v1110 = vadd.f32 %v775, %v953
      %v1111 = vadd.f32 %v777, %v955
      %v1112 = vadd.f32 %v778, %v957
      %v1113 = vadd.f32 %v779, %v959
      %v1114 = vadd.f32 %v781, %v961
      %v1115 = vadd.f32 %v783, %v963
      %v1116 = vadd.f32 %v784, %v965
      %v1117 = vadd.f32 %v785, %v967
      %v1118 = vadd.f32 %v787, %v969
      %v1119 = vadd.f32 %v789, %v971
      %v1120 = vadd.f32 %v790, %v973
      %v1121 = vadd.f32 %v791, %v975
      %v1122 = vadd.f32 %v793, %v977
      %v1123 = vadd.f32 %v795, %v979
      %v1124 = vadd.f32 %v796, %v981
      %v1125 = vadd.f32 %v797, %v983
      %v1126 = vadd.f32 %v799, %v985
      %v1127 = vadd.f32 %v801, %v987
      %v1128 = vadd.f32 %v802, %v989
      %v1129 = vadd.f32 %v803, %v991
      %v1130 = vadd.f32 %v805, %v993
      %v1131 = vadd.f32 %v807, %v995
      %v1132 = vadd.f32 %v808, %v997
      %v1133 = vadd.f32 %v809, %v999
      %v1134 = vadd.f32 %v811, %v1001
      %v1135 = vadd.f32 %v813, %v1003
      %v1136 = vadd.f32 %v814, %v1005
      %v1137 = vadd.f32 %v815, %v1007
      %v1138 = vadd.f32 %v817, %v1009
      %v1139 = vadd.f32 %v819, %v1011
      %v1140 = vrot.slane %v724, 6
      %v1141 = vrot.slane %v1140, 4
      %v1142 = vrot.slane %v725, 6
      %v1143 = vrot.slane %v1142, 4
      %v1144 = vrot.slane %v727, 6
      %v1145 = vrot.slane %v1144, 4
      %v1146 = vrot.slane %v729, 6
      %v1147 = vrot.slane %v1146, 4
      %v1148 = vrot.slane %v730, 6
      %v1149 = vrot.slane %v1148, 4
      %v1150 = vrot.slane %v731, 6
      %v1151 = vrot.slane %v1150, 4
      %v1152 = vrot.slane %v733, 6
      %v1153 = vrot.slane %v1152, 4
      %v1154 = vrot.slane %v735, 6
      %v1155 = vrot.slane %v1154, 4
      %v1156 = vrot.slane %v736, 6
      %v1157 = vrot.slane %v1156, 4
      %v1158 = vrot.slane %v737, 6
      %v1159 = vrot.slane %v1158, 4
      %v1160 = vrot.slane %v739, 6
      %v1161 = vrot.slane %v1160, 4
      %v1162 = vrot.slane %v741, 6
      %v1163 = vrot.slane %v1162, 4
      %v1164 = vrot.slane %v742, 6
      %v1165 = vrot.slane %v1164, 4
      %v1166 = vrot.slane %v743, 6
      %v1167 = vrot.slane %v1166, 4
      %v1168 = vrot.slane %v745, 6
      %v1169 = vrot.slane %v1168, 4
      %v1170 = vrot.slane %v747, 6
      %v1171 = vrot.slane %v1170, 4
      %v1172 = vrot.slane %v748, 6
      %v1173 = vrot.slane %v1172, 4
      %v1174 = vrot.slane %v749, 6
      %v1175 = vrot.slane %v1174, 4
      %v1176 = vrot.slane %v751, 6
      %v1177 = vrot.slane %v1176, 4
      %v1178 = vrot.slane %v753, 6
      %v1179 = vrot.slane %v1178, 4
      %v1180 = vrot.slane %v754, 6
      %v1181 = vrot.slane %v1180, 4
      %v1182 = vrot.slane %v755, 6
      %v1183 = vrot.slane %v1182, 4
      %v1184 = vrot.slane %v757, 6
      %v1185 = vrot.slane %v1184, 4
      %v1186 = vrot.slane %v759, 6
      %v1187 = vrot.slane %v1186, 4
      %v1188 = vrot.slane %v760, 6
      %v1189 = vrot.slane %v1188, 4
      %v1190 = vrot.slane %v761, 6
      %v1191 = vrot.slane %v1190, 4
      %v1192 = vrot.slane %v763, 6
      %v1193 = vrot.slane %v1192, 4
      %v1194 = vrot.slane %v765, 6
      %v1195 = vrot.slane %v1194, 4
      %v1196 = vrot.slane %v766, 6
      %v1197 = vrot.slane %v1196, 4
      %v1198 = vrot.slane %v767, 6
      %v1199 = vrot.slane %v1198, 4
      %v1200 = vrot.slane %v769, 6
      %v1201 = vrot.slane %v1200, 4
      %v1202 = vrot.slane %v771, 6
      %v1203 = vrot.slane %v1202, 4
      %v1204 = vrot.slane %v772, 6
      %v1205 = vrot.slane %v1204, 4
      %v1206 = vrot.slane %v773, 6
      %v1207 = vrot.slane %v1206, 4
      %v1208 = vrot.slane %v775, 6
      %v1209 = vrot.slane %v1208, 4
      %v1210 = vrot.slane %v777, 6
      %v1211 = vrot.slane %v1210, 4
      %v1212 = vrot.slane %v778, 6
      %v1213 = vrot.slane %v1212, 4
      %v1214 = vrot.slane %v779, 6
      %v1215 = vrot.slane %v1214, 4
      %v1216 = vrot.slane %v781, 6
      %v1217 = vrot.slane %v1216, 4
      %v1218 = vrot.slane %v783, 6
      %v1219 = vrot.slane %v1218, 4
      %v1220 = vrot.slane %v784, 6
      %v1221 = vrot.slane %v1220, 4
      %v1222 = vrot.slane %v785, 6
      %v1223 = vrot.slane %v1222, 4
      %v1224 = vrot.slane %v787, 6
      %v1225 = vrot.slane %v1224, 4
      %v1226 = vrot.slane %v789, 6
      %v1227 = vrot.slane %v1226, 4
      %v1228 = vrot.slane %v790, 6
      %v1229 = vrot.slane %v1228, 4
      %v1230 = vrot.slane %v791, 6
      %v1231 = vrot.slane %v1230, 4
      %v1232 = vrot.slane %v793, 6
      %v1233 = vrot.slane %v1232, 4
      %v1234 = vrot.slane %v795, 6
      %v1235 = vrot.slane %v1234, 4
      %v1236 = vrot.slane %v796, 6
      %v1237 = vrot.slane %v1236, 4
      %v1238 = vrot.slane %v797, 6
      %v1239 = vrot.slane %v1238, 4
      %v1240 = vrot.slane %v799, 6
      %v1241 = vrot.slane %v1240, 4
      %v1242 = vrot.slane %v801, 6
      %v1243 = vrot.slane %v1242, 4
      %v1244 = vrot.slane %v802, 6
      %v1245 = vrot.slane %v1244, 4
      %v1246 = vrot.slane %v803, 6
      %v1247 = vrot.slane %v1246, 4
      %v1248 = vrot.slane %v805, 6
      %v1249 = vrot.slane %v1248, 4
      %v1250 = vrot.slane %v807, 6
      %v1251 = vrot.slane %v1250, 4
      %v1252 = vrot.slane %v808, 6
      %v1253 = vrot.slane %v1252, 4
      %v1254 = vrot.slane %v809, 6
      %v1255 = vrot.slane %v1254, 4
      %v1256 = vrot.slane %v811, 6
      %v1257 = vrot.slane %v1256, 4
      %v1258 = vrot.slane %v813, 6
      %v1259 = vrot.slane %v1258, 4
      %v1260 = vrot.slane %v814, 6
      %v1261 = vrot.slane %v1260, 4
      %v1262 = vrot.slane %v815, 6
      %v1263 = vrot.slane %v1262, 4
      %v1264 = vrot.slane %v817, 6
      %v1265 = vrot.slane %v1264, 4
      %v1266 = vrot.slane %v819, 6
      %v1267 = vrot.slane %v1266, 4
      %v1332 = vadd.f32 %v1076, %v1141
      %v1333 = vadd.f32 %v1077, %v1143
      %v1334 = vadd.f32 %v1078, %v1145
      %v1335 = vadd.f32 %v1079, %v1147
      %v1336 = vadd.f32 %v1080, %v1149
      %v1337 = vadd.f32 %v1081, %v1151
      %v1338 = vadd.f32 %v1082, %v1153
      %v1339 = vadd.f32 %v1083, %v1155
      %v1340 = vadd.f32 %v1084, %v1157
      %v1341 = vadd.f32 %v1085, %v1159
      %v1342 = vadd.f32 %v1086, %v1161
      %v1343 = vadd.f32 %v1087, %v1163
      %v1344 = vadd.f32 %v1088, %v1165
      %v1345 = vadd.f32 %v1089, %v1167
      %v1346 = vadd.f32 %v1090, %v1169
      %v1347 = vadd.f32 %v1091, %v1171
      %v1348 = vadd.f32 %v1092, %v1173
      %v1349 = vadd.f32 %v1093, %v1175
      %v1350 = vadd.f32 %v1094, %v1177
      %v1351 = vadd.f32 %v1095, %v1179
      %v1352 = vadd.f32 %v1096, %v1181
      %v1353 = vadd.f32 %v1097, %v1183
      %v1354 = vadd.f32 %v1098, %v1185
      %v1355 = vadd.f32 %v1099, %v1187
      %v1356 = vadd.f32 %v1100, %v1189
      %v1357 = vadd.f32 %v1101, %v1191
      %v1358 = vadd.f32 %v1102, %v1193
      %v1359 = vadd.f32 %v1103, %v1195
      %v1360 = vadd.f32 %v1104, %v1197
      %v1361 = vadd.f32 %v1105, %v1199
      %v1362 = vadd.f32 %v1106, %v1201
      %v1363 = vadd.f32 %v1107, %v1203
      %v1364 = vadd.f32 %v1108, %v1205
      %v1365 = vadd.f32 %v1109, %v1207
      %v1366 = vadd.f32 %v1110, %v1209
      %v1367 = vadd.f32 %v1111, %v1211
      %v1368 = vadd.f32 %v1112, %v1213
      %v1369 = vadd.f32 %v1113, %v1215
      %v1370 = vadd.f32 %v1114, %v1217
      %v1371 = vadd.f32 %v1115, %v1219
      %v1372 = vadd.f32 %v1116, %v1221
      %v1373 = vadd.f32 %v1117, %v1223
      %v1374 = vadd.f32 %v1118, %v1225
      %v1375 = vadd.f32 %v1119, %v1227
      %v1376 = vadd.f32 %v1120, %v1229
      %v1377 = vadd.f32 %v1121, %v1231
      %v1378 = vadd.f32 %v1122, %v1233
      %v1379 = vadd.f32 %v1123, %v1235
      %v1380 = vadd.f32 %v1124, %v1237
      %v1381 = vadd.f32 %v1125, %v1239
      %v1382 = vadd.f32 %v1126, %v1241
      %v1383 = vadd.f32 %v1127, %v1243
      %v1384 = vadd.f32 %v1128, %v1245
      %v1385 = vadd.f32 %v1129, %v1247
      %v1386 = vadd.f32 %v1130, %v1249
      %v1387 = vadd.f32 %v1131, %v1251
      %v1388 = vadd.f32 %v1132, %v1253
      %v1389 = vadd.f32 %v1133, %v1255
      %v1390 = vadd.f32 %v1134, %v1257
      %v1391 = vadd.f32 %v1135, %v1259
      %v1392 = vadd.f32 %v1136, %v1261
      %v1393 = vadd.f32 %v1137, %v1263
      %v1394 = vadd.f32 %v1138, %v1265
      %v1395 = vadd.f32 %v1139, %v1267
      %v1396 = vrot.slane %v724, 7
      %v1397 = vrot.slane %v1396, 4
      %v1398 = vrot.slane %v725, 7
      %v1399 = vrot.slane %v1398, 4
      %v1400 = vrot.slane %v727, 7
      %v1401 = vrot.slane %v1400, 4
      %v1402 = vrot.slane %v729, 7
      %v1403 = vrot.slane %v1402, 4
      %v1404 = vrot.slane %v730, 7
      %v1405 = vrot.slane %v1404, 4
      %v1406 = vrot.slane %v731, 7
      %v1407 = vrot.slane %v1406, 4
      %v1408 = vrot.slane %v733, 7
      %v1409 = vrot.slane %v1408, 4
      %v1410 = vrot.slane %v735, 7
      %v1411 = vrot.slane %v1410, 4
      %v1412 = vrot.slane %v736, 7
      %v1413 = vrot.slane %v1412, 4
      %v1414 = vrot.slane %v737, 7
      %v1415 = vrot.slane %v1414, 4
      %v1416 = vrot.slane %v739, 7
      %v1417 = vrot.slane %v1416, 4
      %v1418 = vrot.slane %v741, 7
      %v1419 = vrot.slane %v1418, 4
      %v1420 = vrot.slane %v742, 7
      %v1421 = vrot.slane %v1420, 4
      %v1422 = vrot.slane %v743, 7
      %v1423 = vrot.slane %v1422, 4
      %v1424 = vrot.slane %v745, 7
      %v1425 = vrot.slane %v1424, 4
      %v1426 = vrot.slane %v747, 7
      %v1427 = vrot.slane %v1426, 4
      %v1428 = vrot.slane %v748, 7
      %v1429 = vrot.slane %v1428, 4
      %v1430 = vrot.slane %v749, 7
      %v1431 = vrot.slane %v1430, 4
      %v1432 = vrot.slane %v751, 7
      %v1433 = vrot.slane %v1432, 4
      %v1434 = vrot.slane %v753, 7
      %v1435 = vrot.slane %v1434, 4
      %v1436 = vrot.slane %v754, 7
      %v1437 = vrot.slane %v1436, 4
      %v1438 = vrot.slane %v755, 7
      %v1439 = vrot.slane %v1438, 4
      %v1440 = vrot.slane %v757, 7
      %v1441 = vrot.slane %v1440, 4
      %v1442 = vrot.slane %v759, 7
      %v1443 = vrot.slane %v1442, 4
      %v1444 = vrot.slane %v760, 7
      %v1445 = vrot.slane %v1444, 4
      %v1446 = vrot.slane %v761, 7
      %v1447 = vrot.slane %v1446, 4
      %v1448 = vrot.slane %v763, 7
      %v1449 = vrot.slane %v1448, 4
      %v1450 = vrot.slane %v765, 7
      %v1451 = vrot.slane %v1450, 4
      %v1452 = vrot.slane %v766, 7
      %v1453 = vrot.slane %v1452, 4
      %v1454 = vrot.slane %v767, 7
      %v1455 = vrot.slane %v1454, 4
      %v1456 = vrot.slane %v769, 7
      %v1457 = vrot.slane %v1456, 4
      %v1458 = vrot.slane %v771, 7
      %v1459 = vrot.slane %v1458, 4
      %v1460 = vrot.slane %v772, 7
      %v1461 = vrot.slane %v1460, 4
      %v1462 = vrot.slane %v773, 7
      %v1463 = vrot.slane %v1462, 4
      %v1464 = vrot.slane %v775, 7
      %v1465 = vrot.slane %v1464, 4
      %v1466 = vrot.slane %v777, 7
      %v1467 = vrot.slane %v1466, 4
      %v1468 = vrot.slane %v778, 7
      %v1469 = vrot.slane %v1468, 4
      %v1470 = vrot.slane %v779, 7
      %v1471 = vrot.slane %v1470, 4
      %v1472 = vrot.slane %v781, 7
      %v1473 = vrot.slane %v1472, 4
      %v1474 = vrot.slane %v783, 7
      %v1475 = vrot.slane %v1474, 4
      %v1476 = vrot.slane %v784, 7
      %v1477 = vrot.slane %v1476, 4
      %v1478 = vrot.slane %v785, 7
      %v1479 = vrot.slane %v1478, 4
      %v1480 = vrot.slane %v787, 7
      %v1481 = vrot.slane %v1480, 4
      %v1482 = vrot.slane %v789, 7
      %v1483 = vrot.slane %v1482, 4
      %v1484 = vrot.slane %v790, 7
      %v1485 = vrot.slane %v1484, 4
      %v1486 = vrot.slane %v791, 7
      %v1487 = vrot.slane %v1486, 4
      %v1488 = vrot.slane %v793, 7
      %v1489 = vrot.slane %v1488, 4
      %v1490 = vrot.slane %v795, 7
      %v1491 = vrot.slane %v1490, 4
      %v1492 = vrot.slane %v796, 7
      %v1493 = vrot.slane %v1492, 4
      %v1494 = vrot.slane %v797, 7
      %v1495 = vrot.slane %v1494, 4
      %v1496 = vrot.slane %v799, 7
      %v1497 = vrot.slane %v1496, 4
      %v1498 = vrot.slane %v801, 7
      %v1499 = vrot.slane %v1498, 4
      %v1500 = vrot.slane %v802, 7
      %v1501 = vrot.slane %v1500, 4
      %v1502 = vrot.slane %v803, 7
      %v1503 = vrot.slane %v1502, 4
      %v1504 = vrot.slane %v805, 7
      %v1505 = vrot.slane %v1504, 4
      %v1506 = vrot.slane %v807, 7
      %v1507 = vrot.slane %v1506, 4
      %v1508 = vrot.slane %v808, 7
      %v1509 = vrot.slane %v1508, 4
      %v1510 = vrot.slane %v809, 7
      %v1511 = vrot.slane %v1510, 4
      %v1512 = vrot.slane %v811, 7
      %v1513 = vrot.slane %v1512, 4
      %v1514 = vrot.slane %v813, 7
      %v1515 = vrot.slane %v1514, 4
      %v1516 = vrot.slane %v814, 7
      %v1517 = vrot.slane %v1516, 4
      %v1518 = vrot.slane %v815, 7
      %v1519 = vrot.slane %v1518, 4
      %v1520 = vrot.slane %v817, 7
      %v1521 = vrot.slane %v1520, 4
      %v1522 = vrot.slane %v819, 7
      %v1523 = vrot.slane %v1522, 4
      %v1588 = vadd.f32 %v1332, %v1397
      %v1589 = vadd.f32 %v1333, %v1399
      %v1590 = vadd.f32 %v1334, %v1401
      %v1591 = vadd.f32 %v1335, %v1403
      %v1592 = vadd.f32 %v1336, %v1405
      %v1593 = vadd.f32 %v1337, %v1407
      %v1594 = vadd.f32 %v1338, %v1409
      %v1595 = vadd.f32 %v1339, %v1411
      %v1596 = vadd.f32 %v1340, %v1413
      %v1597 = vadd.f32 %v1341, %v1415
      %v1598 = vadd.f32 %v1342, %v1417
      %v1599 = vadd.f32 %v1343, %v1419
      %v1600 = vadd.f32 %v1344, %v1421
      %v1601 = vadd.f32 %v1345, %v1423
      %v1602 = vadd.f32 %v1346, %v1425
      %v1603 = vadd.f32 %v1347, %v1427
      %v1604 = vadd.f32 %v1348, %v1429
      %v1605 = vadd.f32 %v1349, %v1431
      %v1606 = vadd.f32 %v1350, %v1433
      %v1607 = vadd.f32 %v1351, %v1435
      %v1608 = vadd.f32 %v1352, %v1437
      %v1609 = vadd.f32 %v1353, %v1439
      %v1610 = vadd.f32 %v1354, %v1441
      %v1611 = vadd.f32 %v1355, %v1443
      %v1612 = vadd.f32 %v1356, %v1445
      %v1613 = vadd.f32 %v1357, %v1447
      %v1614 = vadd.f32 %v1358, %v1449
      %v1615 = vadd.f32 %v1359, %v1451
      %v1616 = vadd.f32 %v1360, %v1453
      %v1617 = vadd.f32 %v1361, %v1455
      %v1618 = vadd.f32 %v1362, %v1457
      %v1619 = vadd.f32 %v1363, %v1459
      %v1620 = vadd.f32 %v1364, %v1461
      %v1621 = vadd.f32 %v1365, %v1463
      %v1622 = vadd.f32 %v1366, %v1465
      %v1623 = vadd.f32 %v1367, %v1467
      %v1624 = vadd.f32 %v1368, %v1469
      %v1625 = vadd.f32 %v1369, %v1471
      %v1626 = vadd.f32 %v1370, %v1473
      %v1627 = vadd.f32 %v1371, %v1475
      %v1628 = vadd.f32 %v1372, %v1477
      %v1629 = vadd.f32 %v1373, %v1479
      %v1630 = vadd.f32 %v1374, %v1481
      %v1631 = vadd.f32 %v1375, %v1483
      %v1632 = vadd.f32 %v1376, %v1485
      %v1633 = vadd.f32 %v1377, %v1487
      %v1634 = vadd.f32 %v1378, %v1489
      %v1635 = vadd.f32 %v1379, %v1491
      %v1636 = vadd.f32 %v1380, %v1493
      %v1637 = vadd.f32 %v1381, %v1495
      %v1638 = vadd.f32 %v1382, %v1497
      %v1639 = vadd.f32 %v1383, %v1499
      %v1640 = vadd.f32 %v1384, %v1501
      %v1641 = vadd.f32 %v1385, %v1503
      %v1642 = vadd.f32 %v1386, %v1505
      %v1643 = vadd.f32 %v1387, %v1507
      %v1644 = vadd.f32 %v1388, %v1509
      %v1645 = vadd.f32 %v1389, %v1511
      %v1646 = vadd.f32 %v1390, %v1513
      %v1647 = vadd.f32 %v1391, %v1515
      %v1648 = vadd.f32 %v1392, %v1517
      %v1649 = vadd.f32 %v1393, %v1519
      %v1650 = vadd.f32 %v1394, %v1521
      %v1651 = vadd.f32 %v1395, %v1523
      %v1652 = vadd.f32 %v1588, %v1596
      %v1653 = vadd.f32 %v1589, %v1597
      %v1654 = vadd.f32 %v1590, %v1598
      %v1655 = vadd.f32 %v1591, %v1599
      %v1656 = vadd.f32 %v1592, %v1600
      %v1657 = vadd.f32 %v1593, %v1601
      %v1658 = vadd.f32 %v1594, %v1602
      %v1659 = vadd.f32 %v1595, %v1603
      %v1660 = vadd.f32 %v1620, %v1628
      %v1661 = vadd.f32 %v1621, %v1629
      %v1662 = vadd.f32 %v1622, %v1630
      %v1663 = vadd.f32 %v1623, %v1631
      %v1664 = vadd.f32 %v1624, %v1632
      %v1665 = vadd.f32 %v1625, %v1633
      %v1666 = vadd.f32 %v1626, %v1634
      %v1667 = vadd.f32 %v1627, %v1635
      %v1668 = vadd.f32 %v1652, %v1604
      %v1669 = vadd.f32 %v1653, %v1605
      %v1670 = vadd.f32 %v1654, %v1606
      %v1671 = vadd.f32 %v1655, %v1607
      %v1672 = vadd.f32 %v1656, %v1608
      %v1673 = vadd.f32 %v1657, %v1609
      %v1674 = vadd.f32 %v1658, %v1610
      %v1675 = vadd.f32 %v1659, %v1611
      %v1676 = vadd.f32 %v1660, %v1636
      %v1677 = vadd.f32 %v1661, %v1637
      %v1678 = vadd.f32 %v1662, %v1638
      %v1679 = vadd.f32 %v1663, %v1639
      %v1680 = vadd.f32 %v1664, %v1640
      %v1681 = vadd.f32 %v1665, %v1641
      %v1682 = vadd.f32 %v1666, %v1642
      %v1683 = vadd.f32 %v1667, %v1643
      %v1684 = vadd.f32 %v1668, %v1612
      %v1685 = vadd.f32 %v1669, %v1613
      %v1686 = vadd.f32 %v1670, %v1614
      %v1687 = vadd.f32 %v1671, %v1615
      %v1688 = vadd.f32 %v1672, %v1616
      %v1689 = vadd.f32 %v1673, %v1617
      %v1690 = vadd.f32 %v1674, %v1618
      %v1691 = vadd.f32 %v1675, %v1619
      %v1692 = vadd.f32 %v1676, %v1644
      %v1693 = vadd.f32 %v1677, %v1645
      %v1694 = vadd.f32 %v1678, %v1646
      %v1695 = vadd.f32 %v1679, %v1647
      %v1696 = vadd.f32 %v1680, %v1648
      %v1697 = vadd.f32 %v1681, %v1649
      %v1698 = vadd.f32 %v1682, %v1650
      %v1699 = vadd.f32 %v1683, %v1651
      %v1700 = vmul.f32 %v1684, 0.0625
      %v1701 = vmul.f32 %v1685, 0.0625
      %v1702 = vmul.f32 %v1686, 0.0625
      %v1703 = vmul.f32 %v1687, 0.0625
      %v1704 = vmul.f32 %v1688, 0.0625
      %v1705 = vmul.f32 %v1689, 0.0625
      %v1706 = vmul.f32 %v1690, 0.0625
      %v1707 = vmul.f32 %v1691, 0.0625
      %v1708 = vmul.f32 %v1692, 0.0625
      %v1709 = vmul.f32 %v1693, 0.0625
      %v1710 = vmul.f32 %v1694, 0.0625
      %v1711 = vmul.f32 %v1695, 0.0625
      %v1712 = vmul.f32 %v1696, 0.0625
      %v1713 = vmul.f32 %v1697, 0.0625
      %v1714 = vmul.f32 %v1698, 0.0625
      %v1715 = vmul.f32 %v1699, 0.0625
      %v1732 = vperm.slane %v1700, 0
      %v1733 = vperm.slane %v1700, 4
      %v1734 = vperm.slane %v1701, 0
      %v1735 = vperm.slane %v1701, 4
      %v1736 = vperm.slane %v1702, 0
      %v1737 = vperm.slane %v1702, 4
      %v1738 = vperm.slane %v1703, 0
      %v1739 = vperm.slane %v1703, 4
      %v1740 = vperm.slane %v1704, 0
      %v1741 = vperm.slane %v1704, 4
      %v1742 = vperm.slane %v1705, 0
      %v1743 = vperm.slane %v1705, 4
      %v1744 = vperm.slane %v1706, 0
      %v1745 = vperm.slane %v1706, 4
      %v1746 = vperm.slane %v1707, 0
      %v1747 = vperm.slane %v1707, 4
      %v1748 = vperm.slane %v1708, 0
      %v1749 = vperm.slane %v1708, 4
      %v1750 = vperm.slane %v1709, 0
      %v1751 = vperm.slane %v1709, 4
      %v1752 = vperm.slane %v1710, 0
      %v1753 = vperm.slane %v1710, 4
      %v1754 = vperm.slane %v1711, 0
      %v1755 = vperm.slane %v1711, 4
      %v1756 = vperm.slane %v1712, 0
      %v1757 = vperm.slane %v1712, 4
      %v1758 = vperm.slane %v1713, 0
      %v1759 = vperm.slane %v1713, 4
      %v1760 = vperm.slane %v1714, 0
      %v1761 = vperm.slane %v1714, 4
      %v1762 = vperm.slane %v1715, 0
      %v1763 = vperm.slane %v1715, 4
      %v1796 = vpack.c.bf16 %v1733, %v1732
      %v1797 = vpack.c.bf16 %v1735, %v1734
      %v1798 = vpack.c.bf16 %v1737, %v1736
      %v1799 = vpack.c.bf16 %v1739, %v1738
      %v1800 = vpack.c.bf16 %v1741, %v1740
      %v1801 = vpack.c.bf16 %v1743, %v1742
      %v1802 = vpack.c.bf16 %v1745, %v1744
      %v1803 = vpack.c.bf16 %v1747, %v1746
      %v1804 = vpack.c.bf16 %v1749, %v1748
      %v1805 = vpack.c.bf16 %v1751, %v1750
      %v1806 = vpack.c.bf16 %v1753, %v1752
      %v1807 = vpack.c.bf16 %v1755, %v1754
      %v1808 = vpack.c.bf16 %v1757, %v1756
      %v1809 = vpack.c.bf16 %v1759, %v1758
      %v1810 = vpack.c.bf16 %v1761, %v1760
      %v1811 = vpack.c.bf16 %v1763, %v1762
      %v1828 = vrot.slane %v1796, 2
      %v1829 = vrot.slane %v1797, 4
      %v1830 = vrot.slane %v1797, 6
      %v1831 = vrot.slane %v1798, 2
      %v1832 = vrot.slane %v1799, 4
      %v1833 = vrot.slane %v1799, 6
      %v1834 = vrot.slane %v1800, 2
      %v1835 = vrot.slane %v1801, 4
      %v1836 = vrot.slane %v1801, 6
      %v1837 = vrot.slane %v1802, 2
      %v1838 = vrot.slane %v1803, 4
      %v1839 = vrot.slane %v1803, 6
      %v1840 = vrot.slane %v1804, 2
      %v1841 = vrot.slane %v1805, 4
      %v1842 = vrot.slane %v1805, 6
      %v1843 = vrot.slane %v1806, 2
      %v1844 = vrot.slane %v1807, 4
      %v1845 = vrot.slane %v1807, 6
      %v1846 = vrot.slane %v1808, 2
      %v1847 = vrot.slane %v1809, 4
      %v1848 = vrot.slane %v1809, 6
      %v1849 = vrot.slane %v1810, 2
      %v1850 = vrot.slane %v1811, 4
      %v1851 = vrot.slane %v1811, 6
      %vm1852 = vcmask 1041408
      %v1855 = vsel %vm1852, %v1796, %v1828
      %vm1856 = vcmask 1045508
      %v1859 = vsel %vm1856, %v1829, %v1830
      %v1860 = vsel %vm723, %v1855, %v1859
      %v1863 = vsel %vm1852, %v1798, %v1831
      %v1866 = vsel %vm1856, %v1832, %v1833
      %v1867 = vsel %vm723, %v1863, %v1866
      %v1870 = vsel %vm1852, %v1800, %v1834
      %v1873 = vsel %vm1856, %v1835, %v1836
      %v1874 = vsel %vm723, %v1870, %v1873
      %v1877 = vsel %vm1852, %v1802, %v1837
      %v1880 = vsel %vm1856, %v1838, %v1839
      %v1881 = vsel %vm723, %v1877, %v1880
      %v1884 = vsel %vm1852, %v1804, %v1840
      %v1887 = vsel %vm1856, %v1841, %v1842
      %v1888 = vsel %vm723, %v1884, %v1887
      %v1891 = vsel %vm1852, %v1806, %v1843
      %v1894 = vsel %vm1856, %v1844, %v1845
      %v1895 = vsel %vm723, %v1891, %v1894
      %v1898 = vsel %vm1852, %v1808, %v1846
      %v1901 = vsel %vm1856, %v1847, %v1848
      %v1902 = vsel %vm723, %v1898, %v1901
      %v1905 = vsel %vm1852, %v1810, %v1849
      %v1908 = vsel %vm1856, %v1850, %v1851
      %v1909 = vsel %vm723, %v1905, %v1908
      %1910 = vst [vmem:[#allocation1] ss:$2 sm:$0xff] %v1860
      %v1911 = vld.sshfl [vmem:[#allocation1] sm:$0xff pattern:$0x75643120]
      %v1913 = vld.sshfl [vmem:[#allocation1 + $0x8] sm:$0xff pattern:$0x75643120]
      %s1915 = scalar_lea.vmem [#allocation1], 16
      %1916 = vst [vmem:[%s1915] ss:$2 sm:$0xff] %v1867
      %v1917 = vld.sshfl [vmem:[#allocation1 + $0x10] sm:$0xff pattern:$0x75643120]
      %v1919 = vld.sshfl [vmem:[#allocation1 + $0x18] sm:$0xff pattern:$0x75643120]
      %s1921 = scalar_lea.vmem [#allocation1], 32
      %1922 = vst [vmem:[%s1921] ss:$2 sm:$0xff] %v1874
      %v1923 = vld.sshfl [vmem:[#allocation1 + $0x20] sm:$0xff pattern:$0x75643120]
      %v1925 = vld.sshfl [vmem:[#allocation1 + $0x28] sm:$0xff pattern:$0x75643120]
      %s1927 = scalar_lea.vmem [#allocation1], 48
      %1928 = vst [vmem:[%s1927] ss:$2 sm:$0xff] %v1881
      %v1929 = vld.sshfl [vmem:[#allocation1 + $0x30] sm:$0xff pattern:$0x75643120]
      %v1931 = vld.sshfl [vmem:[#allocation1 + $0x38] sm:$0xff pattern:$0x75643120]
      %1933 = vst [vmem:[#allocation1] ss:$2 sm:$0xff] %v1888
      %v1934 = vld.sshfl [vmem:[#allocation1] sm:$0xff pattern:$0x75643120]
      %v1936 = vld.sshfl [vmem:[#allocation1 + $0x8] sm:$0xff pattern:$0x75643120]
      %1938 = vst [vmem:[%s1915] ss:$2 sm:$0xff] %v1895
      %v1939 = vld.sshfl [vmem:[#allocation1 + $0x10] sm:$0xff pattern:$0x75643120]
      %v1941 = vld.sshfl [vmem:[#allocation1 + $0x18] sm:$0xff pattern:$0x75643120]
      %1943 = vst [vmem:[%s1921] ss:$2 sm:$0xff] %v1902
      %v1944 = vld.sshfl [vmem:[#allocation1 + $0x20] sm:$0xff pattern:$0x75643120]
      %v1946 = vld.sshfl [vmem:[#allocation1 + $0x28] sm:$0xff pattern:$0x75643120]
      %1948 = vst [vmem:[%s1927] ss:$2 sm:$0xff] %v1909
      %v1949 = vld.sshfl [vmem:[#allocation1 + $0x30] sm:$0xff pattern:$0x75643120]
      %v1951 = vld.sshfl [vmem:[#allocation1 + $0x38] sm:$0xff pattern:$0x75643120]
      %v1953 = vunpack.c.l.b16 %v1911
      %v1954 = vunpack.c.h.b16 %v1911
      %v1955 = vunpack.c.l.b16 %v1913
      %v1956 = vunpack.c.h.b16 %v1913
      %v1957 = vunpack.c.l.b16 %v1917
      %v1958 = vunpack.c.h.b16 %v1917
      %v1959 = vunpack.c.l.b16 %v1919
      %v1960 = vunpack.c.h.b16 %v1919
      %v1961 = vunpack.c.l.b16 %v1923
      %v1962 = vunpack.c.h.b16 %v1923
      %v1963 = vunpack.c.l.b16 %v1925
      %v1964 = vunpack.c.h.b16 %v1925
      %v1965 = vunpack.c.l.b16 %v1929
      %v1966 = vunpack.c.h.b16 %v1929
      %v1967 = vunpack.c.l.b16 %v1931
      %v1968 = vunpack.c.h.b16 %v1931
      %v1969 = vunpack.c.l.b16 %v1934
      %v1970 = vunpack.c.h.b16 %v1934
      %v1971 = vunpack.c.l.b16 %v1936
      %v1972 = vunpack.c.h.b16 %v1936
      %v1973 = vunpack.c.l.b16 %v1939
      %v1974 = vunpack.c.h.b16 %v1939
      %v1975 = vunpack.c.l.b16 %v1941
      %v1976 = vunpack.c.h.b16 %v1941
      %v1977 = vunpack.c.l.b16 %v1944
      %v1978 = vunpack.c.h.b16 %v1944
      %v1979 = vunpack.c.l.b16 %v1946
      %v1980 = vunpack.c.h.b16 %v1946
      %v1981 = vunpack.c.l.b16 %v1949
      %v1982 = vunpack.c.h.b16 %v1949
      %v1983 = vunpack.c.l.b16 %v1951
      %v1984 = vunpack.c.h.b16 %v1951
      %v1985 = vrot.slane %v1957, 7
      %vm1986 = vcmask 1041409
      %v1987 = vsel %vm1986, %v1985, %v1953
      %v1988 = vrot.slane %v1961, 6
      %vm1989 = vcmask 1042434
      %v1990 = vsel %vm1989, %v1988, %v1987
      %v1991 = vrot.slane %v1965, 5
      %vm1992 = vcmask 1043459
      %v1993 = vsel %vm1992, %v1991, %v1990
      %v1994 = vrot.slane %v1958, 7
      %v1995 = vsel %vm1986, %v1994, %v1954
      %v1996 = vrot.slane %v1962, 6
      %v1997 = vsel %vm1989, %v1996, %v1995
      %v1998 = vrot.slane %v1966, 5
      %v1999 = vsel %vm1992, %v1998, %v1997
      %v2000 = vrot.slane %v1959, 7
      %v2001 = vsel %vm1986, %v2000, %v1955
      %v2002 = vrot.slane %v1963, 6
      %v2003 = vsel %vm1989, %v2002, %v2001
      %v2004 = vrot.slane %v1967, 5
      %v2005 = vsel %vm1992, %v2004, %v2003
      %v2006 = vrot.slane %v1960, 7
      %v2007 = vsel %vm1986, %v2006, %v1956
      %v2008 = vrot.slane %v1964, 6
      %v2009 = vsel %vm1989, %v2008, %v2007
      %v2010 = vrot.slane %v1968, 5
      %v2011 = vsel %vm1992, %v2010, %v2009
      %v2012 = vrot.slane %v1973, 7
      %v2013 = vsel %vm1986, %v2012, %v1969
      %v2014 = vrot.slane %v1977, 6
      %v2015 = vsel %vm1989, %v2014, %v2013
      %v2016 = vrot.slane %v1981, 5
      %v2017 = vsel %vm1992, %v2016, %v2015
      %v2018 = vrot.slane %v1974, 7
      %v2019 = vsel %vm1986, %v2018, %v1970
      %v2020 = vrot.slane %v1978, 6
      %v2021 = vsel %vm1989, %v2020, %v2019
      %v2022 = vrot.slane %v1982, 5
      %v2023 = vsel %vm1992, %v2022, %v2021
      %v2024 = vrot.slane %v1975, 7
      %v2025 = vsel %vm1986, %v2024, %v1971
      %v2026 = vrot.slane %v1979, 6
      %v2027 = vsel %vm1989, %v2026, %v2025
      %v2028 = vrot.slane %v1983, 5
      %v2029 = vsel %vm1992, %v2028, %v2027
      %v2030 = vrot.slane %v1976, 7
      %v2031 = vsel %vm1986, %v2030, %v1972
      %v2032 = vrot.slane %v1980, 6
      %v2033 = vsel %vm1989, %v2032, %v2031
      %v2034 = vrot.slane %v1984, 5
      %v2035 = vsel %vm1992, %v2034, %v2033
      %v2036 = vpack.c.b16 %v1999, %v1993
      %v2037 = vpack.c.b16 %v2011, %v2005
      %v2038 = vpack.c.b16 %v2023, %v2017
      %v2039 = vpack.c.b16 %v2035, %v2029
      %v2040 = vrot.slane %v2036, 2
      %v2041 = vrot.slane %v2037, 4
      %v2042 = vrot.slane %v2037, 6
      %v2043 = vrot.slane %v2038, 2
      %v2044 = vrot.slane %v2039, 4
      %v2045 = vrot.slane %v2039, 6
      %v2048 = vsel %vm1852, %v2036, %v2040
      %v2051 = vsel %vm1856, %v2041, %v2042
      %v2052 = vsel %vm723, %v2048, %v2051
      %v2055 = vsel %vm1852, %v2038, %v2043
      %v2058 = vsel %vm1856, %v2044, %v2045
      %v2059 = vsel %vm723, %v2055, %v2058
      %2062 = vst [vmem:[%s213] sm:$0xff] %v2052
      %2063 = vst [vmem:[%s213 + $0x8] sm:$0xff] %v2059
      %s2064 = smul.u32 2, %s19
      %p2065 = scmp.lt.s32.totalorder %s18, 1
      %s2066 = scalar_select %p2065, %s18, 1
      %p2067 = scmp.lt.s32.totalorder %s2064, 3
      %s2068 = scalar_select %p2067, %s2064, 3
      %s2069 = smul.addr %s2068, 4
      %s2070 = smul.addr %s2066, 16
      %s2071 = sadd.s32 %s2069, %s2070
      %s2072 = smul.addr %s2071, 2
      %s2073 = scalar_lea.vmem %s3, %s2072
      // Predicated region
      $region33: #{matterport_forward.6} parent=31 // pred_check
        %p2074 = pneg %p116
      $region34: #{matterport_forward.6} parent=31 // pred_check_branch
        %2076 = sbr.rel (%p2074) target = $region36
      $region35: #{matterport_forward.6} parent=31 // pred_region
        %s2077 = smul.u32 2, %s19
      $region36: #{matterport_forward.6} parent=31 // pred_fallthru
        _
    $region32: #{matterport_forward.6} parent=5 // pred_fallthru
      _
    %p2078 = scmp.le.s32.totalorder 2, %s9
    // Predicated region
    $region37: #{matterport_forward.6} parent=5 // pred_check
      %p2079 = pneg %p2078
    $region38: #{matterport_forward.6} parent=5 // pred_check_branch
      %2081 = sbr.rel (%p2079) target = $region40
    $region39: #{matterport_forward.6} parent=5 // pred_region
      %s2082 = ssub.s32 %s9, 2
      // Predicated region
      $region41: #{matterport_forward.6} parent=39 // pred_check
        %p2083 = pneg %p122
      $region42: #{matterport_forward.6} parent=39 // pred_check_branch
        %2085 = sbr.rel (%p2083) target = $region44
      $region43: #{matterport_forward.6} parent=39 // pred_region
        %s2086 = smul.u32 2, %s21
        %p2087 = scmp.lt.s32.totalorder %s20, 1
        %s2088 = scalar_select %p2087, %s20, 1
        %p2089 = scmp.lt.s32.totalorder %s2086, 3
        %s2090 = scalar_select %p2089, %s2086, 3
        %s2091 = smul.addr %s2090, 4
        %s2092 = smul.addr %s2088, 16
        %s2093 = sadd.s32 %s2091, %s2092
        %s2094 = smul.addr %s2093, 2
        %s2095 = scalar_lea.vmem %s3, %s2094
      $region44: #{matterport_forward.6} parent=39 // pred_fallthru
        _
    $region40: #{matterport_forward.6} parent=5 // pred_fallthru
      _
  $region6: #{matterport_forward.6} parent=0 // loop_footer
    %s13 = sadd.s32 1, %s9
  $region7: #{matterport_forward.6} parent=0 // loop_footer_branch
    %8 = sbr.rel target = $region3
  $region8: #{matterport_forward.6} parent=0 // loop_exit
    _

// kernel: matterport_forward.11
$region0: #{matterport_forward.11}
  #allocation0 [shape = 'u32[]', space=smem, size = 0x4, offset = 0x4, fixed_abs, tag = 'smem constant byte address 0x4 - core index']
  #allocation1 [shape = 'u32[72,128]{1,0:T(1,128)}', space=vmem, size = 0x9000, scoped, tag = 'internal scratch']
  %s0 = inlined_call_operand.vmem [shape: bf16[16,4], index: 0, kind: input, shape index: {}, may-alias: {0,1}]
  %s1 = inlined_call_operand.vmem [shape: bf16[16,4], index: 1, kind: input, shape index: {}, may-alias: {0,1}]
  %s2 = inlined_call_operand.vmem [shape: bf16[2,4,512], index: 2, kind: input, shape index: {}]
  %s3 = inlined_call_operand.hbm [shape: f32[2,16,16,128], index: 3, kind: output, shape index: {}]
  %s4 = sld [smem:[#allocation0]]
  $region45: #{matterport_forward.11} parent=0
    _
  %s6 = ssub.s32 1, %s4
  %s7 = scalar_select 0, %s6, %s4
  $region1: #{matterport_forward.11} parent=0
    #allocation2 [shape = 'u8[131072]{0}', space=vmem, size = 0x20000, scoped, tag = 'output window, operand 0']
    #allocation3 [shape = 's32[2]{0}', space=sflag, size = 0x8, scoped, tag = 'scoped memory for matterport_forward.11']
    %8 = vsyncpa [#allocation3], 0
    %s9 = scalar_lea.sflag [#allocation3], 1
    %10 = vsyncpa %s9, 0
    loop: start=0, step=1, limit=6
    $region2: #{matterport_forward.11} parent=1 // loop_pre_header
      _
    $region3: #{matterport_forward.11} parent=1 // loop_header
      %s12 = sphi 0, %s16
      %p13 = scmp.ge.s32.totalorder %s12, 6
      %s19 = sphi 0, %s31
      %s20 = sphi 0, %s27
      %s21 = sphi 0, %s19
      %s22 = sphi 0, %s20
      %s23 = sphi 0, %s21
      %s24 = sphi 0, %s22
      %s34 = sphi 0, %s36
      %s37 = sphi 0, %s34
      %s38 = sphi 0, %s37
      %s54 = sphi 0, %s38
      %s58 = sphi 0, %s58
      %s60 = sphi 0, %s58
      %s61 = sphi 0, %s60
      %s75 = sphi 0, %s61
      %s81 = sphi 0, %s83
      %s84 = sphi 0, %s81
      %s85 = sphi 0, %s84
      %s101 = sphi 0, %s85
      %s109 = sphi 0, %s111
      %s112 = sphi 0, %s109
      %s113 = sphi 0, %s112
      %s129 = sphi 0, %s113
    $region4: #{matterport_forward.11} parent=1 // loop_header_branch
      %15 = sbr.rel (%p13) target = $region8
    $region5: #{matterport_forward.11} parent=1 // loop_body
      %s17 = ssub.s32 %s12, 1
      %s18 = ssub.s32 %s12, 2
      %s25 = sadd.s32 1, %s20
      %p26 = scmp.ge.s32.totalorder %s25, 2
      %s27 = scalar_select %p26, 0, %s25
      %s28 = sadd.s32 1, %s19
      %s29 = scalar_select %p26, %s28, %s19
      %p30 = scmp.ge.s32.totalorder %s29, 2
      %s31 = scalar_select %p30, 0, %s29
      %s32 = ssub.s32 %s20, %s27
      %p33 = scmp.eq.s32.totalorder %s32, 0
      %s35 = sadd.s32 %s34, 1
      %s36 = scalar_select %p33, %s34, %s35
      %p39 = pneg %p33
      %p40 = scmp.eq.s32.totalorder %s12, 3
      %p41 = por %p39, %p40
      %p42 = scmp.ne.s32.totalorder %s34, %s37
      %p43 = scmp.eq.s32.totalorder %s12, 0
      %p44 = por %p42, %p43
      %p45 = scmp.ne.s32.totalorder %s34, %s37
      %p46 = scmp.eq.s32.totalorder %s17, 3
      %p47 = por %p45, %p46
      %p48 = scmp.ne.s32.totalorder %s37, %s38
      %p49 = scmp.eq.s32.totalorder %s17, 0
      %p50 = por %p48, %p49
      %p51 = scmp.ne.s32.totalorder %s37, %s38
      %p52 = scmp.eq.s32.totalorder %s18, 3
      %p53 = por %p51, %p52
      %p55 = scmp.ne.s32.totalorder %s38, %s54
      %p56 = scmp.eq.s32.totalorder %s18, 0
      %p57 = por %p55, %p56
      %s59 = sadd.s32 %s58, 1
      %p62 = scmp.eq.s32.totalorder %s12, 3
      %p63 = scmp.ne.s32.totalorder %s58, %s60
      %p64 = scmp.eq.s32.totalorder %s12, 0
      %p65 = por %p63, %p64
      %p66 = scmp.ne.s32.totalorder %s58, %s60
      %p67 = scmp.eq.s32.totalorder %s17, 3
      %p68 = por %p66, %p67
      %p69 = scmp.ne.s32.totalorder %s60, %s61
      %p70 = scmp.eq.s32.totalorder %s17, 0
      %p71 = por %p69, %p70
      %p72 = scmp.ne.s32.totalorder %s60, %s61
      %p73 = scmp.eq.s32.totalorder %s18, 3
      %p74 = por %p72, %p73
      %p76 = scmp.ne.s32.totalorder %s61, %s75
      %p77 = scmp.eq.s32.totalorder %s18, 0
      %p78 = por %p76, %p77
      %s79 = ssub.s32 %s19, %s31
      %p80 = scmp.eq.s32.totalorder %s79, 0
      %s82 = sadd.s32 %s81, 1
      %s83 = scalar_select %p80, %s81, %s82
      %p86 = pneg %p80
      %p87 = scmp.eq.s32.totalorder %s12, 3
      %p88 = por %p86, %p87
      %p89 = scmp.ne.s32.totalorder %s81, %s84
      %p90 = scmp.eq.s32.totalorder %s12, 0
      %p91 = por %p89, %p90
      %p92 = scmp.ne.s32.totalorder %s81, %s84
      %p93 = scmp.eq.s32.totalorder %s17, 3
      %p94 = por %p92, %p93
      %p95 = scmp.ne.s32.totalorder %s84, %s85
      %p96 = scmp.eq.s32.totalorder %s17, 0
      %p97 = por %p95, %p96
      %p98 = scmp.ne.s32.totalorder %s84, %s85
      %p99 = scmp.eq.s32.totalorder %s18, 3
      %p100 = por %p98, %p99
      %p102 = scmp.ne.s32.totalorder %s85, %s101
      %p103 = scmp.eq.s32.totalorder %s18, 0
      %p104 = por %p102, %p103
      %s105 = ssub.s32 %s19, %s31
      %s106 = ssub.s32 %s20, %s27
      %s107 = sor.u32 %s105, %s106
      %p108 = scmp.eq.s32.totalorder %s107, 0
      %s110 = sadd.s32 %s109, 1
      %s111 = scalar_select %p108, %s109, %s110
      %p114 = pneg %p108
      %p115 = scmp.eq.s32.totalorder %s12, 3
      %p116 = por %p114, %p115
      %p117 = scmp.ne.s32.totalorder %s109, %s112
      %p118 = scmp.eq.s32.totalorder %s12, 0
      %p119 = por %p117, %p118
      %p120 = scmp.ne.s32.totalorder %s109, %s112
      %p121 = scmp.eq.s32.totalorder %s17, 3
      %p122 = por %p120, %p121
      %p123 = scmp.ne.s32.totalorder %s112, %s113
      %p124 = scmp.eq.s32.totalorder %s17, 0
      %p125 = por %p123, %p124
      %p126 = scmp.ne.s32.totalorder %s112, %s113
      %p127 = scmp.eq.s32.totalorder %s18, 3
      %p128 = por %p126, %p127
      %p130 = scmp.ne.s32.totalorder %s113, %s129
      %p131 = scmp.eq.s32.totalorder %s18, 0
      %p132 = por %p130, %p131
      %p133 = scmp.le.s32.totalorder 1, %s12
      %p134 = scmp.lt.s32.totalorder %s12, 5
      %p135 = pnand %p133, %p134
      %p136 = pneg %p135
      // Predicated region
      $region9: #{matterport_forward.11} parent=5 // pred_check
        _
      $region10: #{matterport_forward.11} parent=5 // pred_check_branch
        %138 = sbr.rel (%p135) target = $region12
      $region11: #{matterport_forward.11} parent=5 // pred_region
        %s139 = ssub.s32 %s12, 1
        // Predicated region
        $region13: #{matterport_forward.11} parent=11 // pred_check
          %p140 = pneg %p71
        $region14: #{matterport_forward.11} parent=11 // pred_check_branch
          %142 = sbr.rel (%p140) target = $region16
        $region15: #{matterport_forward.11} parent=11 // pred_region
          _
        $region16: #{matterport_forward.11} parent=11 // pred_fallthru
          _
      $region12: #{matterport_forward.11} parent=5 // pred_fallthru
        _
      %p143 = scmp.lt.s32.totalorder %s12, 4
      // Predicated region
      $region17: #{matterport_forward.11} parent=5 // pred_check
        %p144 = pneg %p143
      $region18: #{matterport_forward.11} parent=5 // pred_check_branch
        %146 = sbr.rel (%p144) target = $region20
      $region19: #{matterport_forward.11} parent=5 // pred_region
        // Predicated region
        $region21: #{matterport_forward.11} parent=19 // pred_check
          %p147 = pneg %p44
        $region22: #{matterport_forward.11} parent=19 // pred_check_branch
          %149 = sbr.rel (%p147) target = $region24
        $region23: #{matterport_forward.11} parent=19 // pred_region
          %p150 = scmp.lt.s32.totalorder %s20, 1
          %s151 = scalar_select %p150, %s20, 1
          %s152 = smul.addr %s151, 4
          %s153 = scalar_lea.vmem %s0, %s152
        $region24: #{matterport_forward.11} parent=19 // pred_fallthru
          _
        // Predicated region
        $region25: #{matterport_forward.11} parent=19 // pred_check
          %p154 = pneg %p91
        $region26: #{matterport_forward.11} parent=19 // pred_check_branch
          %156 = sbr.rel (%p154) target = $region28
        $region27: #{matterport_forward.11} parent=19 // pred_region
          %p157 = scmp.lt.s32.totalorder %s19, 1
          %s158 = scalar_select %p157, %s19, 1
          %s159 = smul.addr %s158, 4
          %s160 = smul.addr %s159, 2
          %s161 = scalar_lea.vmem %s2, %s160
        $region28: #{matterport_forward.11} parent=19 // pred_fallthru
          _
      $region20: #{matterport_forward.11} parent=5 // pred_fallthru
        _
      %p162 = scmp.le.s32.totalorder 1, %s12
      %p163 = scmp.lt.s32.totalorder %s12, 5
      %p164 = pnand %p162, %p163
      %p165 = pneg %p164
      // Predicated region
      $region29: #{matterport_forward.11} parent=5 // pred_check
        _
      $region30: #{matterport_forward.11} parent=5 // pred_check_branch
        %167 = sbr.rel (%p164) target = $region32
      $region31: #{matterport_forward.11} parent=5 // pred_region
        %s168 = ssub.s32 %s12, 1
        %p169 = scmp.lt.s32.totalorder %s22, 1
        %s170 = scalar_select %p169, %s22, 1
        %s171 = smul.addr %s170, 4
        %s172 = scalar_lea.vmem %s0, %s171
        %p173 = pneg %p50
        %p174 = pneg %p47
        %p175 = pneg %p71
        %p176 = pneg %p68
        %p177 = scmp.lt.s32.totalorder %s21, 1
        %s178 = scalar_select %p177, %s21, 1
        %s179 = smul.addr %s178, 4
        %s180 = smul.addr %s179, 2
        %s181 = scalar_lea.vmem %s2, %s180
        %p182 = pneg %p97
        %p183 = pneg %p94
        %p184 = pneg %p125
        %p185 = pneg %p122
        %s186 = sand.u32 %s112, 1
        %s187 = scalar_lea.sflag [#allocation3], %s186
        %s188 = sand.u32 %s112, 1
        %s189 = smul.addr %s188, 128
        %s190 = scalar_lea.vmem [#allocation2], %s189
        %p191 = scmp.lt.s32.totalorder %s22, 1
        %s192 = scalar_select %p191, %s22, 1
        %s193 = smul.addr %s192, 4
        %s194 = scalar_lea.vmem %s0, %s193
        %p195 = scmp.lt.s32.totalorder %s21, 1
        %s196 = scalar_select %p195, %s21, 1
        %s197 = smul.addr %s196, 4
        %s198 = smul.addr %s197, 2
        %s199 = scalar_lea.vmem %s2, %s198
        %s200 = smul.u32 8, %s22
        %v202 = vld [vmem:[%s194] sm:$0xf]
        %v203 = vld [vmem:[%s199] sm:$0xff]
        %205 = vst [vmem:[#allocation1] ss:$4 sm:$0xff] %v203
        %v206 = vld.sshfl [vmem:[#allocation1] sm:$0xff pattern:$0x73625140]
        %v207 = vld.sshfl [vmem:[#allocation1 + $0x8] sm:$0xff pattern:$0x73625140]
        %v208 = vld.sshfl [vmem:[#allocation1 + $0x10] sm:$0xff pattern:$0x73625140]
        %v209 = vld.sshfl [vmem:[#allocation1 + $0x18] sm:$0xff pattern:$0x73625140]
        %vm210 = vcmask 31744
        %v212 = vsel %vm210, %v202, 0
        %vm214 = vcmask 1041408
        %v215 = vsel %vm214, %v206, 0
        %v217 = vsel %vm214, %v207, 0
        %v219 = vsel %vm214, %v208, 0
        %v221 = vsel %vm214, %v209, 0
        %223 = vmatpush.bf16.msra.mxu0 0
        %224 = vmatpush.bf16.msra.mxu0 0
        %225 = vmatpush.bf16.msra.mxu0 0
        %226 = vmatpush.bf16.msra.mxu0 0
        %227 = vmatpush.bf16.msra.mxu0 0
        %228 = vmatpush.bf16.msra.mxu0 0
        %229 = vmatpush.bf16.msra.mxu0 0
        %230 = vmatpush.bf16.msra.mxu0 %v215
        %231 = vmatmul.bf16.gmra.mxu0 %v212
        %v232 = vpop.f32.mrf.mxu0
        %v233 = vadd.f32 0.0, %v232
        %v234 = vpop.f32.mrf.mxu0
        %235 = vdwg.mxu0
        %236 = vmatpush.bf16.msra.mxu0 0
        %237 = vmatpush.bf16.msra.mxu0 0
        %238 = vmatpush.bf16.msra.mxu0 0
        %239 = vmatpush.bf16.msra.mxu0 0
        %240 = vmatpush.bf16.msra.mxu0 0
        %241 = vmatpush.bf16.msra.mxu0 0
        %242 = vmatpush.bf16.msra.mxu0 0
        %243 = vmatpush.bf16.msra.mxu0 %v217
        %244 = vmatmul.bf16.gmra.mxu0 %v212
        %v245 = vpop.f32.mrf.mxu0
        %v246 = vadd.f32 0.0, %v245
        %v247 = vpop.f32.mrf.mxu0
        %248 = vdwg.mxu0
        %249 = vmatpush.bf16.msra.mxu0 0
        %250 = vmatpush.bf16.msra.mxu0 0
        %251 = vmatpush.bf16.msra.mxu0 0
        %252 = vmatpush.bf16.msra.mxu0 0
        %253 = vmatpush.bf16.msra.mxu0 0
        %254 = vmatpush.bf16.msra.mxu0 0
        %255 = vmatpush.bf16.msra.mxu0 0
        %256 = vmatpush.bf16.msra.mxu0 %v219
        %257 = vmatmul.bf16.gmra.mxu0 %v212
        %v258 = vpop.f32.mrf.mxu0
        %v259 = vadd.f32 0.0, %v258
        %v260 = vpop.f32.mrf.mxu0
        %261 = vdwg.mxu0
        %262 = vmatpush.bf16.msra.mxu0 0
        %263 = vmatpush.bf16.msra.mxu0 0
        %264 = vmatpush.bf16.msra.mxu0 0
        %265 = vmatpush.bf16.msra.mxu0 0
        %266 = vmatpush.bf16.msra.mxu0 0
        %267 = vmatpush.bf16.msra.mxu0 0
        %268 = vmatpush.bf16.msra.mxu0 0
        %269 = vmatpush.bf16.msra.mxu0 %v221
        %270 = vmatmul.bf16.gmra.mxu0 %v212
        %v271 = vpop.f32.mrf.mxu0
        %v272 = vadd.f32 0.0, %v271
        %v273 = vpop.f32.mrf.mxu0
        %274 = vdwg.mxu0
        %v275 = vpack.c.bf16 %v246, %v233
        %v276 = vpack.c.bf16 %v272, %v259
        %v278 = vrot.slane %v275, 4
        %v280 = vrot.slane %v276, 4
        %v283 = vpack.i.b16 %v278, %v275
        %v284 = vshrl.u32 %v275, 16
        %v285 = vshrl.u32 %v278, 16
        %v286 = vpack.i.b16 %v285, %v284
        %v289 = vpack.i.b16 %v280, %v276
        %v290 = vshrl.u32 %v276, 16
        %v291 = vshrl.u32 %v280, 16
        %v292 = vpack.i.b16 %v291, %v290
        %v295 = vunpack.c.l.s4 1983009808
        %v296 = vunpack.c.0.s8 %v295
        %v297 = vperm.slane %v283, %v296
        %v300 = vunpack.c.l.s4 1983009808
        %v301 = vunpack.c.0.s8 %v300
        %v302 = vperm.slane %v289, %v301
        %v303 = vrot.slane %v302, 4
        %vm304 = vcmask 1047556
        %v305 = vsel %vm304, %v303, %v297
        %v306 = vrot.slane %v297, 4
        %v307 = vsel %vm304, %v302, %v306
        %v309 = vunpack.c.l.s4 1934713408
        %v310 = vunpack.c.0.s8 %v309
        %v311 = vperm.slane %v305, %v310
        %v313 = vunpack.c.l.s4 1934713408
        %v314 = vunpack.c.0.s8 %v313
        %v315 = vperm.slane %v307, %v314
        %v316 = vrot.slane %v311, 4
        %v317 = vsel %vm304, 0, %v316
        %v318 = vrot.slane %v315, 4
        %v319 = vsel %vm304, 0, %v318
        %v322 = vunpack.c.l.s4 1983009808
        %v323 = vunpack.c.0.s8 %v322
        %v324 = vperm.slane %v286, %v323
        %v327 = vunpack.c.l.s4 1983009808
        %v328 = vunpack.c.0.s8 %v327
        %v329 = vperm.slane %v292, %v328
        %v330 = vrot.slane %v329, 4
        %v331 = vsel %vm304, %v330, %v324
        %v332 = vrot.slane %v324, 4
        %v333 = vsel %vm304, %v329, %v332
        %v335 = vunpack.c.l.s4 1934713408
        %v336 = vunpack.c.0.s8 %v335
        %v337 = vperm.slane %v331, %v336
        %v339 = vunpack.c.l.s4 1934713408
        %v340 = vunpack.c.0.s8 %v339
        %v341 = vperm.slane %v333, %v340
        %v342 = vrot.slane %v337, 4
        %v343 = vsel %vm304, 0, %v342
        %v344 = vrot.slane %v341, 4
        %v345 = vsel %vm304, 0, %v344
        %v346 = vld [vmem:[%s1] sm:$0xf]
        %v347 = vld [vmem:[%s1 + $0x4] sm:$0xf]
        %v350 = vunpack.c.l.b16 %v346
        %v351 = vunpack.c.l.b16 %v347
        %v352 = vpack.c.b16 %v351, %v350
        %v354 = vsel %vm210, %v352, 0
        %v357 = vsel %vm214, %v311, 0
        %359 = vmatpush.bf16.msra.mxu0 0
        %360 = vmatpush.bf16.msra.mxu0 0
        %361 = vmatpush.bf16.msra.mxu0 0
        %362 = vmatpush.bf16.msra.mxu0 0
        %363 = vmatpush.bf16.msra.mxu0 0
        %364 = vmatpush.bf16.msra.mxu0 0
        %365 = vmatpush.bf16.msra.mxu0 0
        %366 = vmatpush.bf16.msra.mxu0 %v357
        %367 = vmatmul.bf16.gmra.mxu0 %v354
        %v368 = vpop.f32.mrf.mxu0
        %v369 = vadd.f32 0.0, %v368
        %v370 = vpop.f32.mrf.mxu0
        %v371 = vadd.f32 0.0, %v370
        %372 = vdwg.mxu0
        %v373 = vmul.f32 %v369, %v369
        %v374 = vmul.f32 %v371, %v371
        %375 = vadd.xlane.f32.xlu0 %v373
        %v376 = vpop.xlane.xlu0 %375
        %377 = vadd.xlane.f32.xlu0 %v374
        %v378 = vpop.xlane.xlu0 %377
        %v379 = vmax.f32 %v376, 1e-24
        %v380 = vmax.f32 %v378, 1e-24
        %v381 = vrsqrt.pop %v379
        %v382 = vmul.f32 %v381, %v379
        %v383 = vmul.f32 %v382, %v381
        %v384 = vmul.f32 0.5, %v383
        %v385 = vsub.f32 1.5, %v384
        %v386 = vmul.f32 %v381, %v385
        %vm387 = vweird.f32 %v379
        %vm388 = vweird.f32 %v381
        %vm389 = vmor %vm387, %vm388
        %v390 = vsel %vm389, %v381, %v386
        %v391 = vrsqrt.pop %v380
        %v392 = vmul.f32 %v391, %v380
        %v393 = vmul.f32 %v392, %v391
        %v394 = vmul.f32 0.5, %v393
        %v395 = vsub.f32 1.5, %v394
        %v396 = vmul.f32 %v391, %v395
        %vm397 = vweird.f32 %v380
        %vm398 = vweird.f32 %v391
        %vm399 = vmor %vm397, %vm398
        %v400 = vsel %vm399, %v391, %v396
        %v401 = vmul.f32 %v369, %v390
        %v402 = vmul.f32 %v371, %v400
        %403 = vst [vmem:[%s190] sm:$0xff] %v401
        %404 = vst [vmem:[%s190 + $0x8] sm:$0xff] %v402
        %v406 = vsel %vm214, %v337, 0
        %408 = vmatpush.bf16.msra.mxu0 0
        %409 = vmatpush.bf16.msra.mxu0 0
        %410 = vmatpush.bf16.msra.mxu0 0
        %411 = vmatpush.bf16.msra.mxu0 0
        %412 = vmatpush.bf16.msra.mxu0 0
        %413 = vmatpush.bf16.msra.mxu0 0
        %414 = vmatpush.bf16.msra.mxu0 0
        %415 = vmatpush.bf16.msra.mxu0 %v406
        %416 = vmatmul.bf16.gmra.mxu0 %v354
        %v417 = vpop.f32.mrf.mxu0
        %v418 = vadd.f32 0.0, %v417
        %v419 = vpop.f32.mrf.mxu0
        %v420 = vadd.f32 0.0, %v419
        %421 = vdwg.mxu0
        %v422 = vmul.f32 %v418, %v418
        %v423 = vmul.f32 %v420, %v420
        %424 = vadd.xlane.f32.xlu0 %v422
        %v425 = vpop.xlane.xlu0 %424
        %426 = vadd.xlane.f32.xlu0 %v423
        %v427 = vpop.xlane.xlu0 %426
        %v428 = vmax.f32 %v425, 1e-24
        %v429 = vmax.f32 %v427, 1e-24
        %v430 = vrsqrt.pop %v428
        %v431 = vmul.f32 %v430, %v428
        %v432 = vmul.f32 %v431, %v430
        %v433 = vmul.f32 0.5, %v432
        %v434 = vsub.f32 1.5, %v433
        %v435 = vmul.f32 %v430, %v434
        %vm436 = vweird.f32 %v428
        %vm437 = vweird.f32 %v430
        %vm438 = vmor %vm436, %vm437
        %v439 = vsel %vm438, %v430, %v435
        %v440 = vrsqrt.pop %v429
        %v441 = vmul.f32 %v440, %v429
        %v442 = vmul.f32 %v441, %v440
        %v443 = vmul.f32 0.5, %v442
        %v444 = vsub.f32 1.5, %v443
        %v445 = vmul.f32 %v440, %v444
        %vm446 = vweird.f32 %v429
        %vm447 = vweird.f32 %v440
        %vm448 = vmor %vm446, %vm447
        %v449 = vsel %vm448, %v440, %v445
        %v450 = vmul.f32 %v418, %v439
        %v451 = vmul.f32 %v420, %v449
        %s452 = scalar_lea.vmem %s190, 16 [#allocation2]
        %453 = vst [vmem:[%s452] sm:$0xff] %v450
        %454 = vst [vmem:[%s452 + $0x8] sm:$0xff] %v451
        %v456 = vsel %vm214, %v317, 0
        %458 = vmatpush.bf16.msra.mxu0 0
        %459 = vmatpush.bf16.msra.mxu0 0
        %460 = vmatpush.bf16.msra.mxu0 0
        %461 = vmatpush.bf16.msra.mxu0 0
        %462 = vmatpush.bf16.msra.mxu0 0
        %463 = vmatpush.bf16.msra.mxu0 0
        %464 = vmatpush.bf16.msra.mxu0 0
        %465 = vmatpush.bf16.msra.mxu0 %v456
        %466 = vmatmul.bf16.gmra.mxu0 %v354
        %v467 = vpop.f32.mrf.mxu0
        %v468 = vadd.f32 0.0, %v467
        %v469 = vpop.f32.mrf.mxu0
        %v470 = vadd.f32 0.0, %v469
        %471 = vdwg.mxu0
        %v472 = vmul.f32 %v468, %v468
        %v473 = vmul.f32 %v470, %v470
        %474 = vadd.xlane.f32.xlu0 %v472
        %v475 = vpop.xlane.xlu0 %474
        %476 = vadd.xlane.f32.xlu0 %v473
        %v477 = vpop.xlane.xlu0 %476
        %v478 = vmax.f32 %v475, 1e-24
        %v479 = vmax.f32 %v477, 1e-24
        %v480 = vrsqrt.pop %v478
        %v481 = vmul.f32 %v480, %v478
        %v482 = vmul.f32 %v481, %v480
        %v483 = vmul.f32 0.5, %v482
        %v484 = vsub.f32 1.5, %v483
        %v485 = vmul.f32 %v480, %v484
        %vm486 = vweird.f32 %v478
        %vm487 = vweird.f32 %v480
        %vm488 = vmor %vm486, %vm487
        %v489 = vsel %vm488, %v480, %v485
        %v490 = vrsqrt.pop %v479
        %v491 = vmul.f32 %v490, %v479
        %v492 = vmul.f32 %v491, %v490
        %v493 = vmul.f32 0.5, %v492
        %v494 = vsub.f32 1.5, %v493
        %v495 = vmul.f32 %v490, %v494
        %vm496 = vweird.f32 %v479
        %vm497 = vweird.f32 %v490
        %vm498 = vmor %vm496, %vm497
        %v499 = vsel %vm498, %v490, %v495
        %v500 = vmul.f32 %v468, %v489
        %v501 = vmul.f32 %v470, %v499
        %s502 = scalar_lea.vmem %s190, 32 [#allocation2]
        %503 = vst [vmem:[%s502] sm:$0xff] %v500
        %504 = vst [vmem:[%s502 + $0x8] sm:$0xff] %v501
        %v506 = vsel %vm214, %v343, 0
        %508 = vmatpush.bf16.msra.mxu0 0
        %509 = vmatpush.bf16.msra.mxu0 0
        %510 = vmatpush.bf16.msra.mxu0 0
        %511 = vmatpush.bf16.msra.mxu0 0
        %512 = vmatpush.bf16.msra.mxu0 0
        %513 = vmatpush.bf16.msra.mxu0 0
        %514 = vmatpush.bf16.msra.mxu0 0
        %515 = vmatpush.bf16.msra.mxu0 %v506
        %516 = vmatmul.bf16.gmra.mxu0 %v354
        %v517 = vpop.f32.mrf.mxu0
        %v518 = vadd.f32 0.0, %v517
        %v519 = vpop.f32.mrf.mxu0
        %v520 = vadd.f32 0.0, %v519
        %521 = vdwg.mxu0
        %v522 = vmul.f32 %v518, %v518
        %v523 = vmul.f32 %v520, %v520
        %524 = vadd.xlane.f32.xlu0 %v522
        %v525 = vpop.xlane.xlu0 %524
        %526 = vadd.xlane.f32.xlu0 %v523
        %v527 = vpop.xlane.xlu0 %526
        %v528 = vmax.f32 %v525, 1e-24
        %v529 = vmax.f32 %v527, 1e-24
        %v530 = vrsqrt.pop %v528
        %v531 = vmul.f32 %v530, %v528
        %v532 = vmul.f32 %v531, %v530
        %v533 = vmul.f32 0.5, %v532
        %v534 = vsub.f32 1.5, %v533
        %v535 = vmul.f32 %v530, %v534
        %vm536 = vweird.f32 %v528
        %vm537 = vweird.f32 %v530
        %vm538 = vmor %vm536, %vm537
        %v539 = vsel %vm538, %v530, %v535
        %v540 = vrsqrt.pop %v529
        %v541 = vmul.f32 %v540, %v529
        %v542 = vmul.f32 %v541, %v540
        %v543 = vmul.f32 0.5, %v542
        %v544 = vsub.f32 1.5, %v543
        %v545 = vmul.f32 %v540, %v544
        %vm546 = vweird.f32 %v529
        %vm547 = vweird.f32 %v540
        %vm548 = vmor %vm546, %vm547
        %v549 = vsel %vm548, %v540, %v545
        %v550 = vmul.f32 %v518, %v539
        %v551 = vmul.f32 %v520, %v549
        %s552 = scalar_lea.vmem %s190, 48 [#allocation2]
        %553 = vst [vmem:[%s552] sm:$0xff] %v550
        %554 = vst [vmem:[%s552 + $0x8] sm:$0xff] %v551
        %v556 = vsel %vm214, %v315, 0
        %558 = vmatpush.bf16.msra.mxu0 0
        %559 = vmatpush.bf16.msra.mxu0 0
        %560 = vmatpush.bf16.msra.mxu0 0
        %561 = vmatpush.bf16.msra.mxu0 0
        %562 = vmatpush.bf16.msra.mxu0 0
        %563 = vmatpush.bf16.msra.mxu0 0
        %564 = vmatpush.bf16.msra.mxu0 0
        %565 = vmatpush.bf16.msra.mxu0 %v556
        %566 = vmatmul.bf16.gmra.mxu0 %v354
        %v567 = vpop.f32.mrf.mxu0
        %v568 = vadd.f32 0.0, %v567
        %v569 = vpop.f32.mrf.mxu0
        %v570 = vadd.f32 0.0, %v569
        %571 = vdwg.mxu0
        %v572 = vmul.f32 %v568, %v568
        %v573 = vmul.f32 %v570, %v570
        %574 = vadd.xlane.f32.xlu0 %v572
        %v575 = vpop.xlane.xlu0 %574
        %576 = vadd.xlane.f32.xlu0 %v573
        %v577 = vpop.xlane.xlu0 %576
        %v578 = vmax.f32 %v575, 1e-24
        %v579 = vmax.f32 %v577, 1e-24
        %v580 = vrsqrt.pop %v578
        %v581 = vmul.f32 %v580, %v578
        %v582 = vmul.f32 %v581, %v580
        %v583 = vmul.f32 0.5, %v582
        %v584 = vsub.f32 1.5, %v583
        %v585 = vmul.f32 %v580, %v584
        %vm586 = vweird.f32 %v578
        %vm587 = vweird.f32 %v580
        %vm588 = vmor %vm586, %vm587
        %v589 = vsel %vm588, %v580, %v585
        %v590 = vrsqrt.pop %v579
        %v591 = vmul.f32 %v590, %v579
        %v592 = vmul.f32 %v591, %v590
        %v593 = vmul.f32 0.5, %v592
        %v594 = vsub.f32 1.5, %v593
        %v595 = vmul.f32 %v590, %v594
        %vm596 = vweird.f32 %v579
        %vm597 = vweird.f32 %v590
        %vm598 = vmor %vm596, %vm597
        %v599 = vsel %vm598, %v590, %v595
        %v600 = vmul.f32 %v568, %v589
        %v601 = vmul.f32 %v570, %v599
        %s602 = scalar_lea.vmem %s190, 64 [#allocation2]
        %603 = vst [vmem:[%s602] sm:$0xff] %v600
        %604 = vst [vmem:[%s602 + $0x8] sm:$0xff] %v601
        %v606 = vsel %vm214, %v341, 0
        %608 = vmatpush.bf16.msra.mxu0 0
        %609 = vmatpush.bf16.msra.mxu0 0
        %610 = vmatpush.bf16.msra.mxu0 0
        %611 = vmatpush.bf16.msra.mxu0 0
        %612 = vmatpush.bf16.msra.mxu0 0
        %613 = vmatpush.bf16.msra.mxu0 0
        %614 = vmatpush.bf16.msra.mxu0 0
        %615 = vmatpush.bf16.msra.mxu0 %v606
        %616 = vmatmul.bf16.gmra.mxu0 %v354
        %v617 = vpop.f32.mrf.mxu0
        %v618 = vadd.f32 0.0, %v617
        %v619 = vpop.f32.mrf.mxu0
        %v620 = vadd.f32 0.0, %v619
        %621 = vdwg.mxu0
        %v622 = vmul.f32 %v618, %v618
        %v623 = vmul.f32 %v620, %v620
        %624 = vadd.xlane.f32.xlu0 %v622
        %v625 = vpop.xlane.xlu0 %624
        %626 = vadd.xlane.f32.xlu0 %v623
        %v627 = vpop.xlane.xlu0 %626
        %v628 = vmax.f32 %v625, 1e-24
        %v629 = vmax.f32 %v627, 1e-24
        %v630 = vrsqrt.pop %v628
        %v631 = vmul.f32 %v630, %v628
        %v632 = vmul.f32 %v631, %v630
        %v633 = vmul.f32 0.5, %v632
        %v634 = vsub.f32 1.5, %v633
        %v635 = vmul.f32 %v630, %v634
        %vm636 = vweird.f32 %v628
        %vm637 = vweird.f32 %v630
        %vm638 = vmor %vm636, %vm637
        %v639 = vsel %vm638, %v630, %v635
        %v640 = vrsqrt.pop %v629
        %v641 = vmul.f32 %v640, %v629
        %v642 = vmul.f32 %v641, %v640
        %v643 = vmul.f32 0.5, %v642
        %v644 = vsub.f32 1.5, %v643
        %v645 = vmul.f32 %v640, %v644
        %vm646 = vweird.f32 %v629
        %vm647 = vweird.f32 %v640
        %vm648 = vmor %vm646, %vm647
        %v649 = vsel %vm648, %v640, %v645
        %v650 = vmul.f32 %v618, %v639
        %v651 = vmul.f32 %v620, %v649
        %s652 = scalar_lea.vmem %s190, 80 [#allocation2]
        %653 = vst [vmem:[%s652] sm:$0xff] %v650
        %654 = vst [vmem:[%s652 + $0x8] sm:$0xff] %v651
        %v656 = vsel %vm214, %v319, 0
        %658 = vmatpush.bf16.msra.mxu0 0
        %659 = vmatpush.bf16.msra.mxu0 0
        %660 = vmatpush.bf16.msra.mxu0 0
        %661 = vmatpush.bf16.msra.mxu0 0
        %662 = vmatpush.bf16.msra.mxu0 0
        %663 = vmatpush.bf16.msra.mxu0 0
        %664 = vmatpush.bf16.msra.mxu0 0
        %665 = vmatpush.bf16.msra.mxu0 %v656
        %666 = vmatmul.bf16.gmra.mxu0 %v354
        %v667 = vpop.f32.mrf.mxu0
        %v668 = vadd.f32 0.0, %v667
        %v669 = vpop.f32.mrf.mxu0
        %v670 = vadd.f32 0.0, %v669
        %671 = vdwg.mxu0
        %v672 = vmul.f32 %v668, %v668
        %v673 = vmul.f32 %v670, %v670
        %674 = vadd.xlane.f32.xlu0 %v672
        %v675 = vpop.xlane.xlu0 %674
        %676 = vadd.xlane.f32.xlu0 %v673
        %v677 = vpop.xlane.xlu0 %676
        %v678 = vmax.f32 %v675, 1e-24
        %v679 = vmax.f32 %v677, 1e-24
        %v680 = vrsqrt.pop %v678
        %v681 = vmul.f32 %v680, %v678
        %v682 = vmul.f32 %v681, %v680
        %v683 = vmul.f32 0.5, %v682
        %v684 = vsub.f32 1.5, %v683
        %v685 = vmul.f32 %v680, %v684
        %vm686 = vweird.f32 %v678
        %vm687 = vweird.f32 %v680
        %vm688 = vmor %vm686, %vm687
        %v689 = vsel %vm688, %v680, %v685
        %v690 = vrsqrt.pop %v679
        %v691 = vmul.f32 %v690, %v679
        %v692 = vmul.f32 %v691, %v690
        %v693 = vmul.f32 0.5, %v692
        %v694 = vsub.f32 1.5, %v693
        %v695 = vmul.f32 %v690, %v694
        %vm696 = vweird.f32 %v679
        %vm697 = vweird.f32 %v690
        %vm698 = vmor %vm696, %vm697
        %v699 = vsel %vm698, %v690, %v695
        %v700 = vmul.f32 %v668, %v689
        %v701 = vmul.f32 %v670, %v699
        %s702 = scalar_lea.vmem %s190, 96 [#allocation2]
        %703 = vst [vmem:[%s702] sm:$0xff] %v700
        %704 = vst [vmem:[%s702 + $0x8] sm:$0xff] %v701
        %v706 = vsel %vm214, %v345, 0
        %708 = vmatpush.bf16.msra.mxu0 0
        %709 = vmatpush.bf16.msra.mxu0 0
        %710 = vmatpush.bf16.msra.mxu0 0
        %711 = vmatpush.bf16.msra.mxu0 0
        %712 = vmatpush.bf16.msra.mxu0 0
        %713 = vmatpush.bf16.msra.mxu0 0
        %714 = vmatpush.bf16.msra.mxu0 0
        %715 = vmatpush.bf16.msra.mxu0 %v706
        %716 = vmatmul.bf16.gmra.mxu0 %v354
        %v717 = vpop.f32.mrf.mxu0
        %v718 = vadd.f32 0.0, %v717
        %v719 = vpop.f32.mrf.mxu0
        %v720 = vadd.f32 0.0, %v719
        %721 = vdwg.mxu0
        %v722 = vmul.f32 %v718, %v718
        %v723 = vmul.f32 %v720, %v720
        %724 = vadd.xlane.f32.xlu0 %v722
        %v725 = vpop.xlane.xlu0 %724
        %726 = vadd.xlane.f32.xlu0 %v723
        %v727 = vpop.xlane.xlu0 %726
        %v728 = vmax.f32 %v725, 1e-24
        %v729 = vmax.f32 %v727, 1e-24
        %v730 = vrsqrt.pop %v728
        %v731 = vmul.f32 %v730, %v728
        %v732 = vmul.f32 %v731, %v730
        %v733 = vmul.f32 0.5, %v732
        %v734 = vsub.f32 1.5, %v733
        %v735 = vmul.f32 %v730, %v734
        %vm736 = vweird.f32 %v728
        %vm737 = vweird.f32 %v730
        %vm738 = vmor %vm736, %vm737
        %v739 = vsel %vm738, %v730, %v735
        %v740 = vrsqrt.pop %v729
        %v741 = vmul.f32 %v740, %v729
        %v742 = vmul.f32 %v741, %v740
        %v743 = vmul.f32 0.5, %v742
        %v744 = vsub.f32 1.5, %v743
        %v745 = vmul.f32 %v740, %v744
        %vm746 = vweird.f32 %v729
        %vm747 = vweird.f32 %v740
        %vm748 = vmor %vm746, %vm747
        %v749 = vsel %vm748, %v740, %v745
        %v750 = vmul.f32 %v718, %v739
        %v751 = vmul.f32 %v720, %v749
        %s752 = scalar_lea.vmem %s190, 112 [#allocation2]
        %753 = vst [vmem:[%s752] sm:$0xff] %v750
        %754 = vst [vmem:[%s752 + $0x8] sm:$0xff] %v751
        %s755 = sand.u32 %s112, 1
        %s756 = scalar_lea.sflag [#allocation3], %s755
        %s757 = sand.u32 %s112, 1
        %s758 = smul.addr %s757, 128
        %s759 = scalar_lea.vmem [#allocation2], %s758
        // Predicated region
        $region33: #{matterport_forward.11} parent=31 // pred_check
          %p760 = pneg %p122
        $region34: #{matterport_forward.11} parent=31 // pred_check_branch
          %762 = sbr.rel (%p760) target = $region36
        $region35: #{matterport_forward.11} parent=31 // pred_region
          %s763 = smul.u32 8, %s22
          %765 = vsyncadd %s756, 0
          %s766 = smul.addr %s763, 2
          %s767 = smul.addr %s21, 32
          %s768 = sadd.s32 %s766, %s767
          %s769 = smul.addr %s768, 8
          %s770 = scalar_lea.hbm %s3, %s769
          %s771 = sshll.u32 %s759, 4
          %s772 = int_to_ptr.vmem [resolvable:$true] %s771
          %s773 = sshll.u32 %s770, 4
          %s774 = int_to_ptr.hbm [resolvable:$true] %s773
          %779 = dma.vmem_to_hbm [thread:$0]  %s772, 2048, %s774, %s756, 128, 128, 8
        $region36: #{matterport_forward.11} parent=31 // pred_fallthru
          _
      $region32: #{matterport_forward.11} parent=5 // pred_fallthru
        _
      %p780 = scmp.le.s32.totalorder 2, %s12
      // Predicated region
      $region37: #{matterport_forward.11} parent=5 // pred_check
        %p781 = pneg %p780
      $region38: #{matterport_forward.11} parent=5 // pred_check_branch
        %783 = sbr.rel (%p781) target = $region40
      $region39: #{matterport_forward.11} parent=5 // pred_region
        %s784 = ssub.s32 %s12, 2
        // Predicated region
        $region41: #{matterport_forward.11} parent=39 // pred_check
          %p785 = pneg %p128
        $region42: #{matterport_forward.11} parent=39 // pred_check_branch
          %787 = sbr.rel (%p785) target = $region44
        $region43: #{matterport_forward.11} parent=39 // pred_region
          %s788 = sand.u32 %s113, 1
          %s789 = scalar_lea.sflag [#allocation3], %s788
          %s790 = sand.u32 %s113, 1
          %s791 = smul.addr %s790, 128
          %s792 = scalar_lea.vmem [#allocation2], %s791
          %794 = dma.done %s789, 2048
        $region44: #{matterport_forward.11} parent=39 // pred_fallthru
          _
      $region40: #{matterport_forward.11} parent=5 // pred_fallthru
        _
    $region6: #{matterport_forward.11} parent=1 // loop_footer
      %s16 = sadd.s32 1, %s12
    $region7: #{matterport_forward.11} parent=1 // loop_footer_branch
      %11 = sbr.rel target = $region3
    $region8: #{matterport_forward.11} parent=1 // loop_exit
      _
    %795 = vsyncpa [#allocation3], 1
    %s796 = scalar_lea.sflag [#allocation3], 1
    %797 = vsyncpa %s796, 1

// kernel: matterport_forward.10
$region0: #{matterport_forward.10}
  #allocation0 [shape = 'u32[]', space=smem, size = 0x4, offset = 0x4, fixed_abs, tag = 'smem constant byte address 0x4 - core index']
  #allocation1 [shape = 'u32[72,128]{1,0:T(1,128)}', space=vmem, size = 0x9000, scoped, tag = 'internal scratch']
  %s0 = inlined_call_operand.vmem [shape: bf16[2,2,4,6,512], index: 0, kind: input, shape index: {}]
  %s1 = inlined_call_operand.vmem [shape: bf16[9,512,128], index: 1, kind: input, shape index: {}]
  %s2 = inlined_call_operand.vmem [shape: f32[1,128], index: 2, kind: input, shape index: {}]
  %s3 = inlined_call_operand.vmem [shape: bf16[2,4,4,128], index: 3, kind: output, shape index: {}]
  %s4 = sld [smem:[#allocation0]]
  $region45: #{matterport_forward.10} parent=0
    _
  %s6 = ssub.s32 1, %s4
  %s7 = scalar_select 0, %s6, %s4
  loop: start=0, step=1, limit=6
  $region2: #{matterport_forward.10} parent=0 // loop_pre_header
    _
  $region3: #{matterport_forward.10} parent=0 // loop_header
    %s9 = sphi 0, %s13
    %p10 = scmp.ge.s32.totalorder %s9, 6
    %s16 = sphi 0, %s28
    %s17 = sphi 0, %s24
    %s18 = sphi 0, %s16
    %s19 = sphi 0, %s17
    %s20 = sphi 0, %s18
    %s21 = sphi 0, %s19
    %s33 = sphi 0, %s35
    %s36 = sphi 0, %s33
    %s37 = sphi 0, %s36
    %s53 = sphi 0, %s37
    %s57 = sphi 0, %s57
    %s59 = sphi 0, %s57
    %s60 = sphi 0, %s59
    %s74 = sphi 0, %s60
    %s78 = sphi 0, %s78
    %s80 = sphi 0, %s78
    %s81 = sphi 0, %s80
    %s95 = sphi 0, %s81
    %s103 = sphi 0, %s105
    %s106 = sphi 0, %s103
    %s107 = sphi 0, %s106
    %s123 = sphi 0, %s107
  $region4: #{matterport_forward.10} parent=0 // loop_header_branch
    %12 = sbr.rel (%p10) target = $region8
  $region5: #{matterport_forward.10} parent=0 // loop_body
    %s14 = ssub.s32 %s9, 1
    %s15 = ssub.s32 %s9, 2
    %s22 = sadd.s32 1, %s17
    %p23 = scmp.ge.s32.totalorder %s22, 2
    %s24 = scalar_select %p23, 0, %s22
    %s25 = sadd.s32 1, %s16
    %s26 = scalar_select %p23, %s25, %s16
    %p27 = scmp.ge.s32.totalorder %s26, 2
    %s28 = scalar_select %p27, 0, %s26
    %s29 = ssub.s32 %s16, %s28
    %s30 = ssub.s32 %s17, %s24
    %s31 = sor.u32 %s29, %s30
    %p32 = scmp.eq.s32.totalorder %s31, 0
    %s34 = sadd.s32 %s33, 1
    %s35 = scalar_select %p32, %s33, %s34
    %p38 = pneg %p32
    %p39 = scmp.eq.s32.totalorder %s9, 3
    %p40 = por %p38, %p39
    %p41 = scmp.ne.s32.totalorder %s33, %s36
    %p42 = scmp.eq.s32.totalorder %s9, 0
    %p43 = por %p41, %p42
    %p44 = scmp.ne.s32.totalorder %s33, %s36
    %p45 = scmp.eq.s32.totalorder %s14, 3
    %p46 = por %p44, %p45
    %p47 = scmp.ne.s32.totalorder %s36, %s37
    %p48 = scmp.eq.s32.totalorder %s14, 0
    %p49 = por %p47, %p48
    %p50 = scmp.ne.s32.totalorder %s36, %s37
    %p51 = scmp.eq.s32.totalorder %s15, 3
    %p52 = por %p50, %p51
    %p54 = scmp.ne.s32.totalorder %s37, %s53
    %p55 = scmp.eq.s32.totalorder %s15, 0
    %p56 = por %p54, %p55
    %s58 = sadd.s32 %s57, 1
    %p61 = scmp.eq.s32.totalorder %s9, 3
    %p62 = scmp.ne.s32.totalorder %s57, %s59
    %p63 = scmp.eq.s32.totalorder %s9, 0
    %p64 = por %p62, %p63
    %p65 = scmp.ne.s32.totalorder %s57, %s59
    %p66 = scmp.eq.s32.totalorder %s14, 3
    %p67 = por %p65, %p66
    %p68 = scmp.ne.s32.totalorder %s59, %s60
    %p69 = scmp.eq.s32.totalorder %s14, 0
    %p70 = por %p68, %p69
    %p71 = scmp.ne.s32.totalorder %s59, %s60
    %p72 = scmp.eq.s32.totalorder %s15, 3
    %p73 = por %p71, %p72
    %p75 = scmp.ne.s32.totalorder %s60, %s74
    %p76 = scmp.eq.s32.totalorder %s15, 0
    %p77 = por %p75, %p76
    %s79 = sadd.s32 %s78, 1
    %p82 = scmp.eq.s32.totalorder %s9, 3
    %p83 = scmp.ne.s32.totalorder %s78, %s80
    %p84 = scmp.eq.s32.totalorder %s9, 0
    %p85 = por %p83, %p84
    %p86 = scmp.ne.s32.totalorder %s78, %s80
    %p87 = scmp.eq.s32.totalorder %s14, 3
    %p88 = por %p86, %p87
    %p89 = scmp.ne.s32.totalorder %s80, %s81
    %p90 = scmp.eq.s32.totalorder %s14, 0
    %p91 = por %p89, %p90
    %p92 = scmp.ne.s32.totalorder %s80, %s81
    %p93 = scmp.eq.s32.totalorder %s15, 3
    %p94 = por %p92, %p93
    %p96 = scmp.ne.s32.totalorder %s81, %s95
    %p97 = scmp.eq.s32.totalorder %s15, 0
    %p98 = por %p96, %p97
    %s99 = ssub.s32 %s16, %s28
    %s100 = ssub.s32 %s17, %s24
    %s101 = sor.u32 %s99, %s100
    %p102 = scmp.eq.s32.totalorder %s101, 0
    %s104 = sadd.s32 %s103, 1
    %s105 = scalar_select %p102, %s103, %s104
    %p108 = pneg %p102
    %p109 = scmp.eq.s32.totalorder %s9, 3
    %p110 = por %p108, %p109
    %p111 = scmp.ne.s32.totalorder %s103, %s106
    %p112 = scmp.eq.s32.totalorder %s9, 0
    %p113 = por %p111, %p112
    %p114 = scmp.ne.s32.totalorder %s103, %s106
    %p115 = scmp.eq.s32.totalorder %s14, 3
    %p116 = por %p114, %p115
    %p117 = scmp.ne.s32.totalorder %s106, %s107
    %p118 = scmp.eq.s32.totalorder %s14, 0
    %p119 = por %p117, %p118
    %p120 = scmp.ne.s32.totalorder %s106, %s107
    %p121 = scmp.eq.s32.totalorder %s15, 3
    %p122 = por %p120, %p121
    %p124 = scmp.ne.s32.totalorder %s107, %s123
    %p125 = scmp.eq.s32.totalorder %s15, 0
    %p126 = por %p124, %p125
    %p127 = scmp.le.s32.totalorder 1, %s9
    %p128 = scmp.lt.s32.totalorder %s9, 5
    %p129 = pnand %p127, %p128
    %p130 = pneg %p129
    // Predicated region
    $region9: #{matterport_forward.10} parent=5 // pred_check
      _
    $region10: #{matterport_forward.10} parent=5 // pred_check_branch
      %132 = sbr.rel (%p129) target = $region12
    $region11: #{matterport_forward.10} parent=5 // pred_region
      %s133 = ssub.s32 %s9, 1
      // Predicated region
      $region13: #{matterport_forward.10} parent=11 // pred_check
        %p134 = pneg %p70
      $region14: #{matterport_forward.10} parent=11 // pred_check_branch
        %136 = sbr.rel (%p134) target = $region16
      $region15: #{matterport_forward.10} parent=11 // pred_region
        _
      $region16: #{matterport_forward.10} parent=11 // pred_fallthru
        _
      // Predicated region
      $region17: #{matterport_forward.10} parent=11 // pred_check
        %p137 = pneg %p91
      $region18: #{matterport_forward.10} parent=11 // pred_check_branch
        %139 = sbr.rel (%p137) target = $region20
      $region19: #{matterport_forward.10} parent=11 // pred_region
        _
      $region20: #{matterport_forward.10} parent=11 // pred_fallthru
        _
    $region12: #{matterport_forward.10} parent=5 // pred_fallthru
      _
    %p140 = scmp.lt.s32.totalorder %s9, 4
    // Predicated region
    $region21: #{matterport_forward.10} parent=5 // pred_check
      %p141 = pneg %p140
    $region22: #{matterport_forward.10} parent=5 // pred_check_branch
      %143 = sbr.rel (%p141) target = $region24
    $region23: #{matterport_forward.10} parent=5 // pred_region
      // Predicated region
      $region25: #{matterport_forward.10} parent=23 // pred_check
        %p144 = pneg %p43
      $region26: #{matterport_forward.10} parent=23 // pred_check_branch
        %146 = sbr.rel (%p144) target = $region28
      $region27: #{matterport_forward.10} parent=23 // pred_region
        %p147 = scmp.lt.s32.totalorder %s16, 1
        %s148 = scalar_select %p147, %s16, 1
        %p149 = scmp.lt.s32.totalorder %s17, 1
        %s150 = scalar_select %p149, %s17, 1
        %s151 = smul.addr %s150, 16
        %s152 = smul.addr %s148, 32
        %s153 = sadd.s32 %s151, %s152
        %s154 = smul.addr %s153, 4
        %s155 = scalar_lea.vmem %s0, %s154
      $region28: #{matterport_forward.10} parent=23 // pred_fallthru
        _
    $region24: #{matterport_forward.10} parent=5 // pred_fallthru
      _
    %p156 = scmp.le.s32.totalorder 1, %s9
    %p157 = scmp.lt.s32.totalorder %s9, 5
    %p158 = pnand %p156, %p157
    %p159 = pneg %p158
    // Predicated region
    $region29: #{matterport_forward.10} parent=5 // pred_check
      _
    $region30: #{matterport_forward.10} parent=5 // pred_check_branch
      %161 = sbr.rel (%p158) target = $region32
    $region31: #{matterport_forward.10} parent=5 // pred_region
      %s162 = ssub.s32 %s9, 1
      %p163 = scmp.lt.s32.totalorder %s18, 1
      %s164 = scalar_select %p163, %s18, 1
      %p165 = scmp.lt.s32.totalorder %s19, 1
      %s166 = scalar_select %p165, %s19, 1
      %s167 = smul.addr %s166, 16
      %s168 = smul.addr %s164, 32
      %s169 = sadd.s32 %s167, %s168
      %s170 = smul.addr %s169, 4
      %s171 = scalar_lea.vmem %s0, %s170
      %p172 = pneg %p49
      %p173 = pneg %p46
      %p174 = pneg %p70
      %p175 = pneg %p67
      %p176 = pneg %p91
      %p177 = pneg %p88
      %p178 = pneg %p119
      %p179 = pneg %p116
      %s180 = smul.u32 2, %s19
      %p181 = scmp.lt.s32.totalorder %s18, 1
      %s182 = scalar_select %p181, %s18, 1
      %p183 = scmp.lt.s32.totalorder %s180, 3
      %s184 = scalar_select %p183, %s180, 3
      %s185 = smul.addr %s182, 4
      %s186 = sadd.s32 %s184, %s185
      %s187 = smul.addr %s186, 2
      %s188 = scalar_lea.vmem %s3, %s187
      %p189 = scmp.lt.s32.totalorder %s18, 1
      %s190 = scalar_select %p189, %s18, 1
      %p191 = scmp.lt.s32.totalorder %s19, 1
      %s192 = scalar_select %p191, %s19, 1
      %s193 = smul.addr %s192, 16
      %s194 = smul.addr %s190, 32
      %s195 = sadd.s32 %s193, %s194
      %s196 = smul.addr %s195, 4
      %s197 = scalar_lea.vmem %s0, %s196
      %s198 = smul.u32 2, %s19
      %p199 = scmp.lt.s32.totalorder %s18, 1
      %s200 = scalar_select %p199, %s18, 1
      %p201 = scmp.lt.s32.totalorder %s198, 3
      %s202 = scalar_select %p201, %s198, 3
      %s203 = smul.addr %s200, 4
      %s204 = sadd.s32 %s202, %s203
      %s205 = smul.addr %s204, 2
      %s206 = scalar_lea.vmem %s3, %s205
      %s207 = smul.u32 2, %s19
      %v208 = vld [vmem:[%s197] sm:$0x33]
      %v209 = vld [vmem:[%s197 + $0x8] sm:$0x33]
      %v210 = vld [vmem:[%s197 + $0x10] sm:$0x33]
      %v211 = vld [vmem:[%s197 + $0x18] sm:$0x33]
      %v216 = vrot.slane %v208, 2
      %v217 = vrot.slane %v209, 4
      %v218 = vrot.slane %v209, 6
      %v219 = vrot.slane %v210, 2
      %v220 = vrot.slane %v211, 4
      %v221 = vrot.slane %v211, 6
      %vm222 = vcmask 1041408
      %v225 = vsel %vm222, %v208, %v216
      %vm226 = vcmask 1045508
      %v229 = vsel %vm226, %v217, %v218
      %vm230 = vcmask 1043456
      %v231 = vsel %vm230, %v225, %v229
      %v234 = vsel %vm222, %v210, %v219
      %v237 = vsel %vm226, %v220, %v221
      %v238 = vsel %vm230, %v234, %v237
      %v239 = vld [vmem:[%s1] sm:$0xf]
      %v240 = vld [vmem:[%s1 + $0x4] sm:$0xf]
      %v241 = vld [vmem:[%s1 + $0x8] sm:$0xf]
      %v242 = vld [vmem:[%s1 + $0xc] sm:$0xf]
      %v243 = vld [vmem:[%s1 + $0x10] sm:$0xf]
      %v244 = vld [vmem:[%s1 + $0x14] sm:$0xf]
      %v245 = vld [vmem:[%s1 + $0x18] sm:$0xf]
      %v246 = vld [vmem:[%s1 + $0x1c] sm:$0xf]
      %v247 = vld [vmem:[%s1 + $0x20] sm:$0xf]
      %v248 = vld [vmem:[%s1 + $0x24] sm:$0xf]
      %v249 = vld [vmem:[%s1 + $0x28] sm:$0xf]
      %v250 = vld [vmem:[%s1 + $0x2c] sm:$0xf]
      %v251 = vld [vmem:[%s1 + $0x30] sm:$0xf]
      %v252 = vld [vmem:[%s1 + $0x34] sm:$0xf]
      %v253 = vld [vmem:[%s1 + $0x38] sm:$0xf]
      %v254 = vld [vmem:[%s1 + $0x3c] sm:$0xf]
      %v255 = vld [vmem:[%s1 + $0x40] sm:$0xf]
      %v256 = vld [vmem:[%s1 + $0x44] sm:$0xf]
      %v257 = vld [vmem:[%s1 + $0x48] sm:$0xf]
      %v258 = vld [vmem:[%s1 + $0x4c] sm:$0xf]
      %v259 = vld [vmem:[%s1 + $0x50] sm:$0xf]
      %v260 = vld [vmem:[%s1 + $0x54] sm:$0xf]
      %v261 = vld [vmem:[%s1 + $0x58] sm:$0xf]
      %v262 = vld [vmem:[%s1 + $0x5c] sm:$0xf]
      %v263 = vld [vmem:[%s1 + $0x60] sm:$0xf]
      %v264 = vld [vmem:[%s1 + $0x64] sm:$0xf]
      %v265 = vld [vmem:[%s1 + $0x68] sm:$0xf]
      %v266 = vld [vmem:[%s1 + $0x6c] sm:$0xf]
      %v267 = vld [vmem:[%s1 + $0x70] sm:$0xf]
      %v268 = vld [vmem:[%s1 + $0x74] sm:$0xf]
      %v269 = vld [vmem:[%s1 + $0x78] sm:$0xf]
      %v270 = vld [vmem:[%s1 + $0x7c] sm:$0xf]
      %v271 = vld [vmem:[%s1 + $0x80] sm:$0xf]
      %v272 = vld [vmem:[%s1 + $0x84] sm:$0xf]
      %v273 = vld [vmem:[%s1 + $0x88] sm:$0xf]
      %v274 = vld [vmem:[%s1 + $0x8c] sm:$0xf]
      %v275 = vld [vmem:[%s1 + $0x90] sm:$0xf]
      %v276 = vld [vmem:[%s1 + $0x94] sm:$0xf]
      %v277 = vld [vmem:[%s1 + $0x98] sm:$0xf]
      %v278 = vld [vmem:[%s1 + $0x9c] sm:$0xf]
      %v279 = vld [vmem:[%s1 + $0xa0] sm:$0xf]
      %v280 = vld [vmem:[%s1 + $0xa4] sm:$0xf]
      %v281 = vld [vmem:[%s1 + $0xa8] sm:$0xf]
      %v282 = vld [vmem:[%s1 + $0xac] sm:$0xf]
      %v283 = vld [vmem:[%s1 + $0xb0] sm:$0xf]
      %v284 = vld [vmem:[%s1 + $0xb4] sm:$0xf]
      %v285 = vld [vmem:[%s1 + $0xb8] sm:$0xf]
      %v286 = vld [vmem:[%s1 + $0xbc] sm:$0xf]
      %v287 = vld [vmem:[%s1 + $0xc0] sm:$0xf]
      %v288 = vld [vmem:[%s1 + $0xc4] sm:$0xf]
      %v289 = vld [vmem:[%s1 + $0xc8] sm:$0xf]
      %v290 = vld [vmem:[%s1 + $0xcc] sm:$0xf]
      %v291 = vld [vmem:[%s1 + $0xd0] sm:$0xf]
      %v292 = vld [vmem:[%s1 + $0xd4] sm:$0xf]
      %v293 = vld [vmem:[%s1 + $0xd8] sm:$0xf]
      %v294 = vld [vmem:[%s1 + $0xdc] sm:$0xf]
      %v295 = vld [vmem:[%s1 + $0xe0] sm:$0xf]
      %v296 = vld [vmem:[%s1 + $0xe4] sm:$0xf]
      %v297 = vld [vmem:[%s1 + $0xe8] sm:$0xf]
      %v298 = vld [vmem:[%s1 + $0xec] sm:$0xf]
      %v299 = vld [vmem:[%s1 + $0xf0] sm:$0xf]
      %v300 = vld [vmem:[%s1 + $0xf4] sm:$0xf]
      %v301 = vld [vmem:[%s1 + $0xf8] sm:$0xf]
      %v302 = vld [vmem:[%s1 + $0xfc] sm:$0xf]
      %v303 = vld [vmem:[%s197] sm:$0x77]
      %v304 = vld [vmem:[%s197 + $0x8] sm:$0x77]
      %v305 = vld [vmem:[%s197 + $0x10] sm:$0x77]
      %v306 = vld [vmem:[%s197 + $0x18] sm:$0x77]
      %v311 = vrot.slane %v303, 2
      %v312 = vrot.slane %v304, 4
      %v313 = vrot.slane %v304, 6
      %v314 = vrot.slane %v305, 2
      %v315 = vrot.slane %v306, 4
      %v316 = vrot.slane %v306, 6
      %v319 = vsel %vm222, %v303, %v311
      %v322 = vsel %vm226, %v312, %v313
      %v323 = vsel %vm230, %v319, %v322
      %vm324 = vcmask 1043458
      %v325 = vsel %vm324, %v303, %v311
      %vm326 = vcmask 1045504
      %v327 = vsel %vm326, %v313, %v312
      %vm328 = vcmask 1045506
      %v329 = vsel %vm328, %v325, %v327
      %v331 = vrot.slane %v329, 2
      %v334 = vsel %vm222, %v305, %v314
      %v337 = vsel %vm226, %v315, %v316
      %v338 = vsel %vm230, %v334, %v337
      %v339 = vsel %vm324, %v305, %v314
      %v340 = vsel %vm326, %v316, %v315
      %v341 = vsel %vm328, %v339, %v340
      %v343 = vrot.slane %v341, 2
      %vm344 = vsmask.f32 1280
      %vm345 = vsmask.f32 3336
      %vm346 = vmor %vm344, %vm345
      %vm347 = vsmask.f32 5392
      %vm348 = vmor %vm346, %vm347
      %vm349 = vsmask.f32 7448
      %vm350 = vmor %vm348, %vm349
      %v351 = vshrl.u32 %v323, 16
      %v353 = vrot.slane %v351, 6
      %v354 = vshll.u32 %v323, 16
      %v356 = vrot.slane %v354, 7
      %v357 = vor.u32 %v353, %v356
      %v358 = vrot.slane %v357, 2
      %v360 = vshll.u32 %v331, 16
      %v362 = vrot.slane %v360, 7
      %v363 = vsel %vm350, %v358, %v362
      %v364 = vshrl.u32 %v338, 16
      %v366 = vrot.slane %v364, 6
      %v367 = vshll.u32 %v338, 16
      %v369 = vrot.slane %v367, 7
      %v370 = vor.u32 %v366, %v369
      %v371 = vrot.slane %v370, 2
      %v373 = vshll.u32 %v343, 16
      %v375 = vrot.slane %v373, 7
      %v376 = vsel %vm350, %v371, %v375
      %s377 = scalar_lea.vmem %s1, 256
      %v378 = vld [vmem:[%s377] sm:$0xf]
      %v379 = vld [vmem:[%s377 + $0x4] sm:$0xf]
      %v380 = vld [vmem:[%s377 + $0x8] sm:$0xf]
      %v381 = vld [vmem:[%s377 + $0xc] sm:$0xf]
      %v382 = vld [vmem:[%s377 + $0x10] sm:$0xf]
      %v383 = vld [vmem:[%s377 + $0x14] sm:$0xf]
      %v384 = vld [vmem:[%s377 + $0x18] sm:$0xf]
      %v385 = vld [vmem:[%s377 + $0x1c] sm:$0xf]
      %v386 = vld [vmem:[%s377 + $0x20] sm:$0xf]
      %v387 = vld [vmem:[%s377 + $0x24] sm:$0xf]
      %v388 = vld [vmem:[%s377 + $0x28] sm:$0xf]
      %v389 = vld [vmem:[%s377 + $0x2c] sm:$0xf]
      %v390 = vld [vmem:[%s377 + $0x30] sm:$0xf]
      %v391 = vld [vmem:[%s377 + $0x34] sm:$0xf]
      %v392 = vld [vmem:[%s377 + $0x38] sm:$0xf]
      %v393 = vld [vmem:[%s377 + $0x3c] sm:$0xf]
      %v394 = vld [vmem:[%s377 + $0x40] sm:$0xf]
      %v395 = vld [vmem:[%s377 + $0x44] sm:$0xf]
      %v396 = vld [vmem:[%s377 + $0x48] sm:$0xf]
      %v397 = vld [vmem:[%s377 + $0x4c] sm:$0xf]
      %v398 = vld [vmem:[%s377 + $0x50] sm:$0xf]
      %v399 = vld [vmem:[%s377 + $0x54] sm:$0xf]
      %v400 = vld [vmem:[%s377 + $0x58] sm:$0xf]
      %v401 = vld [vmem:[%s377 + $0x5c] sm:$0xf]
      %v402 = vld [vmem:[%s377 + $0x60] sm:$0xf]
      %v403 = vld [vmem:[%s377 + $0x64] sm:$0xf]
      %v404 = vld [vmem:[%s377 + $0x68] sm:$0xf]
      %v405 = vld [vmem:[%s377 + $0x6c] sm:$0xf]
      %v406 = vld [vmem:[%s377 + $0x70] sm:$0xf]
      %v407 = vld [vmem:[%s377 + $0x74] sm:$0xf]
      %v408 = vld [vmem:[%s377 + $0x78] sm:$0xf]
      %v409 = vld [vmem:[%s377 + $0x7c] sm:$0xf]
      %v410 = vld [vmem:[%s377 + $0x80] sm:$0xf]
      %v411 = vld [vmem:[%s377 + $0x84] sm:$0xf]
      %v412 = vld [vmem:[%s377 + $0x88] sm:$0xf]
      %v413 = vld [vmem:[%s377 + $0x8c] sm:$0xf]
      %v414 = vld [vmem:[%s377 + $0x90] sm:$0xf]
      %v415 = vld [vmem:[%s377 + $0x94] sm:$0xf]
      %v416 = vld [vmem:[%s377 + $0x98] sm:$0xf]
      %v417 = vld [vmem:[%s377 + $0x9c] sm:$0xf]
      %v418 = vld [vmem:[%s377 + $0xa0] sm:$0xf]
      %v419 = vld [vmem:[%s377 + $0xa4] sm:$0xf]
      %v420 = vld [vmem:[%s377 + $0xa8] sm:$0xf]
      %v421 = vld [vmem:[%s377 + $0xac] sm:$0xf]
      %v422 = vld [vmem:[%s377 + $0xb0] sm:$0xf]
      %v423 = vld [vmem:[%s377 + $0xb4] sm:$0xf]
      %v424 = vld [vmem:[%s377 + $0xb8] sm:$0xf]
      %v425 = vld [vmem:[%s377 + $0xbc] sm:$0xf]
      %v426 = vld [vmem:[%s377 + $0xc0] sm:$0xf]
      %v427 = vld [vmem:[%s377 + $0xc4] sm:$0xf]
      %v428 = vld [vmem:[%s377 + $0xc8] sm:$0xf]
      %v429 = vld [vmem:[%s377 + $0xcc] sm:$0xf]
      %v430 = vld [vmem:[%s377 + $0xd0] sm:$0xf]
      %v431 = vld [vmem:[%s377 + $0xd4] sm:$0xf]
      %v432 = vld [vmem:[%s377 + $0xd8] sm:$0xf]
      %v433 = vld [vmem:[%s377 + $0xdc] sm:$0xf]
      %v434 = vld [vmem:[%s377 + $0xe0] sm:$0xf]
      %v435 = vld [vmem:[%s377 + $0xe4] sm:$0xf]
      %v436 = vld [vmem:[%s377 + $0xe8] sm:$0xf]
      %v437 = vld [vmem:[%s377 + $0xec] sm:$0xf]
      %v438 = vld [vmem:[%s377 + $0xf0] sm:$0xf]
      %v439 = vld [vmem:[%s377 + $0xf4] sm:$0xf]
      %v440 = vld [vmem:[%s377 + $0xf8] sm:$0xf]
      %v441 = vld [vmem:[%s377 + $0xfc] sm:$0xf]
      %443 = vst [vmem:[#allocation1] ss:$4 sm:$0xff] %v363
      %s445 = scalar_lea.vmem [#allocation1], 1
      %446 = vst [vmem:[%s445] ss:$4 sm:$0xff] %v376
      %v447 = vld.sshfl [vmem:[#allocation1] sm:$0xff pattern:$0x73625140]
      %v448 = vld.sshfl [vmem:[#allocation1 + $0x8] sm:$0xff pattern:$0x73625140]
      %v449 = vld.sshfl [vmem:[#allocation1 + $0x10] sm:$0xff pattern:$0x73625140]
      %v450 = vld.sshfl [vmem:[#allocation1 + $0x18] sm:$0xff pattern:$0x73625140]
      %v519 = vunpack.c.l.b16 %v378
      %v520 = vunpack.c.l.b16 %v379
      %v521 = vunpack.c.l.b16 %v380
      %v522 = vunpack.c.l.b16 %v381
      %v523 = vunpack.c.l.b16 %v382
      %v524 = vunpack.c.l.b16 %v383
      %v525 = vunpack.c.l.b16 %v384
      %v526 = vunpack.c.l.b16 %v385
      %v527 = vunpack.c.l.b16 %v386
      %v528 = vunpack.c.l.b16 %v387
      %v529 = vunpack.c.l.b16 %v388
      %v530 = vunpack.c.l.b16 %v389
      %v531 = vunpack.c.l.b16 %v390
      %v532 = vunpack.c.l.b16 %v391
      %v533 = vunpack.c.l.b16 %v392
      %v534 = vunpack.c.l.b16 %v393
      %v535 = vunpack.c.l.b16 %v394
      %v536 = vunpack.c.l.b16 %v395
      %v537 = vunpack.c.l.b16 %v396
      %v538 = vunpack.c.l.b16 %v397
      %v539 = vunpack.c.l.b16 %v398
      %v540 = vunpack.c.l.b16 %v399
      %v541 = vunpack.c.l.b16 %v400
      %v542 = vunpack.c.l.b16 %v401
      %v543 = vunpack.c.l.b16 %v402
      %v544 = vunpack.c.l.b16 %v403
      %v545 = vunpack.c.l.b16 %v404
      %v546 = vunpack.c.l.b16 %v405
      %v547 = vunpack.c.l.b16 %v406
      %v548 = vunpack.c.l.b16 %v407
      %v549 = vunpack.c.l.b16 %v408
      %v550 = vunpack.c.l.b16 %v409
      %v551 = vunpack.c.l.b16 %v410
      %v552 = vunpack.c.l.b16 %v411
      %v553 = vunpack.c.l.b16 %v412
      %v554 = vunpack.c.l.b16 %v413
      %v555 = vunpack.c.l.b16 %v414
      %v556 = vunpack.c.l.b16 %v415
      %v557 = vunpack.c.l.b16 %v416
      %v558 = vunpack.c.l.b16 %v417
      %v559 = vunpack.c.l.b16 %v418
      %v560 = vunpack.c.l.b16 %v419
      %v561 = vunpack.c.l.b16 %v420
      %v562 = vunpack.c.l.b16 %v421
      %v563 = vunpack.c.l.b16 %v422
      %v564 = vunpack.c.l.b16 %v423
      %v565 = vunpack.c.l.b16 %v424
      %v566 = vunpack.c.l.b16 %v425
      %v567 = vunpack.c.l.b16 %v426
      %v568 = vunpack.c.l.b16 %v427
      %v569 = vunpack.c.l.b16 %v428
      %v570 = vunpack.c.l.b16 %v429
      %v571 = vunpack.c.l.b16 %v430
      %v572 = vunpack.c.l.b16 %v431
      %v573 = vunpack.c.l.b16 %v432
      %v574 = vunpack.c.l.b16 %v433
      %v575 = vunpack.c.l.b16 %v434
      %v576 = vunpack.c.l.b16 %v435
      %v577 = vunpack.c.l.b16 %v436
      %v578 = vunpack.c.l.b16 %v437
      %v579 = vunpack.c.l.b16 %v438
      %v580 = vunpack.c.l.b16 %v439
      %v581 = vunpack.c.l.b16 %v440
      %v582 = vunpack.c.l.b16 %v441
      %v583 = vpack.c.b16 %v520, %v519
      %v584 = vpack.c.b16 %v522, %v521
      %v585 = vpack.c.b16 %v524, %v523
      %v586 = vpack.c.b16 %v526, %v525
      %v587 = vpack.c.b16 %v528, %v527
      %v588 = vpack.c.b16 %v530, %v529
      %v589 = vpack.c.b16 %v532, %v531
      %v590 = vpack.c.b16 %v534, %v533
      %v591 = vpack.c.b16 %v536, %v535
      %v592 = vpack.c.b16 %v538, %v537
      %v593 = vpack.c.b16 %v540, %v539
      %v594 = vpack.c.b16 %v542, %v541
      %v595 = vpack.c.b16 %v544, %v543
      %v596 = vpack.c.b16 %v546, %v545
      %v597 = vpack.c.b16 %v548, %v547
      %v598 = vpack.c.b16 %v550, %v549
      %v599 = vpack.c.b16 %v552, %v551
      %v600 = vpack.c.b16 %v554, %v553
      %v601 = vpack.c.b16 %v556, %v555
      %v602 = vpack.c.b16 %v558, %v557
      %v603 = vpack.c.b16 %v560, %v559
      %v604 = vpack.c.b16 %v562, %v561
      %v605 = vpack.c.b16 %v564, %v563
      %v606 = vpack.c.b16 %v566, %v565
      %v607 = vpack.c.b16 %v568, %v567
      %v608 = vpack.c.b16 %v570, %v569
      %v609 = vpack.c.b16 %v572, %v571
      %v610 = vpack.c.b16 %v574, %v573
      %v611 = vpack.c.b16 %v576, %v575
      %v612 = vpack.c.b16 %v578, %v577
      %v613 = vpack.c.b16 %v580, %v579
      %v614 = vpack.c.b16 %v582, %v581
      %647 = vmatpush.bf16.msra.mxu0 %v590
      %648 = vmatpush.bf16.msra.mxu0 %v589
      %649 = vmatpush.bf16.msra.mxu0 %v588
      %650 = vmatpush.bf16.msra.mxu0 %v587
      %651 = vmatpush.bf16.msra.mxu0 %v586
      %652 = vmatpush.bf16.msra.mxu0 %v585
      %653 = vmatpush.bf16.msra.mxu0 %v584
      %654 = vmatpush.bf16.msra.mxu0 %v583
      %655 = vmatmul.bf16.gmra.mxu0 %v447
      %v656 = vpop.f32.mrf.mxu0
      %v657 = vadd.f32 0.0, %v656
      %v658 = vpop.f32.mrf.mxu0
      %659 = vdwg.mxu0
      %660 = vmatpush.bf16.msra.mxu0 %v598
      %661 = vmatpush.bf16.msra.mxu0 %v597
      %662 = vmatpush.bf16.msra.mxu0 %v596
      %663 = vmatpush.bf16.msra.mxu0 %v595
      %664 = vmatpush.bf16.msra.mxu0 %v594
      %665 = vmatpush.bf16.msra.mxu0 %v593
      %666 = vmatpush.bf16.msra.mxu0 %v592
      %667 = vmatpush.bf16.msra.mxu0 %v591
      %668 = vmatmul.bf16.gmra.mxu0 %v448
      %v669 = vpop.f32.mrf.mxu0
      %v670 = vadd.f32 %v657, %v669
      %v671 = vpop.f32.mrf.mxu0
      %672 = vdwg.mxu0
      %673 = vmatpush.bf16.msra.mxu0 %v606
      %674 = vmatpush.bf16.msra.mxu0 %v605
      %675 = vmatpush.bf16.msra.mxu0 %v604
      %676 = vmatpush.bf16.msra.mxu0 %v603
      %677 = vmatpush.bf16.msra.mxu0 %v602
      %678 = vmatpush.bf16.msra.mxu0 %v601
      %679 = vmatpush.bf16.msra.mxu0 %v600
      %680 = vmatpush.bf16.msra.mxu0 %v599
      %681 = vmatmul.bf16.gmra.mxu0 %v449
      %v682 = vpop.f32.mrf.mxu0
      %v683 = vadd.f32 %v670, %v682
      %v684 = vpop.f32.mrf.mxu0
      %685 = vdwg.mxu0
      %686 = vmatpush.bf16.msra.mxu0 %v614
      %687 = vmatpush.bf16.msra.mxu0 %v613
      %688 = vmatpush.bf16.msra.mxu0 %v612
      %689 = vmatpush.bf16.msra.mxu0 %v611
      %690 = vmatpush.bf16.msra.mxu0 %v610
      %691 = vmatpush.bf16.msra.mxu0 %v609
      %692 = vmatpush.bf16.msra.mxu0 %v608
      %693 = vmatpush.bf16.msra.mxu0 %v607
      %694 = vmatmul.bf16.gmra.mxu0 %v450
      %v695 = vpop.f32.mrf.mxu0
      %v696 = vadd.f32 %v683, %v695
      %v697 = vpop.f32.mrf.mxu0
      %698 = vdwg.mxu0
      %699 = vst [vmem:[#allocation1] ss:$4 sm:$0xff] %v231
      %s700 = scalar_lea.vmem [#allocation1], 1
      %701 = vst [vmem:[%s700] ss:$4 sm:$0xff] %v238
      %v702 = vld.sshfl [vmem:[#allocation1] sm:$0xff pattern:$0x73625140]
      %v703 = vld.sshfl [vmem:[#allocation1 + $0x8] sm:$0xff pattern:$0x73625140]
      %v704 = vld.sshfl [vmem:[#allocation1 + $0x10] sm:$0xff pattern:$0x73625140]
      %v705 = vld.sshfl [vmem:[#allocation1 + $0x18] sm:$0xff pattern:$0x73625140]
      %v774 = vunpack.c.l.b16 %v239
      %v775 = vunpack.c.l.b16 %v240
      %v776 = vunpack.c.l.b16 %v241
      %v777 = vunpack.c.l.b16 %v242
      %v778 = vunpack.c.l.b16 %v243
      %v779 = vunpack.c.l.b16 %v244
      %v780 = vunpack.c.l.b16 %v245
      %v781 = vunpack.c.l.b16 %v246
      %v782 = vunpack.c.l.b16 %v247
      %v783 = vunpack.c.l.b16 %v248
      %v784 = vunpack.c.l.b16 %v249
      %v785 = vunpack.c.l.b16 %v250
      %v786 = vunpack.c.l.b16 %v251
      %v787 = vunpack.c.l.b16 %v252
      %v788 = vunpack.c.l.b16 %v253
      %v789 = vunpack.c.l.b16 %v254
      %v790 = vunpack.c.l.b16 %v255
      %v791 = vunpack.c.l.b16 %v256
      %v792 = vunpack.c.l.b16 %v257
      %v793 = vunpack.c.l.b16 %v258
      %v794 = vunpack.c.l.b16 %v259
      %v795 = vunpack.c.l.b16 %v260
      %v796 = vunpack.c.l.b16 %v261
      %v797 = vunpack.c.l.b16 %v262
      %v798 = vunpack.c.l.b16 %v263
      %v799 = vunpack.c.l.b16 %v264
      %v800 = vunpack.c.l.b16 %v265
      %v801 = vunpack.c.l.b16 %v266
      %v802 = vunpack.c.l.b16 %v267
      %v803 = vunpack.c.l.b16 %v268
      %v804 = vunpack.c.l.b16 %v269
      %v805 = vunpack.c.l.b16 %v270
      %v806 = vunpack.c.l.b16 %v271
      %v807 = vunpack.c.l.b16 %v272
      %v808 = vunpack.c.l.b16 %v273
      %v809 = vunpack.c.l.b16 %v274
      %v810 = vunpack.c.l.b16 %v275
      %v811 = vunpack.c.l.b16 %v276
      %v812 = vunpack.c.l.b16 %v277
      %v813 = vunpack.c.l.b16 %v278
      %v814 = vunpack.c.l.b16 %v279
      %v815 = vunpack.c.l.b16 %v280
      %v816 = vunpack.c.l.b16 %v281
      %v817 = vunpack.c.l.b16 %v282
      %v818 = vunpack.c.l.b16 %v283
      %v819 = vunpack.c.l.b16 %v284
      %v820 = vunpack.c.l.b16 %v285
      %v821 = vunpack.c.l.b16 %v286
      %v822 = vunpack.c.l.b16 %v287
      %v823 = vunpack.c.l.b16 %v288
      %v824 = vunpack.c.l.b16 %v289
      %v825 = vunpack.c.l.b16 %v290
      %v826 = vunpack.c.l.b16 %v291
      %v827 = vunpack.c.l.b16 %v292
      %v828 = vunpack.c.l.b16 %v293
      %v829 = vunpack.c.l.b16 %v294
      %v830 = vunpack.c.l.b16 %v295
      %v831 = vunpack.c.l.b16 %v296
      %v832 = vunpack.c.l.b16 %v297
      %v833 = vunpack.c.l.b16 %v298
      %v834 = vunpack.c.l.b16 %v299
      %v835 = vunpack.c.l.b16 %v300
      %v836 = vunpack.c.l.b16 %v301
      %v837 = vunpack.c.l.b16 %v302
      %v838 = vpack.c.b16 %v775, %v774
      %v839 = vpack.c.b16 %v777, %v776
      %v840 = vpack.c.b16 %v779, %v778
      %v841 = vpack.c.b16 %v781, %v780
      %v842 = vpack.c.b16 %v783, %v782
      %v843 = vpack.c.b16 %v785, %v784
      %v844 = vpack.c.b16 %v787, %v786
      %v845 = vpack.c.b16 %v789, %v788
      %v846 = vpack.c.b16 %v791, %v790
      %v847 = vpack.c.b16 %v793, %v792
      %v848 = vpack.c.b16 %v795, %v794
      %v849 = vpack.c.b16 %v797, %v796
      %v850 = vpack.c.b16 %v799, %v798
      %v851 = vpack.c.b16 %v801, %v800
      %v852 = vpack.c.b16 %v803, %v802
      %v853 = vpack.c.b16 %v805, %v804
      %v854 = vpack.c.b16 %v807, %v806
      %v855 = vpack.c.b16 %v809, %v808
      %v856 = vpack.c.b16 %v811, %v810
      %v857 = vpack.c.b16 %v813, %v812
      %v858 = vpack.c.b16 %v815, %v814
      %v859 = vpack.c.b16 %v817, %v816
      %v860 = vpack.c.b16 %v819, %v818
      %v861 = vpack.c.b16 %v821, %v820
      %v862 = vpack.c.b16 %v823, %v822
      %v863 = vpack.c.b16 %v825, %v824
      %v864 = vpack.c.b16 %v827, %v826
      %v865 = vpack.c.b16 %v829, %v828
      %v866 = vpack.c.b16 %v831, %v830
      %v867 = vpack.c.b16 %v833, %v832
      %v868 = vpack.c.b16 %v835, %v834
      %v869 = vpack.c.b16 %v837, %v836
      %902 = vmatpush.bf16.msra.mxu0 %v845
      %903 = vmatpush.bf16.msra.mxu0 %v844
      %904 = vmatpush.bf16.msra.mxu0 %v843
      %905 = vmatpush.bf16.msra.mxu0 %v842
      %906 = vmatpush.bf16.msra.mxu0 %v841
      %907 = vmatpush.bf16.msra.mxu0 %v840
      %908 = vmatpush.bf16.msra.mxu0 %v839
      %909 = vmatpush.bf16.msra.mxu0 %v838
      %910 = vmatmul.bf16.gmra.mxu0 %v702
      %v911 = vpop.f32.mrf.mxu0
      %v912 = vadd.f32 %v696, %v911
      %v913 = vpop.f32.mrf.mxu0
      %914 = vdwg.mxu0
      %915 = vmatpush.bf16.msra.mxu0 %v853
      %916 = vmatpush.bf16.msra.mxu0 %v852
      %917 = vmatpush.bf16.msra.mxu0 %v851
      %918 = vmatpush.bf16.msra.mxu0 %v850
      %919 = vmatpush.bf16.msra.mxu0 %v849
      %920 = vmatpush.bf16.msra.mxu0 %v848
      %921 = vmatpush.bf16.msra.mxu0 %v847
      %922 = vmatpush.bf16.msra.mxu0 %v846
      %923 = vmatmul.bf16.gmra.mxu0 %v703
      %v924 = vpop.f32.mrf.mxu0
      %v925 = vadd.f32 %v912, %v924
      %v926 = vpop.f32.mrf.mxu0
      %927 = vdwg.mxu0
      %928 = vmatpush.bf16.msra.mxu0 %v861
      %929 = vmatpush.bf16.msra.mxu0 %v860
      %930 = vmatpush.bf16.msra.mxu0 %v859
      %931 = vmatpush.bf16.msra.mxu0 %v858
      %932 = vmatpush.bf16.msra.mxu0 %v857
      %933 = vmatpush.bf16.msra.mxu0 %v856
      %934 = vmatpush.bf16.msra.mxu0 %v855
      %935 = vmatpush.bf16.msra.mxu0 %v854
      %936 = vmatmul.bf16.gmra.mxu0 %v704
      %v937 = vpop.f32.mrf.mxu0
      %v938 = vadd.f32 %v925, %v937
      %v939 = vpop.f32.mrf.mxu0
      %940 = vdwg.mxu0
      %941 = vmatpush.bf16.msra.mxu0 %v869
      %942 = vmatpush.bf16.msra.mxu0 %v868
      %943 = vmatpush.bf16.msra.mxu0 %v867
      %944 = vmatpush.bf16.msra.mxu0 %v866
      %945 = vmatpush.bf16.msra.mxu0 %v865
      %946 = vmatpush.bf16.msra.mxu0 %v864
      %947 = vmatpush.bf16.msra.mxu0 %v863
      %948 = vmatpush.bf16.msra.mxu0 %v862
      %949 = vmatmul.bf16.gmra.mxu0 %v705
      %v950 = vpop.f32.mrf.mxu0
      %v951 = vadd.f32 %v938, %v950
      %v952 = vpop.f32.mrf.mxu0
      %953 = vdwg.mxu0
      %v954 = vld [vmem:[%s197] sm:$0x66]
      %v955 = vld [vmem:[%s197 + $0x8] sm:$0x66]
      %v956 = vld [vmem:[%s197 + $0x10] sm:$0x66]
      %v957 = vld [vmem:[%s197 + $0x18] sm:$0x66]
      %v962 = vrot.slane %v954, 2
      %v963 = vrot.slane %v955, 4
      %v964 = vrot.slane %v955, 6
      %v965 = vrot.slane %v956, 2
      %v966 = vrot.slane %v957, 4
      %v967 = vrot.slane %v957, 6
      %v970 = vsel %vm222, %v954, %v962
      %v973 = vsel %vm226, %v963, %v964
      %v974 = vsel %vm230, %v970, %v973
      %v976 = vsel %vm324, %v954, %v962
      %v977 = vsel %vm326, %v964, %v963
      %v978 = vsel %vm328, %v976, %v977
      %v980 = vrot.slane %v978, 2
      %v983 = vsel %vm222, %v956, %v965
      %v986 = vsel %vm226, %v966, %v967
      %v987 = vsel %vm230, %v983, %v986
      %v989 = vsel %vm324, %v956, %v965
      %v990 = vsel %vm326, %v967, %v966
      %v991 = vsel %vm328, %v989, %v990
      %v993 = vrot.slane %v991, 2
      %vm994 = vcmask 1040384
      %vm995 = vcmask 1042434
      %vm996 = vmor %vm994, %vm995
      %vm997 = vcmask 1044484
      %vm998 = vmor %vm996, %vm997
      %vm999 = vcmask 1046534
      %vm1000 = vmor %vm998, %vm999
      %v1001 = vrot.slane %v974, 7
      %v1002 = vrot.slane %v1001, 2
      %v1003 = vrot.slane %v980, 7
      %v1004 = vsel %vm1000, %v1002, %v1003
      %v1005 = vrot.slane %v987, 7
      %v1006 = vrot.slane %v1005, 2
      %v1007 = vrot.slane %v993, 7
      %v1008 = vsel %vm1000, %v1006, %v1007
      %s1009 = scalar_lea.vmem %s1, 512
      %v1010 = vld [vmem:[%s1009] sm:$0xf]
      %v1011 = vld [vmem:[%s1009 + $0x4] sm:$0xf]
      %v1012 = vld [vmem:[%s1009 + $0x8] sm:$0xf]
      %v1013 = vld [vmem:[%s1009 + $0xc] sm:$0xf]
      %v1014 = vld [vmem:[%s1009 + $0x10] sm:$0xf]
      %v1015 = vld [vmem:[%s1009 + $0x14] sm:$0xf]
      %v1016 = vld [vmem:[%s1009 + $0x18] sm:$0xf]
      %v1017 = vld [vmem:[%s1009 + $0x1c] sm:$0xf]
      %v1018 = vld [vmem:[%s1009 + $0x20] sm:$0xf]
      %v1019 = vld [vmem:[%s1009 + $0x24] sm:$0xf]
      %v1020 = vld [vmem:[%s1009 + $0x28] sm:$0xf]
      %v1021 = vld [vmem:[%s1009 + $0x2c] sm:$0xf]
      %v1022 = vld [vmem:[%s1009 + $0x30] sm:$0xf]
      %v1023 = vld [vmem:[%s1009 + $0x34] sm:$0xf]
      %v1024 = vld [vmem:[%s1009 + $0x38] sm:$0xf]
      %v1025 = vld [vmem:[%s1009 + $0x3c] sm:$0xf]
      %v1026 = vld [vmem:[%s1009 + $0x40] sm:$0xf]
      %v1027 = vld [vmem:[%s1009 + $0x44] sm:$0xf]
      %v1028 = vld [vmem:[%s1009 + $0x48] sm:$0xf]
      %v1029 = vld [vmem:[%s1009 + $0x4c] sm:$0xf]
      %v1030 = vld [vmem:[%s1009 + $0x50] sm:$0xf]
      %v1031 = vld [vmem:[%s1009 + $0x54] sm:$0xf]
      %v1032 = vld [vmem:[%s1009 + $0x58] sm:$0xf]
      %v1033 = vld [vmem:[%s1009 + $0x5c] sm:$0xf]
      %v1034 = vld [vmem:[%s1009 + $0x60] sm:$0xf]
      %v1035 = vld [vmem:[%s1009 + $0x64] sm:$0xf]
      %v1036 = vld [vmem:[%s1009 + $0x68] sm:$0xf]
      %v1037 = vld [vmem:[%s1009 + $0x6c] sm:$0xf]
      %v1038 = vld [vmem:[%s1009 + $0x70] sm:$0xf]
      %v1039 = vld [vmem:[%s1009 + $0x74] sm:$0xf]
      %v1040 = vld [vmem:[%s1009 + $0x78] sm:$0xf]
      %v1041 = vld [vmem:[%s1009 + $0x7c] sm:$0xf]
      %v1042 = vld [vmem:[%s1009 + $0x80] sm:$0xf]
      %v1043 = vld [vmem:[%s1009 + $0x84] sm:$0xf]
      %v1044 = vld [vmem:[%s1009 + $0x88] sm:$0xf]
      %v1045 = vld [vmem:[%s1009 + $0x8c] sm:$0xf]
      %v1046 = vld [vmem:[%s1009 + $0x90] sm:$0xf]
      %v1047 = vld [vmem:[%s1009 + $0x94] sm:$0xf]
      %v1048 = vld [vmem:[%s1009 + $0x98] sm:$0xf]
      %v1049 = vld [vmem:[%s1009 + $0x9c] sm:$0xf]
      %v1050 = vld [vmem:[%s1009 + $0xa0] sm:$0xf]
      %v1051 = vld [vmem:[%s1009 + $0xa4] sm:$0xf]
      %v1052 = vld [vmem:[%s1009 + $0xa8] sm:$0xf]
      %v1053 = vld [vmem:[%s1009 + $0xac] sm:$0xf]
      %v1054 = vld [vmem:[%s1009 + $0xb0] sm:$0xf]
      %v1055 = vld [vmem:[%s1009 + $0xb4] sm:$0xf]
      %v1056 = vld [vmem:[%s1009 + $0xb8] sm:$0xf]
      %v1057 = vld [vmem:[%s1009 + $0xbc] sm:$0xf]
      %v1058 = vld [vmem:[%s1009 + $0xc0] sm:$0xf]
      %v1059 = vld [vmem:[%s1009 + $0xc4] sm:$0xf]
      %v1060 = vld [vmem:[%s1009 + $0xc8] sm:$0xf]
      %v1061 = vld [vmem:[%s1009 + $0xcc] sm:$0xf]
      %v1062 = vld [vmem:[%s1009 + $0xd0] sm:$0xf]
      %v1063 = vld [vmem:[%s1009 + $0xd4] sm:$0xf]
      %v1064 = vld [vmem:[%s1009 + $0xd8] sm:$0xf]
      %v1065 = vld [vmem:[%s1009 + $0xdc] sm:$0xf]
      %v1066 = vld [vmem:[%s1009 + $0xe0] sm:$0xf]
      %v1067 = vld [vmem:[%s1009 + $0xe4] sm:$0xf]
      %v1068 = vld [vmem:[%s1009 + $0xe8] sm:$0xf]
      %v1069 = vld [vmem:[%s1009 + $0xec] sm:$0xf]
      %v1070 = vld [vmem:[%s1009 + $0xf0] sm:$0xf]
      %v1071 = vld [vmem:[%s1009 + $0xf4] sm:$0xf]
      %v1072 = vld [vmem:[%s1009 + $0xf8] sm:$0xf]
      %v1073 = vld [vmem:[%s1009 + $0xfc] sm:$0xf]
      %1075 = vst [vmem:[#allocation1] ss:$4 sm:$0xff] %v1004
      %s1077 = scalar_lea.vmem [#allocation1], 1
      %1078 = vst [vmem:[%s1077] ss:$4 sm:$0xff] %v1008
      %v1079 = vld.sshfl [vmem:[#allocation1] sm:$0xff pattern:$0x73625140]
      %v1080 = vld.sshfl [vmem:[#allocation1 + $0x8] sm:$0xff pattern:$0x73625140]
      %v1081 = vld.sshfl [vmem:[#allocation1 + $0x10] sm:$0xff pattern:$0x73625140]
      %v1082 = vld.sshfl [vmem:[#allocation1 + $0x18] sm:$0xff pattern:$0x73625140]
      %v1151 = vunpack.c.l.b16 %v1010
      %v1152 = vunpack.c.l.b16 %v1011
      %v1153 = vunpack.c.l.b16 %v1012
      %v1154 = vunpack.c.l.b16 %v1013
      %v1155 = vunpack.c.l.b16 %v1014
      %v1156 = vunpack.c.l.b16 %v1015
      %v1157 = vunpack.c.l.b16 %v1016
      %v1158 = vunpack.c.l.b16 %v1017
      %v1159 = vunpack.c.l.b16 %v1018
      %v1160 = vunpack.c.l.b16 %v1019
      %v1161 = vunpack.c.l.b16 %v1020
      %v1162 = vunpack.c.l.b16 %v1021
      %v1163 = vunpack.c.l.b16 %v1022
      %v1164 = vunpack.c.l.b16 %v1023
      %v1165 = vunpack.c.l.b16 %v1024
      %v1166 = vunpack.c.l.b16 %v1025
      %v1167 = vunpack.c.l.b16 %v1026
      %v1168 = vunpack.c.l.b16 %v1027
      %v1169 = vunpack.c.l.b16 %v1028
      %v1170 = vunpack.c.l.b16 %v1029
      %v1171 = vunpack.c.l.b16 %v1030
      %v1172 = vunpack.c.l.b16 %v1031
      %v1173 = vunpack.c.l.b16 %v1032
      %v1174 = vunpack.c.l.b16 %v1033
      %v1175 = vunpack.c.l.b16 %v1034
      %v1176 = vunpack.c.l.b16 %v1035
      %v1177 = vunpack.c.l.b16 %v1036
      %v1178 = vunpack.c.l.b16 %v1037
      %v1179 = vunpack.c.l.b16 %v1038
      %v1180 = vunpack.c.l.b16 %v1039
      %v1181 = vunpack.c.l.b16 %v1040
      %v1182 = vunpack.c.l.b16 %v1041
      %v1183 = vunpack.c.l.b16 %v1042
      %v1184 = vunpack.c.l.b16 %v1043
      %v1185 = vunpack.c.l.b16 %v1044
      %v1186 = vunpack.c.l.b16 %v1045
      %v1187 = vunpack.c.l.b16 %v1046
      %v1188 = vunpack.c.l.b16 %v1047
      %v1189 = vunpack.c.l.b16 %v1048
      %v1190 = vunpack.c.l.b16 %v1049
      %v1191 = vunpack.c.l.b16 %v1050
      %v1192 = vunpack.c.l.b16 %v1051
      %v1193 = vunpack.c.l.b16 %v1052
      %v1194 = vunpack.c.l.b16 %v1053
      %v1195 = vunpack.c.l.b16 %v1054
      %v1196 = vunpack.c.l.b16 %v1055
      %v1197 = vunpack.c.l.b16 %v1056
      %v1198 = vunpack.c.l.b16 %v1057
      %v1199 = vunpack.c.l.b16 %v1058
      %v1200 = vunpack.c.l.b16 %v1059
      %v1201 = vunpack.c.l.b16 %v1060
      %v1202 = vunpack.c.l.b16 %v1061
      %v1203 = vunpack.c.l.b16 %v1062
      %v1204 = vunpack.c.l.b16 %v1063
      %v1205 = vunpack.c.l.b16 %v1064
      %v1206 = vunpack.c.l.b16 %v1065
      %v1207 = vunpack.c.l.b16 %v1066
      %v1208 = vunpack.c.l.b16 %v1067
      %v1209 = vunpack.c.l.b16 %v1068
      %v1210 = vunpack.c.l.b16 %v1069
      %v1211 = vunpack.c.l.b16 %v1070
      %v1212 = vunpack.c.l.b16 %v1071
      %v1213 = vunpack.c.l.b16 %v1072
      %v1214 = vunpack.c.l.b16 %v1073
      %v1215 = vpack.c.b16 %v1152, %v1151
      %v1216 = vpack.c.b16 %v1154, %v1153
      %v1217 = vpack.c.b16 %v1156, %v1155
      %v1218 = vpack.c.b16 %v1158, %v1157
      %v1219 = vpack.c.b16 %v1160, %v1159
      %v1220 = vpack.c.b16 %v1162, %v1161
      %v1221 = vpack.c.b16 %v1164, %v1163
      %v1222 = vpack.c.b16 %v1166, %v1165
      %v1223 = vpack.c.b16 %v1168, %v1167
      %v1224 = vpack.c.b16 %v1170, %v1169
      %v1225 = vpack.c.b16 %v1172, %v1171
      %v1226 = vpack.c.b16 %v1174, %v1173
      %v1227 = vpack.c.b16 %v1176, %v1175
      %v1228 = vpack.c.b16 %v1178, %v1177
      %v1229 = vpack.c.b16 %v1180, %v1179
      %v1230 = vpack.c.b16 %v1182, %v1181
      %v1231 = vpack.c.b16 %v1184, %v1183
      %v1232 = vpack.c.b16 %v1186, %v1185
      %v1233 = vpack.c.b16 %v1188, %v1187
      %v1234 = vpack.c.b16 %v1190, %v1189
      %v1235 = vpack.c.b16 %v1192, %v1191
      %v1236 = vpack.c.b16 %v1194, %v1193
      %v1237 = vpack.c.b16 %v1196, %v1195
      %v1238 = vpack.c.b16 %v1198, %v1197
      %v1239 = vpack.c.b16 %v1200, %v1199
      %v1240 = vpack.c.b16 %v1202, %v1201
      %v1241 = vpack.c.b16 %v1204, %v1203
      %v1242 = vpack.c.b16 %v1206, %v1205
      %v1243 = vpack.c.b16 %v1208, %v1207
      %v1244 = vpack.c.b16 %v1210, %v1209
      %v1245 = vpack.c.b16 %v1212, %v1211
      %v1246 = vpack.c.b16 %v1214, %v1213
      %1279 = vmatpush.bf16.msra.mxu0 %v1222
      %1280 = vmatpush.bf16.msra.mxu0 %v1221
      %1281 = vmatpush.bf16.msra.mxu0 %v1220
      %1282 = vmatpush.bf16.msra.mxu0 %v1219
      %1283 = vmatpush.bf16.msra.mxu0 %v1218
      %1284 = vmatpush.bf16.msra.mxu0 %v1217
      %1285 = vmatpush.bf16.msra.mxu0 %v1216
      %1286 = vmatpush.bf16.msra.mxu0 %v1215
      %1287 = vmatmul.bf16.gmra.mxu0 %v1079
      %v1288 = vpop.f32.mrf.mxu0
      %v1289 = vadd.f32 0.0, %v1288
      %v1290 = vpop.f32.mrf.mxu0
      %1291 = vdwg.mxu0
      %1292 = vmatpush.bf16.msra.mxu0 %v1230
      %1293 = vmatpush.bf16.msra.mxu0 %v1229
      %1294 = vmatpush.bf16.msra.mxu0 %v1228
      %1295 = vmatpush.bf16.msra.mxu0 %v1227
      %1296 = vmatpush.bf16.msra.mxu0 %v1226
      %1297 = vmatpush.bf16.msra.mxu0 %v1225
      %1298 = vmatpush.bf16.msra.mxu0 %v1224
      %1299 = vmatpush.bf16.msra.mxu0 %v1223
      %1300 = vmatmul.bf16.gmra.mxu0 %v1080
      %v1301 = vpop.f32.mrf.mxu0
      %v1302 = vadd.f32 %v1289, %v1301
      %v1303 = vpop.f32.mrf.mxu0
      %1304 = vdwg.mxu0
      %1305 = vmatpush.bf16.msra.mxu0 %v1238
      %1306 = vmatpush.bf16.msra.mxu0 %v1237
      %1307 = vmatpush.bf16.msra.mxu0 %v1236
      %1308 = vmatpush.bf16.msra.mxu0 %v1235
      %1309 = vmatpush.bf16.msra.mxu0 %v1234
      %1310 = vmatpush.bf16.msra.mxu0 %v1233
      %1311 = vmatpush.bf16.msra.mxu0 %v1232
      %1312 = vmatpush.bf16.msra.mxu0 %v1231
      %1313 = vmatmul.bf16.gmra.mxu0 %v1081
      %v1314 = vpop.f32.mrf.mxu0
      %v1315 = vadd.f32 %v1302, %v1314
      %v1316 = vpop.f32.mrf.mxu0
      %1317 = vdwg.mxu0
      %1318 = vmatpush.bf16.msra.mxu0 %v1246
      %1319 = vmatpush.bf16.msra.mxu0 %v1245
      %1320 = vmatpush.bf16.msra.mxu0 %v1244
      %1321 = vmatpush.bf16.msra.mxu0 %v1243
      %1322 = vmatpush.bf16.msra.mxu0 %v1242
      %1323 = vmatpush.bf16.msra.mxu0 %v1241
      %1324 = vmatpush.bf16.msra.mxu0 %v1240
      %1325 = vmatpush.bf16.msra.mxu0 %v1239
      %1326 = vmatmul.bf16.gmra.mxu0 %v1082
      %v1327 = vpop.f32.mrf.mxu0
      %v1328 = vadd.f32 %v1315, %v1327
      %v1329 = vpop.f32.mrf.mxu0
      %1330 = vdwg.mxu0
      %v1331 = vadd.f32 %v951, %v1328
      %s1332 = scalar_lea.vmem %s197, 16
      %v1333 = vld [vmem:[%s1332] sm:$0x33]
      %v1334 = vld [vmem:[%s1332 + $0x8] sm:$0x33]
      %v1335 = vld [vmem:[%s1332 + $0x10] sm:$0x33]
      %v1336 = vld [vmem:[%s1332 + $0x18] sm:$0x33]
      %v1341 = vrot.slane %v1333, 2
      %v1342 = vrot.slane %v1334, 4
      %v1343 = vrot.slane %v1334, 6
      %v1344 = vrot.slane %v1335, 2
      %v1345 = vrot.slane %v1336, 4
      %v1346 = vrot.slane %v1336, 6
      %v1349 = vsel %vm222, %v1333, %v1341
      %v1352 = vsel %vm226, %v1342, %v1343
      %v1353 = vsel %vm230, %v1349, %v1352
      %v1356 = vsel %vm222, %v1335, %v1344
      %v1359 = vsel %vm226, %v1345, %v1346
      %v1360 = vsel %vm230, %v1356, %v1359
      %s1361 = scalar_lea.vmem %s1, 768
      %v1362 = vld [vmem:[%s1361] sm:$0xf]
      %v1363 = vld [vmem:[%s1361 + $0x4] sm:$0xf]
      %v1364 = vld [vmem:[%s1361 + $0x8] sm:$0xf]
      %v1365 = vld [vmem:[%s1361 + $0xc] sm:$0xf]
      %v1366 = vld [vmem:[%s1361 + $0x10] sm:$0xf]
      %v1367 = vld [vmem:[%s1361 + $0x14] sm:$0xf]
      %v1368 = vld [vmem:[%s1361 + $0x18] sm:$0xf]
      %v1369 = vld [vmem:[%s1361 + $0x1c] sm:$0xf]
      %v1370 = vld [vmem:[%s1361 + $0x20] sm:$0xf]
      %v1371 = vld [vmem:[%s1361 + $0x24] sm:$0xf]
      %v1372 = vld [vmem:[%s1361 + $0x28] sm:$0xf]
      %v1373 = vld [vmem:[%s1361 + $0x2c] sm:$0xf]
      %v1374 = vld [vmem:[%s1361 + $0x30] sm:$0xf]
      %v1375 = vld [vmem:[%s1361 + $0x34] sm:$0xf]
      %v1376 = vld [vmem:[%s1361 + $0x38] sm:$0xf]
      %v1377 = vld [vmem:[%s1361 + $0x3c] sm:$0xf]
      %v1378 = vld [vmem:[%s1361 + $0x40] sm:$0xf]
      %v1379 = vld [vmem:[%s1361 + $0x44] sm:$0xf]
      %v1380 = vld [vmem:[%s1361 + $0x48] sm:$0xf]
      %v1381 = vld [vmem:[%s1361 + $0x4c] sm:$0xf]
      %v1382 = vld [vmem:[%s1361 + $0x50] sm:$0xf]
      %v1383 = vld [vmem:[%s1361 + $0x54] sm:$0xf]
      %v1384 = vld [vmem:[%s1361 + $0x58] sm:$0xf]
      %v1385 = vld [vmem:[%s1361 + $0x5c] sm:$0xf]
      %v1386 = vld [vmem:[%s1361 + $0x60] sm:$0xf]
      %v1387 = vld [vmem:[%s1361 + $0x64] sm:$0xf]
      %v1388 = vld [vmem:[%s1361 + $0x68] sm:$0xf]
      %v1389 = vld [vmem:[%s1361 + $0x6c] sm:$0xf]
      %v1390 = vld [vmem:[%s1361 + $0x70] sm:$0xf]
      %v1391 = vld [vmem:[%s1361 + $0x74] sm:$0xf]
      %v1392 = vld [vmem:[%s1361 + $0x78] sm:$0xf]
      %v1393 = vld [vmem:[%s1361 + $0x7c] sm:$0xf]
      %v1394 = vld [vmem:[%s1361 + $0x80] sm:$0xf]
      %v1395 = vld [vmem:[%s1361 + $0x84] sm:$0xf]
      %v1396 = vld [vmem:[%s1361 + $0x88] sm:$0xf]
      %v1397 = vld [vmem:[%s1361 + $0x8c] sm:$0xf]
      %v1398 = vld [vmem:[%s1361 + $0x90] sm:$0xf]
      %v1399 = vld [vmem:[%s1361 + $0x94] sm:$0xf]
      %v1400 = vld [vmem:[%s1361 + $0x98] sm:$0xf]
      %v1401 = vld [vmem:[%s1361 + $0x9c] sm:$0xf]
      %v1402 = vld [vmem:[%s1361 + $0xa0] sm:$0xf]
      %v1403 = vld [vmem:[%s1361 + $0xa4] sm:$0xf]
      %v1404 = vld [vmem:[%s1361 + $0xa8] sm:$0xf]
      %v1405 = vld [vmem:[%s1361 + $0xac] sm:$0xf]
      %v1406 = vld [vmem:[%s1361 + $0xb0] sm:$0xf]
      %v1407 = vld [vmem:[%s1361 + $0xb4] sm:$0xf]
      %v1408 = vld [vmem:[%s1361 + $0xb8] sm:$0xf]
      %v1409 = vld [vmem:[%s1361 + $0xbc] sm:$0xf]
      %v1410 = vld [vmem:[%s1361 + $0xc0] sm:$0xf]
      %v1411 = vld [vmem:[%s1361 + $0xc4] sm:$0xf]
      %v1412 = vld [vmem:[%s1361 + $0xc8] sm:$0xf]
      %v1413 = vld [vmem:[%s1361 + $0xcc] sm:$0xf]
      %v1414 = vld [vmem:[%s1361 + $0xd0] sm:$0xf]
      %v1415 = vld [vmem:[%s1361 + $0xd4] sm:$0xf]
      %v1416 = vld [vmem:[%s1361 + $0xd8] sm:$0xf]
      %v1417 = vld [vmem:[%s1361 + $0xdc] sm:$0xf]
      %v1418 = vld [vmem:[%s1361 + $0xe0] sm:$0xf]
      %v1419 = vld [vmem:[%s1361 + $0xe4] sm:$0xf]
      %v1420 = vld [vmem:[%s1361 + $0xe8] sm:$0xf]
      %v1421 = vld [vmem:[%s1361 + $0xec] sm:$0xf]
      %v1422 = vld [vmem:[%s1361 + $0xf0] sm:$0xf]
      %v1423 = vld [vmem:[%s1361 + $0xf4] sm:$0xf]
      %v1424 = vld [vmem:[%s1361 + $0xf8] sm:$0xf]
      %v1425 = vld [vmem:[%s1361 + $0xfc] sm:$0xf]
      %1426 = vst [vmem:[#allocation1] ss:$4 sm:$0xff] %v1353
      %s1427 = scalar_lea.vmem [#allocation1], 1
      %1428 = vst [vmem:[%s1427] ss:$4 sm:$0xff] %v1360
      %v1429 = vld.sshfl [vmem:[#allocation1] sm:$0xff pattern:$0x73625140]
      %v1430 = vld.sshfl [vmem:[#allocation1 + $0x8] sm:$0xff pattern:$0x73625140]
      %v1431 = vld.sshfl [vmem:[#allocation1 + $0x10] sm:$0xff pattern:$0x73625140]
      %v1432 = vld.sshfl [vmem:[#allocation1 + $0x18] sm:$0xff pattern:$0x73625140]
      %v1501 = vunpack.c.l.b16 %v1362
      %v1502 = vunpack.c.l.b16 %v1363
      %v1503 = vunpack.c.l.b16 %v1364
      %v1504 = vunpack.c.l.b16 %v1365
      %v1505 = vunpack.c.l.b16 %v1366
      %v1506 = vunpack.c.l.b16 %v1367
      %v1507 = vunpack.c.l.b16 %v1368
      %v1508 = vunpack.c.l.b16 %v1369
      %v1509 = vunpack.c.l.b16 %v1370
      %v1510 = vunpack.c.l.b16 %v1371
      %v1511 = vunpack.c.l.b16 %v1372
      %v1512 = vunpack.c.l.b16 %v1373
      %v1513 = vunpack.c.l.b16 %v1374
      %v1514 = vunpack.c.l.b16 %v1375
      %v1515 = vunpack.c.l.b16 %v1376
      %v1516 = vunpack.c.l.b16 %v1377
      %v1517 = vunpack.c.l.b16 %v1378
      %v1518 = vunpack.c.l.b16 %v1379
      %v1519 = vunpack.c.l.b16 %v1380
      %v1520 = vunpack.c.l.b16 %v1381
      %v1521 = vunpack.c.l.b16 %v1382
      %v1522 = vunpack.c.l.b16 %v1383
      %v1523 = vunpack.c.l.b16 %v1384
      %v1524 = vunpack.c.l.b16 %v1385
      %v1525 = vunpack.c.l.b16 %v1386
      %v1526 = vunpack.c.l.b16 %v1387
      %v1527 = vunpack.c.l.b16 %v1388
      %v1528 = vunpack.c.l.b16 %v1389
      %v1529 = vunpack.c.l.b16 %v1390
      %v1530 = vunpack.c.l.b16 %v1391
      %v1531 = vunpack.c.l.b16 %v1392
      %v1532 = vunpack.c.l.b16 %v1393
      %v1533 = vunpack.c.l.b16 %v1394
      %v1534 = vunpack.c.l.b16 %v1395
      %v1535 = vunpack.c.l.b16 %v1396
      %v1536 = vunpack.c.l.b16 %v1397
      %v1537 = vunpack.c.l.b16 %v1398
      %v1538 = vunpack.c.l.b16 %v1399
      %v1539 = vunpack.c.l.b16 %v1400
      %v1540 = vunpack.c.l.b16 %v1401
      %v1541 = vunpack.c.l.b16 %v1402
      %v1542 = vunpack.c.l.b16 %v1403
      %v1543 = vunpack.c.l.b16 %v1404
      %v1544 = vunpack.c.l.b16 %v1405
      %v1545 = vunpack.c.l.b16 %v1406
      %v1546 = vunpack.c.l.b16 %v1407
      %v1547 = vunpack.c.l.b16 %v1408
      %v1548 = vunpack.c.l.b16 %v1409
      %v1549 = vunpack.c.l.b16 %v1410
      %v1550 = vunpack.c.l.b16 %v1411
      %v1551 = vunpack.c.l.b16 %v1412
      %v1552 = vunpack.c.l.b16 %v1413
      %v1553 = vunpack.c.l.b16 %v1414
      %v1554 = vunpack.c.l.b16 %v1415
      %v1555 = vunpack.c.l.b16 %v1416
      %v1556 = vunpack.c.l.b16 %v1417
      %v1557 = vunpack.c.l.b16 %v1418
      %v1558 = vunpack.c.l.b16 %v1419
      %v1559 = vunpack.c.l.b16 %v1420
      %v1560 = vunpack.c.l.b16 %v1421
      %v1561 = vunpack.c.l.b16 %v1422
      %v1562 = vunpack.c.l.b16 %v1423
      %v1563 = vunpack.c.l.b16 %v1424
      %v1564 = vunpack.c.l.b16 %v1425
      %v1565 = vpack.c.b16 %v1502, %v1501
      %v1566 = vpack.c.b16 %v1504, %v1503
      %v1567 = vpack.c.b16 %v1506, %v1505
      %v1568 = vpack.c.b16 %v1508, %v1507
      %v1569 = vpack.c.b16 %v1510, %v1509
      %v1570 = vpack.c.b16 %v1512, %v1511
      %v1571 = vpack.c.b16 %v1514, %v1513
      %v1572 = vpack.c.b16 %v1516, %v1515
      %v1573 = vpack.c.b16 %v1518, %v1517
      %v1574 = vpack.c.b16 %v1520, %v1519
      %v1575 = vpack.c.b16 %v1522, %v1521
      %v1576 = vpack.c.b16 %v1524, %v1523
      %v1577 = vpack.c.b16 %v1526, %v1525
      %v1578 = vpack.c.b16 %v1528, %v1527
      %v1579 = vpack.c.b16 %v1530, %v1529
      %v1580 = vpack.c.b16 %v1532, %v1531
      %v1581 = vpack.c.b16 %v1534, %v1533
      %v1582 = vpack.c.b16 %v1536, %v1535
      %v1583 = vpack.c.b16 %v1538, %v1537
      %v1584 = vpack.c.b16 %v1540, %v1539
      %v1585 = vpack.c.b16 %v1542, %v1541
      %v1586 = vpack.c.b16 %v1544, %v1543
      %v1587 = vpack.c.b16 %v1546, %v1545
      %v1588 = vpack.c.b16 %v1548, %v1547
      %v1589 = vpack.c.b16 %v1550, %v1549
      %v1590 = vpack.c.b16 %v1552, %v1551
      %v1591 = vpack.c.b16 %v1554, %v1553
      %v1592 = vpack.c.b16 %v1556, %v1555
      %v1593 = vpack.c.b16 %v1558, %v1557
      %v1594 = vpack.c.b16 %v1560, %v1559
      %v1595 = vpack.c.b16 %v1562, %v1561
      %v1596 = vpack.c.b16 %v1564, %v1563
      %1629 = vmatpush.bf16.msra.mxu0 %v1572
      %1630 = vmatpush.bf16.msra.mxu0 %v1571
      %1631 = vmatpush.bf16.msra.mxu0 %v1570
      %1632 = vmatpush.bf16.msra.mxu0 %v1569
      %1633 = vmatpush.bf16.msra.mxu0 %v1568
      %1634 = vmatpush.bf16.msra.mxu0 %v1567
      %1635 = vmatpush.bf16.msra.mxu0 %v1566
      %1636 = vmatpush.bf16.msra.mxu0 %v1565
      %1637 = vmatmul.bf16.gmra.mxu0 %v1429
      %v1638 = vpop.f32.mrf.mxu0
      %v1639 = vadd.f32 0.0, %v1638
      %v1640 = vpop.f32.mrf.mxu0
      %1641 = vdwg.mxu0
      %1642 = vmatpush.bf16.msra.mxu0 %v1580
      %1643 = vmatpush.bf16.msra.mxu0 %v1579
      %1644 = vmatpush.bf16.msra.mxu0 %v1578
      %1645 = vmatpush.bf16.msra.mxu0 %v1577
      %1646 = vmatpush.bf16.msra.mxu0 %v1576
      %1647 = vmatpush.bf16.msra.mxu0 %v1575
      %1648 = vmatpush.bf16.msra.mxu0 %v1574
      %1649 = vmatpush.bf16.msra.mxu0 %v1573
      %1650 = vmatmul.bf16.gmra.mxu0 %v1430
      %v1651 = vpop.f32.mrf.mxu0
      %v1652 = vadd.f32 %v1639, %v1651
      %v1653 = vpop.f32.mrf.mxu0
      %1654 = vdwg.mxu0
      %1655 = vmatpush.bf16.msra.mxu0 %v1588
      %1656 = vmatpush.bf16.msra.mxu0 %v1587
      %1657 = vmatpush.bf16.msra.mxu0 %v1586
      %1658 = vmatpush.bf16.msra.mxu0 %v1585
      %1659 = vmatpush.bf16.msra.mxu0 %v1584
      %1660 = vmatpush.bf16.msra.mxu0 %v1583
      %1661 = vmatpush.bf16.msra.mxu0 %v1582
      %1662 = vmatpush.bf16.msra.mxu0 %v1581
      %1663 = vmatmul.bf16.gmra.mxu0 %v1431
      %v1664 = vpop.f32.mrf.mxu0
      %v1665 = vadd.f32 %v1652, %v1664
      %v1666 = vpop.f32.mrf.mxu0
      %1667 = vdwg.mxu0
      %1668 = vmatpush.bf16.msra.mxu0 %v1596
      %1669 = vmatpush.bf16.msra.mxu0 %v1595
      %1670 = vmatpush.bf16.msra.mxu0 %v1594
      %1671 = vmatpush.bf16.msra.mxu0 %v1593
      %1672 = vmatpush.bf16.msra.mxu0 %v1592
      %1673 = vmatpush.bf16.msra.mxu0 %v1591
      %1674 = vmatpush.bf16.msra.mxu0 %v1590
      %1675 = vmatpush.bf16.msra.mxu0 %v1589
      %1676 = vmatmul.bf16.gmra.mxu0 %v1432
      %v1677 = vpop.f32.mrf.mxu0
      %v1678 = vadd.f32 %v1665, %v1677
      %v1679 = vpop.f32.mrf.mxu0
      %1680 = vdwg.mxu0
      %v1681 = vadd.f32 %v1331, %v1678
      %v1682 = vld [vmem:[%s1332] sm:$0x77]
      %v1683 = vld [vmem:[%s1332 + $0x8] sm:$0x77]
      %v1684 = vld [vmem:[%s1332 + $0x10] sm:$0x77]
      %v1685 = vld [vmem:[%s1332 + $0x18] sm:$0x77]
      %v1690 = vrot.slane %v1682, 2
      %v1691 = vrot.slane %v1683, 4
      %v1692 = vrot.slane %v1683, 6
      %v1693 = vrot.slane %v1684, 2
      %v1694 = vrot.slane %v1685, 4
      %v1695 = vrot.slane %v1685, 6
      %v1698 = vsel %vm222, %v1682, %v1690
      %v1701 = vsel %vm226, %v1691, %v1692
      %v1702 = vsel %vm230, %v1698, %v1701
      %v1703 = vsel %vm324, %v1682, %v1690
      %v1704 = vsel %vm326, %v1692, %v1691
      %v1705 = vsel %vm328, %v1703, %v1704
      %v1707 = vrot.slane %v1705, 2
      %v1710 = vsel %vm222, %v1684, %v1693
      %v1713 = vsel %vm226, %v1694, %v1695
      %v1714 = vsel %vm230, %v1710, %v1713
      %v1715 = vsel %vm324, %v1684, %v1693
      %v1716 = vsel %vm326, %v1695, %v1694
      %v1717 = vsel %vm328, %v1715, %v1716
      %v1719 = vrot.slane %v1717, 2
      %v1720 = vshrl.u32 %v1702, 16
      %v1722 = vrot.slane %v1720, 6
      %v1723 = vshll.u32 %v1702, 16
      %v1725 = vrot.slane %v1723, 7
      %v1726 = vor.u32 %v1722, %v1725
      %v1727 = vrot.slane %v1726, 2
      %v1729 = vshll.u32 %v1707, 16
      %v1731 = vrot.slane %v1729, 7
      %v1732 = vsel %vm350, %v1727, %v1731
      %v1733 = vshrl.u32 %v1714, 16
      %v1735 = vrot.slane %v1733, 6
      %v1736 = vshll.u32 %v1714, 16
      %v1738 = vrot.slane %v1736, 7
      %v1739 = vor.u32 %v1735, %v1738
      %v1740 = vrot.slane %v1739, 2
      %v1742 = vshll.u32 %v1719, 16
      %v1744 = vrot.slane %v1742, 7
      %v1745 = vsel %vm350, %v1740, %v1744
      %s1746 = scalar_lea.vmem %s1, 1024
      %v1747 = vld [vmem:[%s1746] sm:$0xf]
      %v1748 = vld [vmem:[%s1746 + $0x4] sm:$0xf]
      %v1749 = vld [vmem:[%s1746 + $0x8] sm:$0xf]
      %v1750 = vld [vmem:[%s1746 + $0xc] sm:$0xf]
      %v1751 = vld [vmem:[%s1746 + $0x10] sm:$0xf]
      %v1752 = vld [vmem:[%s1746 + $0x14] sm:$0xf]
      %v1753 = vld [vmem:[%s1746 + $0x18] sm:$0xf]
      %v1754 = vld [vmem:[%s1746 + $0x1c] sm:$0xf]
      %v1755 = vld [vmem:[%s1746 + $0x20] sm:$0xf]
      %v1756 = vld [vmem:[%s1746 + $0x24] sm:$0xf]
      %v1757 = vld [vmem:[%s1746 + $0x28] sm:$0xf]
      %v1758 = vld [vmem:[%s1746 + $0x2c] sm:$0xf]
      %v1759 = vld [vmem:[%s1746 + $0x30] sm:$0xf]
      %v1760 = vld [vmem:[%s1746 + $0x34] sm:$0xf]
      %v1761 = vld [vmem:[%s1746 + $0x38] sm:$0xf]
      %v1762 = vld [vmem:[%s1746 + $0x3c] sm:$0xf]
      %v1763 = vld [vmem:[%s1746 + $0x40] sm:$0xf]
      %v1764 = vld [vmem:[%s1746 + $0x44] sm:$0xf]
      %v1765 = vld [vmem:[%s1746 + $0x48] sm:$0xf]
      %v1766 = vld [vmem:[%s1746 + $0x4c] sm:$0xf]
      %v1767 = vld [vmem:[%s1746 + $0x50] sm:$0xf]
      %v1768 = vld [vmem:[%s1746 + $0x54] sm:$0xf]
      %v1769 = vld [vmem:[%s1746 + $0x58] sm:$0xf]
      %v1770 = vld [vmem:[%s1746 + $0x5c] sm:$0xf]
      %v1771 = vld [vmem:[%s1746 + $0x60] sm:$0xf]
      %v1772 = vld [vmem:[%s1746 + $0x64] sm:$0xf]
      %v1773 = vld [vmem:[%s1746 + $0x68] sm:$0xf]
      %v1774 = vld [vmem:[%s1746 + $0x6c] sm:$0xf]
      %v1775 = vld [vmem:[%s1746 + $0x70] sm:$0xf]
      %v1776 = vld [vmem:[%s1746 + $0x74] sm:$0xf]
      %v1777 = vld [vmem:[%s1746 + $0x78] sm:$0xf]
      %v1778 = vld [vmem:[%s1746 + $0x7c] sm:$0xf]
      %v1779 = vld [vmem:[%s1746 + $0x80] sm:$0xf]
      %v1780 = vld [vmem:[%s1746 + $0x84] sm:$0xf]
      %v1781 = vld [vmem:[%s1746 + $0x88] sm:$0xf]
      %v1782 = vld [vmem:[%s1746 + $0x8c] sm:$0xf]
      %v1783 = vld [vmem:[%s1746 + $0x90] sm:$0xf]
      %v1784 = vld [vmem:[%s1746 + $0x94] sm:$0xf]
      %v1785 = vld [vmem:[%s1746 + $0x98] sm:$0xf]
      %v1786 = vld [vmem:[%s1746 + $0x9c] sm:$0xf]
      %v1787 = vld [vmem:[%s1746 + $0xa0] sm:$0xf]
      %v1788 = vld [vmem:[%s1746 + $0xa4] sm:$0xf]
      %v1789 = vld [vmem:[%s1746 + $0xa8] sm:$0xf]
      %v1790 = vld [vmem:[%s1746 + $0xac] sm:$0xf]
      %v1791 = vld [vmem:[%s1746 + $0xb0] sm:$0xf]
      %v1792 = vld [vmem:[%s1746 + $0xb4] sm:$0xf]
      %v1793 = vld [vmem:[%s1746 + $0xb8] sm:$0xf]
      %v1794 = vld [vmem:[%s1746 + $0xbc] sm:$0xf]
      %v1795 = vld [vmem:[%s1746 + $0xc0] sm:$0xf]
      %v1796 = vld [vmem:[%s1746 + $0xc4] sm:$0xf]
      %v1797 = vld [vmem:[%s1746 + $0xc8] sm:$0xf]
      %v1798 = vld [vmem:[%s1746 + $0xcc] sm:$0xf]
      %v1799 = vld [vmem:[%s1746 + $0xd0] sm:$0xf]
      %v1800 = vld [vmem:[%s1746 + $0xd4] sm:$0xf]
      %v1801 = vld [vmem:[%s1746 + $0xd8] sm:$0xf]
      %v1802 = vld [vmem:[%s1746 + $0xdc] sm:$0xf]
      %v1803 = vld [vmem:[%s1746 + $0xe0] sm:$0xf]
      %v1804 = vld [vmem:[%s1746 + $0xe4] sm:$0xf]
      %v1805 = vld [vmem:[%s1746 + $0xe8] sm:$0xf]
      %v1806 = vld [vmem:[%s1746 + $0xec] sm:$0xf]
      %v1807 = vld [vmem:[%s1746 + $0xf0] sm:$0xf]
      %v1808 = vld [vmem:[%s1746 + $0xf4] sm:$0xf]
      %v1809 = vld [vmem:[%s1746 + $0xf8] sm:$0xf]
      %v1810 = vld [vmem:[%s1746 + $0xfc] sm:$0xf]
      %1812 = vst [vmem:[#allocation1] ss:$4 sm:$0xff] %v1732
      %s1814 = scalar_lea.vmem [#allocation1], 1
      %1815 = vst [vmem:[%s1814] ss:$4 sm:$0xff] %v1745
      %v1816 = vld.sshfl [vmem:[#allocation1] sm:$0xff pattern:$0x73625140]
      %v1817 = vld.sshfl [vmem:[#allocation1 + $0x8] sm:$0xff pattern:$0x73625140]
      %v1818 = vld.sshfl [vmem:[#allocation1 + $0x10] sm:$0xff pattern:$0x73625140]
      %v1819 = vld.sshfl [vmem:[#allocation1 + $0x18] sm:$0xff pattern:$0x73625140]
      %v1888 = vunpack.c.l.b16 %v1747
      %v1889 = vunpack.c.l.b16 %v1748
      %v1890 = vunpack.c.l.b16 %v1749
      %v1891 = vunpack.c.l.b16 %v1750
      %v1892 = vunpack.c.l.b16 %v1751
      %v1893 = vunpack.c.l.b16 %v1752
      %v1894 = vunpack.c.l.b16 %v1753
      %v1895 = vunpack.c.l.b16 %v1754
      %v1896 = vunpack.c.l.b16 %v1755
      %v1897 = vunpack.c.l.b16 %v1756
      %v1898 = vunpack.c.l.b16 %v1757
      %v1899 = vunpack.c.l.b16 %v1758
      %v1900 = vunpack.c.l.b16 %v1759
      %v1901 = vunpack.c.l.b16 %v1760
      %v1902 = vunpack.c.l.b16 %v1761
      %v1903 = vunpack.c.l.b16 %v1762
      %v1904 = vunpack.c.l.b16 %v1763
      %v1905 = vunpack.c.l.b16 %v1764
      %v1906 = vunpack.c.l.b16 %v1765
      %v1907 = vunpack.c.l.b16 %v1766
      %v1908 = vunpack.c.l.b16 %v1767
      %v1909 = vunpack.c.l.b16 %v1768
      %v1910 = vunpack.c.l.b16 %v1769
      %v1911 = vunpack.c.l.b16 %v1770
      %v1912 = vunpack.c.l.b16 %v1771
      %v1913 = vunpack.c.l.b16 %v1772
      %v1914 = vunpack.c.l.b16 %v1773
      %v1915 = vunpack.c.l.b16 %v1774
      %v1916 = vunpack.c.l.b16 %v1775
      %v1917 = vunpack.c.l.b16 %v1776
      %v1918 = vunpack.c.l.b16 %v1777
      %v1919 = vunpack.c.l.b16 %v1778
      %v1920 = vunpack.c.l.b16 %v1779
      %v1921 = vunpack.c.l.b16 %v1780
      %v1922 = vunpack.c.l.b16 %v1781
      %v1923 = vunpack.c.l.b16 %v1782
      %v1924 = vunpack.c.l.b16 %v1783
      %v1925 = vunpack.c.l.b16 %v1784
      %v1926 = vunpack.c.l.b16 %v1785
      %v1927 = vunpack.c.l.b16 %v1786
      %v1928 = vunpack.c.l.b16 %v1787
      %v1929 = vunpack.c.l.b16 %v1788
      %v1930 = vunpack.c.l.b16 %v1789
      %v1931 = vunpack.c.l.b16 %v1790
      %v1932 = vunpack.c.l.b16 %v1791
      %v1933 = vunpack.c.l.b16 %v1792
      %v1934 = vunpack.c.l.b16 %v1793
      %v1935 = vunpack.c.l.b16 %v1794
      %v1936 = vunpack.c.l.b16 %v1795
      %v1937 = vunpack.c.l.b16 %v1796
      %v1938 = vunpack.c.l.b16 %v1797
      %v1939 = vunpack.c.l.b16 %v1798
      %v1940 = vunpack.c.l.b16 %v1799
      %v1941 = vunpack.c.l.b16 %v1800
      %v1942 = vunpack.c.l.b16 %v1801
      %v1943 = vunpack.c.l.b16 %v1802
      %v1944 = vunpack.c.l.b16 %v1803
      %v1945 = vunpack.c.l.b16 %v1804
      %v1946 = vunpack.c.l.b16 %v1805
      %v1947 = vunpack.c.l.b16 %v1806
      %v1948 = vunpack.c.l.b16 %v1807
      %v1949 = vunpack.c.l.b16 %v1808
      %v1950 = vunpack.c.l.b16 %v1809
      %v1951 = vunpack.c.l.b16 %v1810
      %v1952 = vpack.c.b16 %v1889, %v1888
      %v1953 = vpack.c.b16 %v1891, %v1890
      %v1954 = vpack.c.b16 %v1893, %v1892
      %v1955 = vpack.c.b16 %v1895, %v1894
      %v1956 = vpack.c.b16 %v1897, %v1896
      %v1957 = vpack.c.b16 %v1899, %v1898
      %v1958 = vpack.c.b16 %v1901, %v1900
      %v1959 = vpack.c.b16 %v1903, %v1902
      %v1960 = vpack.c.b16 %v1905, %v1904
      %v1961 = vpack.c.b16 %v1907, %v1906
      %v1962 = vpack.c.b16 %v1909, %v1908
      %v1963 = vpack.c.b16 %v1911, %v1910
      %v1964 = vpack.c.b16 %v1913, %v1912
      %v1965 = vpack.c.b16 %v1915, %v1914
      %v1966 = vpack.c.b16 %v1917, %v1916
      %v1967 = vpack.c.b16 %v1919, %v1918
      %v1968 = vpack.c.b16 %v1921, %v1920
      %v1969 = vpack.c.b16 %v1923, %v1922
      %v1970 = vpack.c.b16 %v1925, %v1924
      %v1971 = vpack.c.b16 %v1927, %v1926
      %v1972 = vpack.c.b16 %v1929, %v1928
      %v1973 = vpack.c.b16 %v1931, %v1930
      %v1974 = vpack.c.b16 %v1933, %v1932
      %v1975 = vpack.c.b16 %v1935, %v1934
      %v1976 = vpack.c.b16 %v1937, %v1936
      %v1977 = vpack.c.b16 %v1939, %v1938
      %v1978 = vpack.c.b16 %v1941, %v1940
      %v1979 = vpack.c.b16 %v1943, %v1942
      %v1980 = vpack.c.b16 %v1945, %v1944
      %v1981 = vpack.c.b16 %v1947, %v1946
      %v1982 = vpack.c.b16 %v1949, %v1948
      %v1983 = vpack.c.b16 %v1951, %v1950
      %2016 = vmatpush.bf16.msra.mxu0 %v1959
      %2017 = vmatpush.bf16.msra.mxu0 %v1958
      %2018 = vmatpush.bf16.msra.mxu0 %v1957
      %2019 = vmatpush.bf16.msra.mxu0 %v1956
      %2020 = vmatpush.bf16.msra.mxu0 %v1955
      %2021 = vmatpush.bf16.msra.mxu0 %v1954
      %2022 = vmatpush.bf16.msra.mxu0 %v1953
      %2023 = vmatpush.bf16.msra.mxu0 %v1952
      %2024 = vmatmul.bf16.gmra.mxu0 %v1816
      %v2025 = vpop.f32.mrf.mxu0
      %v2026 = vadd.f32 0.0, %v2025
      %v2027 = vpop.f32.mrf.mxu0
      %2028 = vdwg.mxu0
      %2029 = vmatpush.bf16.msra.mxu0 %v1967
      %2030 = vmatpush.bf16.msra.mxu0 %v1966
      %2031 = vmatpush.bf16.msra.mxu0 %v1965
      %2032 = vmatpush.bf16.msra.mxu0 %v1964
      %2033 = vmatpush.bf16.msra.mxu0 %v1963
      %2034 = vmatpush.bf16.msra.mxu0 %v1962
      %2035 = vmatpush.bf16.msra.mxu0 %v1961
      %2036 = vmatpush.bf16.msra.mxu0 %v1960
      %2037 = vmatmul.bf16.gmra.mxu0 %v1817
      %v2038 = vpop.f32.mrf.mxu0
      %v2039 = vadd.f32 %v2026, %v2038
      %v2040 = vpop.f32.mrf.mxu0
      %2041 = vdwg.mxu0
      %2042 = vmatpush.bf16.msra.mxu0 %v1975
      %2043 = vmatpush.bf16.msra.mxu0 %v1974
      %2044 = vmatpush.bf16.msra.mxu0 %v1973
      %2045 = vmatpush.bf16.msra.mxu0 %v1972
      %2046 = vmatpush.bf16.msra.mxu0 %v1971
      %2047 = vmatpush.bf16.msra.mxu0 %v1970
      %2048 = vmatpush.bf16.msra.mxu0 %v1969
      %2049 = vmatpush.bf16.msra.mxu0 %v1968
      %2050 = vmatmul.bf16.gmra.mxu0 %v1818
      %v2051 = vpop.f32.mrf.mxu0
      %v2052 = vadd.f32 %v2039, %v2051
      %v2053 = vpop.f32.mrf.mxu0
      %2054 = vdwg.mxu0
      %2055 = vmatpush.bf16.msra.mxu0 %v1983
      %2056 = vmatpush.bf16.msra.mxu0 %v1982
      %2057 = vmatpush.bf16.msra.mxu0 %v1981
      %2058 = vmatpush.bf16.msra.mxu0 %v1980
      %2059 = vmatpush.bf16.msra.mxu0 %v1979
      %2060 = vmatpush.bf16.msra.mxu0 %v1978
      %2061 = vmatpush.bf16.msra.mxu0 %v1977
      %2062 = vmatpush.bf16.msra.mxu0 %v1976
      %2063 = vmatmul.bf16.gmra.mxu0 %v1819
      %v2064 = vpop.f32.mrf.mxu0
      %v2065 = vadd.f32 %v2052, %v2064
      %v2066 = vpop.f32.mrf.mxu0
      %2067 = vdwg.mxu0
      %v2068 = vadd.f32 %v1681, %v2065
      %v2069 = vld [vmem:[%s1332] sm:$0x66]
      %v2070 = vld [vmem:[%s1332 + $0x8] sm:$0x66]
      %v2071 = vld [vmem:[%s1332 + $0x10] sm:$0x66]
      %v2072 = vld [vmem:[%s1332 + $0x18] sm:$0x66]
      %v2077 = vrot.slane %v2069, 2
      %v2078 = vrot.slane %v2070, 4
      %v2079 = vrot.slane %v2070, 6
      %v2080 = vrot.slane %v2071, 2
      %v2081 = vrot.slane %v2072, 4
      %v2082 = vrot.slane %v2072, 6
      %v2085 = vsel %vm222, %v2069, %v2077
      %v2088 = vsel %vm226, %v2078, %v2079
      %v2089 = vsel %vm230, %v2085, %v2088
      %v2091 = vsel %vm324, %v2069, %v2077
      %v2092 = vsel %vm326, %v2079, %v2078
      %v2093 = vsel %vm328, %v2091, %v2092
      %v2095 = vrot.slane %v2093, 2
      %v2098 = vsel %vm222, %v2071, %v2080
      %v2101 = vsel %vm226, %v2081, %v2082
      %v2102 = vsel %vm230, %v2098, %v2101
      %v2104 = vsel %vm324, %v2071, %v2080
      %v2105 = vsel %vm326, %v2082, %v2081
      %v2106 = vsel %vm328, %v2104, %v2105
      %v2108 = vrot.slane %v2106, 2
      %v2109 = vrot.slane %v2089, 7
      %v2110 = vrot.slane %v2109, 2
      %v2111 = vrot.slane %v2095, 7
      %v2112 = vsel %vm1000, %v2110, %v2111
      %v2113 = vrot.slane %v2102, 7
      %v2114 = vrot.slane %v2113, 2
      %v2115 = vrot.slane %v2108, 7
      %v2116 = vsel %vm1000, %v2114, %v2115
      %s2117 = scalar_lea.vmem %s1, 1280
      %v2118 = vld [vmem:[%s2117] sm:$0xf]
      %v2119 = vld [vmem:[%s2117 + $0x4] sm:$0xf]
      %v2120 = vld [vmem:[%s2117 + $0x8] sm:$0xf]
      %v2121 = vld [vmem:[%s2117 + $0xc] sm:$0xf]
      %v2122 = vld [vmem:[%s2117 + $0x10] sm:$0xf]
      %v2123 = vld [vmem:[%s2117 + $0x14] sm:$0xf]
      %v2124 = vld [vmem:[%s2117 + $0x18] sm:$0xf]
      %v2125 = vld [vmem:[%s2117 + $0x1c] sm:$0xf]
      %v2126 = vld [vmem:[%s2117 + $0x20] sm:$0xf]
      %v2127 = vld [vmem:[%s2117 + $0x24] sm:$0xf]
      %v2128 = vld [vmem:[%s2117 + $0x28] sm:$0xf]
      %v2129 = vld [vmem:[%s2117 + $0x2c] sm:$0xf]
      %v2130 = vld [vmem:[%s2117 + $0x30] sm:$0xf]
      %v2131 = vld [vmem:[%s2117 + $0x34] sm:$0xf]
      %v2132 = vld [vmem:[%s2117 + $0x38] sm:$0xf]
      %v2133 = vld [vmem:[%s2117 + $0x3c] sm:$0xf]
      %v2134 = vld [vmem:[%s2117 + $0x40] sm:$0xf]
      %v2135 = vld [vmem:[%s2117 + $0x44] sm:$0xf]
      %v2136 = vld [vmem:[%s2117 + $0x48] sm:$0xf]
      %v2137 = vld [vmem:[%s2117 + $0x4c] sm:$0xf]
      %v2138 = vld [vmem:[%s2117 + $0x50] sm:$0xf]
      %v2139 = vld [vmem:[%s2117 + $0x54] sm:$0xf]
      %v2140 = vld [vmem:[%s2117 + $0x58] sm:$0xf]
      %v2141 = vld [vmem:[%s2117 + $0x5c] sm:$0xf]
      %v2142 = vld [vmem:[%s2117 + $0x60] sm:$0xf]
      %v2143 = vld [vmem:[%s2117 + $0x64] sm:$0xf]
      %v2144 = vld [vmem:[%s2117 + $0x68] sm:$0xf]
      %v2145 = vld [vmem:[%s2117 + $0x6c] sm:$0xf]
      %v2146 = vld [vmem:[%s2117 + $0x70] sm:$0xf]
      %v2147 = vld [vmem:[%s2117 + $0x74] sm:$0xf]
      %v2148 = vld [vmem:[%s2117 + $0x78] sm:$0xf]
      %v2149 = vld [vmem:[%s2117 + $0x7c] sm:$0xf]
      %v2150 = vld [vmem:[%s2117 + $0x80] sm:$0xf]
      %v2151 = vld [vmem:[%s2117 + $0x84] sm:$0xf]
      %v2152 = vld [vmem:[%s2117 + $0x88] sm:$0xf]
      %v2153 = vld [vmem:[%s2117 + $0x8c] sm:$0xf]
      %v2154 = vld [vmem:[%s2117 + $0x90] sm:$0xf]
      %v2155 = vld [vmem:[%s2117 + $0x94] sm:$0xf]
      %v2156 = vld [vmem:[%s2117 + $0x98] sm:$0xf]
      %v2157 = vld [vmem:[%s2117 + $0x9c] sm:$0xf]
      %v2158 = vld [vmem:[%s2117 + $0xa0] sm:$0xf]
      %v2159 = vld [vmem:[%s2117 + $0xa4] sm:$0xf]
      %v2160 = vld [vmem:[%s2117 + $0xa8] sm:$0xf]
      %v2161 = vld [vmem:[%s2117 + $0xac] sm:$0xf]
      %v2162 = vld [vmem:[%s2117 + $0xb0] sm:$0xf]
      %v2163 = vld [vmem:[%s2117 + $0xb4] sm:$0xf]
      %v2164 = vld [vmem:[%s2117 + $0xb8] sm:$0xf]
      %v2165 = vld [vmem:[%s2117 + $0xbc] sm:$0xf]
      %v2166 = vld [vmem:[%s2117 + $0xc0] sm:$0xf]
      %v2167 = vld [vmem:[%s2117 + $0xc4] sm:$0xf]
      %v2168 = vld [vmem:[%s2117 + $0xc8] sm:$0xf]
      %v2169 = vld [vmem:[%s2117 + $0xcc] sm:$0xf]
      %v2170 = vld [vmem:[%s2117 + $0xd0] sm:$0xf]
      %v2171 = vld [vmem:[%s2117 + $0xd4] sm:$0xf]
      %v2172 = vld [vmem:[%s2117 + $0xd8] sm:$0xf]
      %v2173 = vld [vmem:[%s2117 + $0xdc] sm:$0xf]
      %v2174 = vld [vmem:[%s2117 + $0xe0] sm:$0xf]
      %v2175 = vld [vmem:[%s2117 + $0xe4] sm:$0xf]
      %v2176 = vld [vmem:[%s2117 + $0xe8] sm:$0xf]
      %v2177 = vld [vmem:[%s2117 + $0xec] sm:$0xf]
      %v2178 = vld [vmem:[%s2117 + $0xf0] sm:$0xf]
      %v2179 = vld [vmem:[%s2117 + $0xf4] sm:$0xf]
      %v2180 = vld [vmem:[%s2117 + $0xf8] sm:$0xf]
      %v2181 = vld [vmem:[%s2117 + $0xfc] sm:$0xf]
      %2183 = vst [vmem:[#allocation1] ss:$4 sm:$0xff] %v2112
      %s2185 = scalar_lea.vmem [#allocation1], 1
      %2186 = vst [vmem:[%s2185] ss:$4 sm:$0xff] %v2116
      %v2187 = vld.sshfl [vmem:[#allocation1] sm:$0xff pattern:$0x73625140]
      %v2188 = vld.sshfl [vmem:[#allocation1 + $0x8] sm:$0xff pattern:$0x73625140]
      %v2189 = vld.sshfl [vmem:[#allocation1 + $0x10] sm:$0xff pattern:$0x73625140]
      %v2190 = vld.sshfl [vmem:[#allocation1 + $0x18] sm:$0xff pattern:$0x73625140]
      %v2259 = vunpack.c.l.b16 %v2118
      %v2260 = vunpack.c.l.b16 %v2119
      %v2261 = vunpack.c.l.b16 %v2120
      %v2262 = vunpack.c.l.b16 %v2121
      %v2263 = vunpack.c.l.b16 %v2122
      %v2264 = vunpack.c.l.b16 %v2123
      %v2265 = vunpack.c.l.b16 %v2124
      %v2266 = vunpack.c.l.b16 %v2125
      %v2267 = vunpack.c.l.b16 %v2126
      %v2268 = vunpack.c.l.b16 %v2127
      %v2269 = vunpack.c.l.b16 %v2128
      %v2270 = vunpack.c.l.b16 %v2129
      %v2271 = vunpack.c.l.b16 %v2130
      %v2272 = vunpack.c.l.b16 %v2131
      %v2273 = vunpack.c.l.b16 %v2132
      %v2274 = vunpack.c.l.b16 %v2133
      %v2275 = vunpack.c.l.b16 %v2134
      %v2276 = vunpack.c.l.b16 %v2135
      %v2277 = vunpack.c.l.b16 %v2136
      %v2278 = vunpack.c.l.b16 %v2137
      %v2279 = vunpack.c.l.b16 %v2138
      %v2280 = vunpack.c.l.b16 %v2139
      %v2281 = vunpack.c.l.b16 %v2140
      %v2282 = vunpack.c.l.b16 %v2141
      %v2283 = vunpack.c.l.b16 %v2142
      %v2284 = vunpack.c.l.b16 %v2143
      %v2285 = vunpack.c.l.b16 %v2144
      %v2286 = vunpack.c.l.b16 %v2145
      %v2287 = vunpack.c.l.b16 %v2146
      %v2288 = vunpack.c.l.b16 %v2147
      %v2289 = vunpack.c.l.b16 %v2148
      %v2290 = vunpack.c.l.b16 %v2149
      %v2291 = vunpack.c.l.b16 %v2150
      %v2292 = vunpack.c.l.b16 %v2151
      %v2293 = vunpack.c.l.b16 %v2152
      %v2294 = vunpack.c.l.b16 %v2153
      %v2295 = vunpack.c.l.b16 %v2154
      %v2296 = vunpack.c.l.b16 %v2155
      %v2297 = vunpack.c.l.b16 %v2156
      %v2298 = vunpack.c.l.b16 %v2157
      %v2299 = vunpack.c.l.b16 %v2158
      %v2300 = vunpack.c.l.b16 %v2159
      %v2301 = vunpack.c.l.b16 %v2160
      %v2302 = vunpack.c.l.b16 %v2161
      %v2303 = vunpack.c.l.b16 %v2162
      %v2304 = vunpack.c.l.b16 %v2163
      %v2305 = vunpack.c.l.b16 %v2164
      %v2306 = vunpack.c.l.b16 %v2165
      %v2307 = vunpack.c.l.b16 %v2166
      %v2308 = vunpack.c.l.b16 %v2167
      %v2309 = vunpack.c.l.b16 %v2168
      %v2310 = vunpack.c.l.b16 %v2169
      %v2311 = vunpack.c.l.b16 %v2170
      %v2312 = vunpack.c.l.b16 %v2171
      %v2313 = vunpack.c.l.b16 %v2172
      %v2314 = vunpack.c.l.b16 %v2173
      %v2315 = vunpack.c.l.b16 %v2174
      %v2316 = vunpack.c.l.b16 %v2175
      %v2317 = vunpack.c.l.b16 %v2176
      %v2318 = vunpack.c.l.b16 %v2177
      %v2319 = vunpack.c.l.b16 %v2178
      %v2320 = vunpack.c.l.b16 %v2179
      %v2321 = vunpack.c.l.b16 %v2180
      %v2322 = vunpack.c.l.b16 %v2181
      %v2323 = vpack.c.b16 %v2260, %v2259
      %v2324 = vpack.c.b16 %v2262, %v2261
      %v2325 = vpack.c.b16 %v2264, %v2263
      %v2326 = vpack.c.b16 %v2266, %v2265
      %v2327 = vpack.c.b16 %v2268, %v2267
      %v2328 = vpack.c.b16 %v2270, %v2269
      %v2329 = vpack.c.b16 %v2272, %v2271
      %v2330 = vpack.c.b16 %v2274, %v2273
      %v2331 = vpack.c.b16 %v2276, %v2275
      %v2332 = vpack.c.b16 %v2278, %v2277
      %v2333 = vpack.c.b16 %v2280, %v2279
      %v2334 = vpack.c.b16 %v2282, %v2281
      %v2335 = vpack.c.b16 %v2284, %v2283
      %v2336 = vpack.c.b16 %v2286, %v2285
      %v2337 = vpack.c.b16 %v2288, %v2287
      %v2338 = vpack.c.b16 %v2290, %v2289
      %v2339 = vpack.c.b16 %v2292, %v2291
      %v2340 = vpack.c.b16 %v2294, %v2293
      %v2341 = vpack.c.b16 %v2296, %v2295
      %v2342 = vpack.c.b16 %v2298, %v2297
      %v2343 = vpack.c.b16 %v2300, %v2299
      %v2344 = vpack.c.b16 %v2302, %v2301
      %v2345 = vpack.c.b16 %v2304, %v2303
      %v2346 = vpack.c.b16 %v2306, %v2305
      %v2347 = vpack.c.b16 %v2308, %v2307
      %v2348 = vpack.c.b16 %v2310, %v2309
      %v2349 = vpack.c.b16 %v2312, %v2311
      %v2350 = vpack.c.b16 %v2314, %v2313
      %v2351 = vpack.c.b16 %v2316, %v2315
      %v2352 = vpack.c.b16 %v2318, %v2317
      %v2353 = vpack.c.b16 %v2320, %v2319
      %v2354 = vpack.c.b16 %v2322, %v2321
      %2387 = vmatpush.bf16.msra.mxu0 %v2330
      %2388 = vmatpush.bf16.msra.mxu0 %v2329
      %2389 = vmatpush.bf16.msra.mxu0 %v2328
      %2390 = vmatpush.bf16.msra.mxu0 %v2327
      %2391 = vmatpush.bf16.msra.mxu0 %v2326
      %2392 = vmatpush.bf16.msra.mxu0 %v2325
      %2393 = vmatpush.bf16.msra.mxu0 %v2324
      %2394 = vmatpush.bf16.msra.mxu0 %v2323
      %2395 = vmatmul.bf16.gmra.mxu0 %v2187
      %v2396 = vpop.f32.mrf.mxu0
      %v2397 = vadd.f32 0.0, %v2396
      %v2398 = vpop.f32.mrf.mxu0
      %2399 = vdwg.mxu0
      %2400 = vmatpush.bf16.msra.mxu0 %v2338
      %2401 = vmatpush.bf16.msra.mxu0 %v2337
      %2402 = vmatpush.bf16.msra.mxu0 %v2336
      %2403 = vmatpush.bf16.msra.mxu0 %v2335
      %2404 = vmatpush.bf16.msra.mxu0 %v2334
      %2405 = vmatpush.bf16.msra.mxu0 %v2333
      %2406 = vmatpush.bf16.msra.mxu0 %v2332
      %2407 = vmatpush.bf16.msra.mxu0 %v2331
      %2408 = vmatmul.bf16.gmra.mxu0 %v2188
      %v2409 = vpop.f32.mrf.mxu0
      %v2410 = vadd.f32 %v2397, %v2409
      %v2411 = vpop.f32.mrf.mxu0
      %2412 = vdwg.mxu0
      %2413 = vmatpush.bf16.msra.mxu0 %v2346
      %2414 = vmatpush.bf16.msra.mxu0 %v2345
      %2415 = vmatpush.bf16.msra.mxu0 %v2344
      %2416 = vmatpush.bf16.msra.mxu0 %v2343
      %2417 = vmatpush.bf16.msra.mxu0 %v2342
      %2418 = vmatpush.bf16.msra.mxu0 %v2341
      %2419 = vmatpush.bf16.msra.mxu0 %v2340
      %2420 = vmatpush.bf16.msra.mxu0 %v2339
      %2421 = vmatmul.bf16.gmra.mxu0 %v2189
      %v2422 = vpop.f32.mrf.mxu0
      %v2423 = vadd.f32 %v2410, %v2422
      %v2424 = vpop.f32.mrf.mxu0
      %2425 = vdwg.mxu0
      %2426 = vmatpush.bf16.msra.mxu0 %v2354
      %2427 = vmatpush.bf16.msra.mxu0 %v2353
      %2428 = vmatpush.bf16.msra.mxu0 %v2352
      %2429 = vmatpush.bf16.msra.mxu0 %v2351
      %2430 = vmatpush.bf16.msra.mxu0 %v2350
      %2431 = vmatpush.bf16.msra.mxu0 %v2349
      %2432 = vmatpush.bf16.msra.mxu0 %v2348
      %2433 = vmatpush.bf16.msra.mxu0 %v2347
      %2434 = vmatmul.bf16.gmra.mxu0 %v2190
      %v2435 = vpop.f32.mrf.mxu0
      %v2436 = vadd.f32 %v2423, %v2435
      %v2437 = vpop.f32.mrf.mxu0
      %2438 = vdwg.mxu0
      %v2439 = vadd.f32 %v2068, %v2436
      %s2440 = scalar_lea.vmem %s197, 32
      %v2441 = vld [vmem:[%s2440] sm:$0x33]
      %v2442 = vld [vmem:[%s2440 + $0x8] sm:$0x33]
      %v2443 = vld [vmem:[%s2440 + $0x10] sm:$0x33]
      %v2444 = vld [vmem:[%s2440 + $0x18] sm:$0x33]
      %v2449 = vrot.slane %v2441, 2
      %v2450 = vrot.slane %v2442, 4
      %v2451 = vrot.slane %v2442, 6
      %v2452 = vrot.slane %v2443, 2
      %v2453 = vrot.slane %v2444, 4
      %v2454 = vrot.slane %v2444, 6
      %v2457 = vsel %vm222, %v2441, %v2449
      %v2460 = vsel %vm226, %v2450, %v2451
      %v2461 = vsel %vm230, %v2457, %v2460
      %v2464 = vsel %vm222, %v2443, %v2452
      %v2467 = vsel %vm226, %v2453, %v2454
      %v2468 = vsel %vm230, %v2464, %v2467
      %s2469 = scalar_lea.vmem %s1, 1536
      %v2470 = vld [vmem:[%s2469] sm:$0xf]
      %v2471 = vld [vmem:[%s2469 + $0x4] sm:$0xf]
      %v2472 = vld [vmem:[%s2469 + $0x8] sm:$0xf]
      %v2473 = vld [vmem:[%s2469 + $0xc] sm:$0xf]
      %v2474 = vld [vmem:[%s2469 + $0x10] sm:$0xf]
      %v2475 = vld [vmem:[%s2469 + $0x14] sm:$0xf]
      %v2476 = vld [vmem:[%s2469 + $0x18] sm:$0xf]
      %v2477 = vld [vmem:[%s2469 + $0x1c] sm:$0xf]
      %v2478 = vld [vmem:[%s2469 + $0x20] sm:$0xf]
      %v2479 = vld [vmem:[%s2469 + $0x24] sm:$0xf]
      %v2480 = vld [vmem:[%s2469 + $0x28] sm:$0xf]
      %v2481 = vld [vmem:[%s2469 + $0x2c] sm:$0xf]
      %v2482 = vld [vmem:[%s2469 + $0x30] sm:$0xf]
      %v2483 = vld [vmem:[%s2469 + $0x34] sm:$0xf]
      %v2484 = vld [vmem:[%s2469 + $0x38] sm:$0xf]
      %v2485 = vld [vmem:[%s2469 + $0x3c] sm:$0xf]
      %v2486 = vld [vmem:[%s2469 + $0x40] sm:$0xf]
      %v2487 = vld [vmem:[%s2469 + $0x44] sm:$0xf]
      %v2488 = vld [vmem:[%s2469 + $0x48] sm:$0xf]
      %v2489 = vld [vmem:[%s2469 + $0x4c] sm:$0xf]
      %v2490 = vld [vmem:[%s2469 + $0x50] sm:$0xf]
      %v2491 = vld [vmem:[%s2469 + $0x54] sm:$0xf]
      %v2492 = vld [vmem:[%s2469 + $0x58] sm:$0xf]
      %v2493 = vld [vmem:[%s2469 + $0x5c] sm:$0xf]
      %v2494 = vld [vmem:[%s2469 + $0x60] sm:$0xf]
      %v2495 = vld [vmem:[%s2469 + $0x64] sm:$0xf]
      %v2496 = vld [vmem:[%s2469 + $0x68] sm:$0xf]
      %v2497 = vld [vmem:[%s2469 + $0x6c] sm:$0xf]
      %v2498 = vld [vmem:[%s2469 + $0x70] sm:$0xf]
      %v2499 = vld [vmem:[%s2469 + $0x74] sm:$0xf]
      %v2500 = vld [vmem:[%s2469 + $0x78] sm:$0xf]
      %v2501 = vld [vmem:[%s2469 + $0x7c] sm:$0xf]
      %v2502 = vld [vmem:[%s2469 + $0x80] sm:$0xf]
      %v2503 = vld [vmem:[%s2469 + $0x84] sm:$0xf]
      %v2504 = vld [vmem:[%s2469 + $0x88] sm:$0xf]
      %v2505 = vld [vmem:[%s2469 + $0x8c] sm:$0xf]
      %v2506 = vld [vmem:[%s2469 + $0x90] sm:$0xf]
      %v2507 = vld [vmem:[%s2469 + $0x94] sm:$0xf]
      %v2508 = vld [vmem:[%s2469 + $0x98] sm:$0xf]
      %v2509 = vld [vmem:[%s2469 + $0x9c] sm:$0xf]
      %v2510 = vld [vmem:[%s2469 + $0xa0] sm:$0xf]
      %v2511 = vld [vmem:[%s2469 + $0xa4] sm:$0xf]
      %v2512 = vld [vmem:[%s2469 + $0xa8] sm:$0xf]
      %v2513 = vld [vmem:[%s2469 + $0xac] sm:$0xf]
      %v2514 = vld [vmem:[%s2469 + $0xb0] sm:$0xf]
      %v2515 = vld [vmem:[%s2469 + $0xb4] sm:$0xf]
      %v2516 = vld [vmem:[%s2469 + $0xb8] sm:$0xf]
      %v2517 = vld [vmem:[%s2469 + $0xbc] sm:$0xf]
      %v2518 = vld [vmem:[%s2469 + $0xc0] sm:$0xf]
      %v2519 = vld [vmem:[%s2469 + $0xc4] sm:$0xf]
      %v2520 = vld [vmem:[%s2469 + $0xc8] sm:$0xf]
      %v2521 = vld [vmem:[%s2469 + $0xcc] sm:$0xf]
      %v2522 = vld [vmem:[%s2469 + $0xd0] sm:$0xf]
      %v2523 = vld [vmem:[%s2469 + $0xd4] sm:$0xf]
      %v2524 = vld [vmem:[%s2469 + $0xd8] sm:$0xf]
      %v2525 = vld [vmem:[%s2469 + $0xdc] sm:$0xf]
      %v2526 = vld [vmem:[%s2469 + $0xe0] sm:$0xf]
      %v2527 = vld [vmem:[%s2469 + $0xe4] sm:$0xf]
      %v2528 = vld [vmem:[%s2469 + $0xe8] sm:$0xf]
      %v2529 = vld [vmem:[%s2469 + $0xec] sm:$0xf]
      %v2530 = vld [vmem:[%s2469 + $0xf0] sm:$0xf]
      %v2531 = vld [vmem:[%s2469 + $0xf4] sm:$0xf]
      %v2532 = vld [vmem:[%s2469 + $0xf8] sm:$0xf]
      %v2533 = vld [vmem:[%s2469 + $0xfc] sm:$0xf]
      %2534 = vst [vmem:[#allocation1] ss:$4 sm:$0xff] %v2461
      %s2535 = scalar_lea.vmem [#allocation1], 1
      %2536 = vst [vmem:[%s2535] ss:$4 sm:$0xff] %v2468
      %v2537 = vld.sshfl [vmem:[#allocation1] sm:$0xff pattern:$0x73625140]
      %v2538 = vld.sshfl [vmem:[#allocation1 + $0x8] sm:$0xff pattern:$0x73625140]
      %v2539 = vld.sshfl [vmem:[#allocation1 + $0x10] sm:$0xff pattern:$0x73625140]
      %v2540 = vld.sshfl [vmem:[#allocation1 + $0x18] sm:$0xff pattern:$0x73625140]
      %v2609 = vunpack.c.l.b16 %v2470
      %v2610 = vunpack.c.l.b16 %v2471
      %v2611 = vunpack.c.l.b16 %v2472
      %v2612 = vunpack.c.l.b16 %v2473
      %v2613 = vunpack.c.l.b16 %v2474
      %v2614 = vunpack.c.l.b16 %v2475
      %v2615 = vunpack.c.l.b16 %v2476
      %v2616 = vunpack.c.l.b16 %v2477
      %v2617 = vunpack.c.l.b16 %v2478
      %v2618 = vunpack.c.l.b16 %v2479
      %v2619 = vunpack.c.l.b16 %v2480
      %v2620 = vunpack.c.l.b16 %v2481
      %v2621 = vunpack.c.l.b16 %v2482
      %v2622 = vunpack.c.l.b16 %v2483
      %v2623 = vunpack.c.l.b16 %v2484
      %v2624 = vunpack.c.l.b16 %v2485
      %v2625 = vunpack.c.l.b16 %v2486
      %v2626 = vunpack.c.l.b16 %v2487
      %v2627 = vunpack.c.l.b16 %v2488
      %v2628 = vunpack.c.l.b16 %v2489
      %v2629 = vunpack.c.l.b16 %v2490
      %v2630 = vunpack.c.l.b16 %v2491
      %v2631 = vunpack.c.l.b16 %v2492
      %v2632 = vunpack.c.l.b16 %v2493
      %v2633 = vunpack.c.l.b16 %v2494
      %v2634 = vunpack.c.l.b16 %v2495
      %v2635 = vunpack.c.l.b16 %v2496
      %v2636 = vunpack.c.l.b16 %v2497
      %v2637 = vunpack.c.l.b16 %v2498
      %v2638 = vunpack.c.l.b16 %v2499
      %v2639 = vunpack.c.l.b16 %v2500
      %v2640 = vunpack.c.l.b16 %v2501
      %v2641 = vunpack.c.l.b16 %v2502
      %v2642 = vunpack.c.l.b16 %v2503
      %v2643 = vunpack.c.l.b16 %v2504
      %v2644 = vunpack.c.l.b16 %v2505
      %v2645 = vunpack.c.l.b16 %v2506
      %v2646 = vunpack.c.l.b16 %v2507
      %v2647 = vunpack.c.l.b16 %v2508
      %v2648 = vunpack.c.l.b16 %v2509
      %v2649 = vunpack.c.l.b16 %v2510
      %v2650 = vunpack.c.l.b16 %v2511
      %v2651 = vunpack.c.l.b16 %v2512
      %v2652 = vunpack.c.l.b16 %v2513
      %v2653 = vunpack.c.l.b16 %v2514
      %v2654 = vunpack.c.l.b16 %v2515
      %v2655 = vunpack.c.l.b16 %v2516
      %v2656 = vunpack.c.l.b16 %v2517
      %v2657 = vunpack.c.l.b16 %v2518
      %v2658 = vunpack.c.l.b16 %v2519
      %v2659 = vunpack.c.l.b16 %v2520
      %v2660 = vunpack.c.l.b16 %v2521
      %v2661 = vunpack.c.l.b16 %v2522
      %v2662 = vunpack.c.l.b16 %v2523
      %v2663 = vunpack.c.l.b16 %v2524
      %v2664 = vunpack.c.l.b16 %v2525
      %v2665 = vunpack.c.l.b16 %v2526
      %v2666 = vunpack.c.l.b16 %v2527
      %v2667 = vunpack.c.l.b16 %v2528
      %v2668 = vunpack.c.l.b16 %v2529
      %v2669 = vunpack.c.l.b16 %v2530
      %v2670 = vunpack.c.l.b16 %v2531
      %v2671 = vunpack.c.l.b16 %v2532
      %v2672 = vunpack.c.l.b16 %v2533
      %v2673 = vpack.c.b16 %v2610, %v2609
      %v2674 = vpack.c.b16 %v2612, %v2611
      %v2675 = vpack.c.b16 %v2614, %v2613
      %v2676 = vpack.c.b16 %v2616, %v2615
      %v2677 = vpack.c.b16 %v2618, %v2617
      %v2678 = vpack.c.b16 %v2620, %v2619
      %v2679 = vpack.c.b16 %v2622, %v2621
      %v2680 = vpack.c.b16 %v2624, %v2623
      %v2681 = vpack.c.b16 %v2626, %v2625
      %v2682 = vpack.c.b16 %v2628, %v2627
      %v2683 = vpack.c.b16 %v2630, %v2629
      %v2684 = vpack.c.b16 %v2632, %v2631
      %v2685 = vpack.c.b16 %v2634, %v2633
      %v2686 = vpack.c.b16 %v2636, %v2635
      %v2687 = vpack.c.b16 %v2638, %v2637
      %v2688 = vpack.c.b16 %v2640, %v2639
      %v2689 = vpack.c.b16 %v2642, %v2641
      %v2690 = vpack.c.b16 %v2644, %v2643
      %v2691 = vpack.c.b16 %v2646, %v2645
      %v2692 = vpack.c.b16 %v2648, %v2647
      %v2693 = vpack.c.b16 %v2650, %v2649
      %v2694 = vpack.c.b16 %v2652, %v2651
      %v2695 = vpack.c.b16 %v2654, %v2653
      %v2696 = vpack.c.b16 %v2656, %v2655
      %v2697 = vpack.c.b16 %v2658, %v2657
      %v2698 = vpack.c.b16 %v2660, %v2659
      %v2699 = vpack.c.b16 %v2662, %v2661
      %v2700 = vpack.c.b16 %v2664, %v2663
      %v2701 = vpack.c.b16 %v2666, %v2665
      %v2702 = vpack.c.b16 %v2668, %v2667
      %v2703 = vpack.c.b16 %v2670, %v2669
      %v2704 = vpack.c.b16 %v2672, %v2671
      %2737 = vmatpush.bf16.msra.mxu0 %v2680
      %2738 = vmatpush.bf16.msra.mxu0 %v2679
      %2739 = vmatpush.bf16.msra.mxu0 %v2678
      %2740 = vmatpush.bf16.msra.mxu0 %v2677
      %2741 = vmatpush.bf16.msra.mxu0 %v2676
      %2742 = vmatpush.bf16.msra.mxu0 %v2675
      %2743 = vmatpush.bf16.msra.mxu0 %v2674
      %2744 = vmatpush.bf16.msra.mxu0 %v2673
      %2745 = vmatmul.bf16.gmra.mxu0 %v2537
      %v2746 = vpop.f32.mrf.mxu0
      %v2747 = vadd.f32 0.0, %v2746
      %v2748 = vpop.f32.mrf.mxu0
      %2749 = vdwg.mxu0
      %2750 = vmatpush.bf16.msra.mxu0 %v2688
      %2751 = vmatpush.bf16.msra.mxu0 %v2687
      %2752 = vmatpush.bf16.msra.mxu0 %v2686
      %2753 = vmatpush.bf16.msra.mxu0 %v2685
      %2754 = vmatpush.bf16.msra.mxu0 %v2684
      %2755 = vmatpush.bf16.msra.mxu0 %v2683
      %2756 = vmatpush.bf16.msra.mxu0 %v2682
      %2757 = vmatpush.bf16.msra.mxu0 %v2681
      %2758 = vmatmul.bf16.gmra.mxu0 %v2538
      %v2759 = vpop.f32.mrf.mxu0
      %v2760 = vadd.f32 %v2747, %v2759
      %v2761 = vpop.f32.mrf.mxu0
      %2762 = vdwg.mxu0
      %2763 = vmatpush.bf16.msra.mxu0 %v2696
      %2764 = vmatpush.bf16.msra.mxu0 %v2695
      %2765 = vmatpush.bf16.msra.mxu0 %v2694
      %2766 = vmatpush.bf16.msra.mxu0 %v2693
      %2767 = vmatpush.bf16.msra.mxu0 %v2692
      %2768 = vmatpush.bf16.msra.mxu0 %v2691
      %2769 = vmatpush.bf16.msra.mxu0 %v2690
      %2770 = vmatpush.bf16.msra.mxu0 %v2689
      %2771 = vmatmul.bf16.gmra.mxu0 %v2539
      %v2772 = vpop.f32.mrf.mxu0
      %v2773 = vadd.f32 %v2760, %v2772
      %v2774 = vpop.f32.mrf.mxu0
      %2775 = vdwg.mxu0
      %2776 = vmatpush.bf16.msra.mxu0 %v2704
      %2777 = vmatpush.bf16.msra.mxu0 %v2703
      %2778 = vmatpush.bf16.msra.mxu0 %v2702
      %2779 = vmatpush.bf16.msra.mxu0 %v2701
      %2780 = vmatpush.bf16.msra.mxu0 %v2700
      %2781 = vmatpush.bf16.msra.mxu0 %v2699
      %2782 = vmatpush.bf16.msra.mxu0 %v2698
      %2783 = vmatpush.bf16.msra.mxu0 %v2697
      %2784 = vmatmul.bf16.gmra.mxu0 %v2540
      %v2785 = vpop.f32.mrf.mxu0
      %v2786 = vadd.f32 %v2773, %v2785
      %v2787 = vpop.f32.mrf.mxu0
      %2788 = vdwg.mxu0
      %v2789 = vadd.f32 %v2439, %v2786
      %v2790 = vld [vmem:[%s2440] sm:$0x77]
      %v2791 = vld [vmem:[%s2440 + $0x8] sm:$0x77]
      %v2792 = vld [vmem:[%s2440 + $0x10] sm:$0x77]
      %v2793 = vld [vmem:[%s2440 + $0x18] sm:$0x77]
      %v2798 = vrot.slane %v2790, 2
      %v2799 = vrot.slane %v2791, 4
      %v2800 = vrot.slane %v2791, 6
      %v2801 = vrot.slane %v2792, 2
      %v2802 = vrot.slane %v2793, 4
      %v2803 = vrot.slane %v2793, 6
      %v2806 = vsel %vm222, %v2790, %v2798
      %v2809 = vsel %vm226, %v2799, %v2800
      %v2810 = vsel %vm230, %v2806, %v2809
      %v2811 = vsel %vm324, %v2790, %v2798
      %v2812 = vsel %vm326, %v2800, %v2799
      %v2813 = vsel %vm328, %v2811, %v2812
      %v2815 = vrot.slane %v2813, 2
      %v2818 = vsel %vm222, %v2792, %v2801
      %v2821 = vsel %vm226, %v2802, %v2803
      %v2822 = vsel %vm230, %v2818, %v2821
      %v2823 = vsel %vm324, %v2792, %v2801
      %v2824 = vsel %vm326, %v2803, %v2802
      %v2825 = vsel %vm328, %v2823, %v2824
      %v2827 = vrot.slane %v2825, 2
      %v2828 = vshrl.u32 %v2810, 16
      %v2830 = vrot.slane %v2828, 6
      %v2831 = vshll.u32 %v2810, 16
      %v2833 = vrot.slane %v2831, 7
      %v2834 = vor.u32 %v2830, %v2833
      %v2835 = vrot.slane %v2834, 2
      %v2837 = vshll.u32 %v2815, 16
      %v2839 = vrot.slane %v2837, 7
      %v2840 = vsel %vm350, %v2835, %v2839
      %v2841 = vshrl.u32 %v2822, 16
      %v2843 = vrot.slane %v2841, 6
      %v2844 = vshll.u32 %v2822, 16
      %v2846 = vrot.slane %v2844, 7
      %v2847 = vor.u32 %v2843, %v2846
      %v2848 = vrot.slane %v2847, 2
      %v2850 = vshll.u32 %v2827, 16
      %v2852 = vrot.slane %v2850, 7
      %v2853 = vsel %vm350, %v2848, %v2852
      %s2854 = scalar_lea.vmem %s1, 1792
      %v2855 = vld [vmem:[%s2854] sm:$0xf]
      %v2856 = vld [vmem:[%s2854 + $0x4] sm:$0xf]
      %v2857 = vld [vmem:[%s2854 + $0x8] sm:$0xf]
      %v2858 = vld [vmem:[%s2854 + $0xc] sm:$0xf]
      %v2859 = vld [vmem:[%s2854 + $0x10] sm:$0xf]
      %v2860 = vld [vmem:[%s2854 + $0x14] sm:$0xf]
      %v2861 = vld [vmem:[%s2854 + $0x18] sm:$0xf]
      %v2862 = vld [vmem:[%s2854 + $0x1c] sm:$0xf]
      %v2863 = vld [vmem:[%s2854 + $0x20] sm:$0xf]
      %v2864 = vld [vmem:[%s2854 + $0x24] sm:$0xf]
      %v2865 = vld [vmem:[%s2854 + $0x28] sm:$0xf]
      %v2866 = vld [vmem:[%s2854 + $0x2c] sm:$0xf]
      %v2867 = vld [vmem:[%s2854 + $0x30] sm:$0xf]
      %v2868 = vld [vmem:[%s2854 + $0x34] sm:$0xf]
      %v2869 = vld [vmem:[%s2854 + $0x38] sm:$0xf]
      %v2870 = vld [vmem:[%s2854 + $0x3c] sm:$0xf]
      %v2871 = vld [vmem:[%s2854 + $0x40] sm:$0xf]
      %v2872 = vld [vmem:[%s2854 + $0x44] sm:$0xf]
      %v2873 = vld [vmem:[%s2854 + $0x48] sm:$0xf]
      %v2874 = vld [vmem:[%s2854 + $0x4c] sm:$0xf]
      %v2875 = vld [vmem:[%s2854 + $0x50] sm:$0xf]
      %v2876 = vld [vmem:[%s2854 + $0x54] sm:$0xf]
      %v2877 = vld [vmem:[%s2854 + $0x58] sm:$0xf]
      %v2878 = vld [vmem:[%s2854 + $0x5c] sm:$0xf]
      %v2879 = vld [vmem:[%s2854 + $0x60] sm:$0xf]
      %v2880 = vld [vmem:[%s2854 + $0x64] sm:$0xf]
      %v2881 = vld [vmem:[%s2854 + $0x68] sm:$0xf]
      %v2882 = vld [vmem:[%s2854 + $0x6c] sm:$0xf]
      %v2883 = vld [vmem:[%s2854 + $0x70] sm:$0xf]
      %v2884 = vld [vmem:[%s2854 + $0x74] sm:$0xf]
      %v2885 = vld [vmem:[%s2854 + $0x78] sm:$0xf]
      %v2886 = vld [vmem:[%s2854 + $0x7c] sm:$0xf]
      %v2887 = vld [vmem:[%s2854 + $0x80] sm:$0xf]
      %v2888 = vld [vmem:[%s2854 + $0x84] sm:$0xf]
      %v2889 = vld [vmem:[%s2854 + $0x88] sm:$0xf]
      %v2890 = vld [vmem:[%s2854 + $0x8c] sm:$0xf]
      %v2891 = vld [vmem:[%s2854 + $0x90] sm:$0xf]
      %v2892 = vld [vmem:[%s2854 + $0x94] sm:$0xf]
      %v2893 = vld [vmem:[%s2854 + $0x98] sm:$0xf]
      %v2894 = vld [vmem:[%s2854 + $0x9c] sm:$0xf]
      %v2895 = vld [vmem:[%s2854 + $0xa0] sm:$0xf]
      %v2896 = vld [vmem:[%s2854 + $0xa4] sm:$0xf]
      %v2897 = vld [vmem:[%s2854 + $0xa8] sm:$0xf]
      %v2898 = vld [vmem:[%s2854 + $0xac] sm:$0xf]
      %v2899 = vld [vmem:[%s2854 + $0xb0] sm:$0xf]
      %v2900 = vld [vmem:[%s2854 + $0xb4] sm:$0xf]
      %v2901 = vld [vmem:[%s2854 + $0xb8] sm:$0xf]
      %v2902 = vld [vmem:[%s2854 + $0xbc] sm:$0xf]
      %v2903 = vld [vmem:[%s2854 + $0xc0] sm:$0xf]
      %v2904 = vld [vmem:[%s2854 + $0xc4] sm:$0xf]
      %v2905 = vld [vmem:[%s2854 + $0xc8] sm:$0xf]
      %v2906 = vld [vmem:[%s2854 + $0xcc] sm:$0xf]
      %v2907 = vld [vmem:[%s2854 + $0xd0] sm:$0xf]
      %v2908 = vld [vmem:[%s2854 + $0xd4] sm:$0xf]
      %v2909 = vld [vmem:[%s2854 + $0xd8] sm:$0xf]
      %v2910 = vld [vmem:[%s2854 + $0xdc] sm:$0xf]
      %v2911 = vld [vmem:[%s2854 + $0xe0] sm:$0xf]
      %v2912 = vld [vmem:[%s2854 + $0xe4] sm:$0xf]
      %v2913 = vld [vmem:[%s2854 + $0xe8] sm:$0xf]
      %v2914 = vld [vmem:[%s2854 + $0xec] sm:$0xf]
      %v2915 = vld [vmem:[%s2854 + $0xf0] sm:$0xf]
      %v2916 = vld [vmem:[%s2854 + $0xf4] sm:$0xf]
      %v2917 = vld [vmem:[%s2854 + $0xf8] sm:$0xf]
      %v2918 = vld [vmem:[%s2854 + $0xfc] sm:$0xf]
      %2920 = vst [vmem:[#allocation1] ss:$4 sm:$0xff] %v2840
      %s2922 = scalar_lea.vmem [#allocation1], 1
      %2923 = vst [vmem:[%s2922] ss:$4 sm:$0xff] %v2853
      %v2924 = vld.sshfl [vmem:[#allocation1] sm:$0xff pattern:$0x73625140]
      %v2925 = vld.sshfl [vmem:[#allocation1 + $0x8] sm:$0xff pattern:$0x73625140]
      %v2926 = vld.sshfl [vmem:[#allocation1 + $0x10] sm:$0xff pattern:$0x73625140]
      %v2927 = vld.sshfl [vmem:[#allocation1 + $0x18] sm:$0xff pattern:$0x73625140]
      %v2996 = vunpack.c.l.b16 %v2855
      %v2997 = vunpack.c.l.b16 %v2856
      %v2998 = vunpack.c.l.b16 %v2857
      %v2999 = vunpack.c.l.b16 %v2858
      %v3000 = vunpack.c.l.b16 %v2859
      %v3001 = vunpack.c.l.b16 %v2860
      %v3002 = vunpack.c.l.b16 %v2861
      %v3003 = vunpack.c.l.b16 %v2862
      %v3004 = vunpack.c.l.b16 %v2863
      %v3005 = vunpack.c.l.b16 %v2864
      %v3006 = vunpack.c.l.b16 %v2865
      %v3007 = vunpack.c.l.b16 %v2866
      %v3008 = vunpack.c.l.b16 %v2867
      %v3009 = vunpack.c.l.b16 %v2868
      %v3010 = vunpack.c.l.b16 %v2869
      %v3011 = vunpack.c.l.b16 %v2870
      %v3012 = vunpack.c.l.b16 %v2871
      %v3013 = vunpack.c.l.b16 %v2872
      %v3014 = vunpack.c.l.b16 %v2873
      %v3015 = vunpack.c.l.b16 %v2874
      %v3016 = vunpack.c.l.b16 %v2875
      %v3017 = vunpack.c.l.b16 %v2876
      %v3018 = vunpack.c.l.b16 %v2877
      %v3019 = vunpack.c.l.b16 %v2878
      %v3020 = vunpack.c.l.b16 %v2879
      %v3021 = vunpack.c.l.b16 %v2880
      %v3022 = vunpack.c.l.b16 %v2881
      %v3023 = vunpack.c.l.b16 %v2882
      %v3024 = vunpack.c.l.b16 %v2883
      %v3025 = vunpack.c.l.b16 %v2884
      %v3026 = vunpack.c.l.b16 %v2885
      %v3027 = vunpack.c.l.b16 %v2886
      %v3028 = vunpack.c.l.b16 %v2887
      %v3029 = vunpack.c.l.b16 %v2888
      %v3030 = vunpack.c.l.b16 %v2889
      %v3031 = vunpack.c.l.b16 %v2890
      %v3032 = vunpack.c.l.b16 %v2891
      %v3033 = vunpack.c.l.b16 %v2892
      %v3034 = vunpack.c.l.b16 %v2893
      %v3035 = vunpack.c.l.b16 %v2894
      %v3036 = vunpack.c.l.b16 %v2895
      %v3037 = vunpack.c.l.b16 %v2896
      %v3038 = vunpack.c.l.b16 %v2897
      %v3039 = vunpack.c.l.b16 %v2898
      %v3040 = vunpack.c.l.b16 %v2899
      %v3041 = vunpack.c.l.b16 %v2900
      %v3042 = vunpack.c.l.b16 %v2901
      %v3043 = vunpack.c.l.b16 %v2902
      %v3044 = vunpack.c.l.b16 %v2903
      %v3045 = vunpack.c.l.b16 %v2904
      %v3046 = vunpack.c.l.b16 %v2905
      %v3047 = vunpack.c.l.b16 %v2906
      %v3048 = vunpack.c.l.b16 %v2907
      %v3049 = vunpack.c.l.b16 %v2908
      %v3050 = vunpack.c.l.b16 %v2909
      %v3051 = vunpack.c.l.b16 %v2910
      %v3052 = vunpack.c.l.b16 %v2911
      %v3053 = vunpack.c.l.b16 %v2912
      %v3054 = vunpack.c.l.b16 %v2913
      %v3055 = vunpack.c.l.b16 %v2914
      %v3056 = vunpack.c.l.b16 %v2915
      %v3057 = vunpack.c.l.b16 %v2916
      %v3058 = vunpack.c.l.b16 %v2917
      %v3059 = vunpack.c.l.b16 %v2918
      %v3060 = vpack.c.b16 %v2997, %v2996
      %v3061 = vpack.c.b16 %v2999, %v2998
      %v3062 = vpack.c.b16 %v3001, %v3000
      %v3063 = vpack.c.b16 %v3003, %v3002
      %v3064 = vpack.c.b16 %v3005, %v3004
      %v3065 = vpack.c.b16 %v3007, %v3006
      %v3066 = vpack.c.b16 %v3009, %v3008
      %v3067 = vpack.c.b16 %v3011, %v3010
      %v3068 = vpack.c.b16 %v3013, %v3012
      %v3069 = vpack.c.b16 %v3015, %v3014
      %v3070 = vpack.c.b16 %v3017, %v3016
      %v3071 = vpack.c.b16 %v3019, %v3018
      %v3072 = vpack.c.b16 %v3021, %v3020
      %v3073 = vpack.c.b16 %v3023, %v3022
      %v3074 = vpack.c.b16 %v3025, %v3024
      %v3075 = vpack.c.b16 %v3027, %v3026
      %v3076 = vpack.c.b16 %v3029, %v3028
      %v3077 = vpack.c.b16 %v3031, %v3030
      %v3078 = vpack.c.b16 %v3033, %v3032
      %v3079 = vpack.c.b16 %v3035, %v3034
      %v3080 = vpack.c.b16 %v3037, %v3036
      %v3081 = vpack.c.b16 %v3039, %v3038
      %v3082 = vpack.c.b16 %v3041, %v3040
      %v3083 = vpack.c.b16 %v3043, %v3042
      %v3084 = vpack.c.b16 %v3045, %v3044
      %v3085 = vpack.c.b16 %v3047, %v3046
      %v3086 = vpack.c.b16 %v3049, %v3048
      %v3087 = vpack.c.b16 %v3051, %v3050
      %v3088 = vpack.c.b16 %v3053, %v3052
      %v3089 = vpack.c.b16 %v3055, %v3054
      %v3090 = vpack.c.b16 %v3057, %v3056
      %v3091 = vpack.c.b16 %v3059, %v3058
      %3124 = vmatpush.bf16.msra.mxu0 %v3067
      %3125 = vmatpush.bf16.msra.mxu0 %v3066
      %3126 = vmatpush.bf16.msra.mxu0 %v3065
      %3127 = vmatpush.bf16.msra.mxu0 %v3064
      %3128 = vmatpush.bf16.msra.mxu0 %v3063
      %3129 = vmatpush.bf16.msra.mxu0 %v3062
      %3130 = vmatpush.bf16.msra.mxu0 %v3061
      %3131 = vmatpush.bf16.msra.mxu0 %v3060
      %3132 = vmatmul.bf16.gmra.mxu0 %v2924
      %v3133 = vpop.f32.mrf.mxu0
      %v3134 = vadd.f32 0.0, %v3133
      %v3135 = vpop.f32.mrf.mxu0
      %3136 = vdwg.mxu0
      %3137 = vmatpush.bf16.msra.mxu0 %v3075
      %3138 = vmatpush.bf16.msra.mxu0 %v3074
      %3139 = vmatpush.bf16.msra.mxu0 %v3073
      %3140 = vmatpush.bf16.msra.mxu0 %v3072
      %3141 = vmatpush.bf16.msra.mxu0 %v3071
      %3142 = vmatpush.bf16.msra.mxu0 %v3070
      %3143 = vmatpush.bf16.msra.mxu0 %v3069
      %3144 = vmatpush.bf16.msra.mxu0 %v3068
      %3145 = vmatmul.bf16.gmra.mxu0 %v2925
      %v3146 = vpop.f32.mrf.mxu0
      %v3147 = vadd.f32 %v3134, %v3146
      %v3148 = vpop.f32.mrf.mxu0
      %3149 = vdwg.mxu0
      %3150 = vmatpush.bf16.msra.mxu0 %v3083
      %3151 = vmatpush.bf16.msra.mxu0 %v3082
      %3152 = vmatpush.bf16.msra.mxu0 %v3081
      %3153 = vmatpush.bf16.msra.mxu0 %v3080
      %3154 = vmatpush.bf16.msra.mxu0 %v3079
      %3155 = vmatpush.bf16.msra.mxu0 %v3078
      %3156 = vmatpush.bf16.msra.mxu0 %v3077
      %3157 = vmatpush.bf16.msra.mxu0 %v3076
      %3158 = vmatmul.bf16.gmra.mxu0 %v2926
      %v3159 = vpop.f32.mrf.mxu0
      %v3160 = vadd.f32 %v3147, %v3159
      %v3161 = vpop.f32.mrf.mxu0
      %3162 = vdwg.mxu0
      %3163 = vmatpush.bf16.msra.mxu0 %v3091
      %3164 = vmatpush.bf16.msra.mxu0 %v3090
      %3165 = vmatpush.bf16.msra.mxu0 %v3089
      %3166 = vmatpush.bf16.msra.mxu0 %v3088
      %3167 = vmatpush.bf16.msra.mxu0 %v3087
      %3168 = vmatpush.bf16.msra.mxu0 %v3086
      %3169 = vmatpush.bf16.msra.mxu0 %v3085
      %3170 = vmatpush.bf16.msra.mxu0 %v3084
      %3171 = vmatmul.bf16.gmra.mxu0 %v2927
      %v3172 = vpop.f32.mrf.mxu0
      %v3173 = vadd.f32 %v3160, %v3172
      %v3174 = vpop.f32.mrf.mxu0
      %3175 = vdwg.mxu0
      %v3176 = vadd.f32 %v2789, %v3173
      %v3177 = vld [vmem:[%s2440] sm:$0x66]
      %v3178 = vld [vmem:[%s2440 + $0x8] sm:$0x66]
      %v3179 = vld [vmem:[%s2440 + $0x10] sm:$0x66]
      %v3180 = vld [vmem:[%s2440 + $0x18] sm:$0x66]
      %v3185 = vrot.slane %v3177, 2
      %v3186 = vrot.slane %v3178, 4
      %v3187 = vrot.slane %v3178, 6
      %v3188 = vrot.slane %v3179, 2
      %v3189 = vrot.slane %v3180, 4
      %v3190 = vrot.slane %v3180, 6
      %v3193 = vsel %vm222, %v3177, %v3185
      %v3196 = vsel %vm226, %v3186, %v3187
      %v3197 = vsel %vm230, %v3193, %v3196
      %v3199 = vsel %vm324, %v3177, %v3185
      %v3200 = vsel %vm326, %v3187, %v3186
      %v3201 = vsel %vm328, %v3199, %v3200
      %v3203 = vrot.slane %v3201, 2
      %v3206 = vsel %vm222, %v3179, %v3188
      %v3209 = vsel %vm226, %v3189, %v3190
      %v3210 = vsel %vm230, %v3206, %v3209
      %v3212 = vsel %vm324, %v3179, %v3188
      %v3213 = vsel %vm326, %v3190, %v3189
      %v3214 = vsel %vm328, %v3212, %v3213
      %v3216 = vrot.slane %v3214, 2
      %v3217 = vrot.slane %v3197, 7
      %v3218 = vrot.slane %v3217, 2
      %v3219 = vrot.slane %v3203, 7
      %v3220 = vsel %vm1000, %v3218, %v3219
      %v3221 = vrot.slane %v3210, 7
      %v3222 = vrot.slane %v3221, 2
      %v3223 = vrot.slane %v3216, 7
      %v3224 = vsel %vm1000, %v3222, %v3223
      %s3225 = scalar_lea.vmem %s1, 2048
      %v3226 = vld [vmem:[%s3225] sm:$0xf]
      %v3227 = vld [vmem:[%s3225 + $0x4] sm:$0xf]
      %v3228 = vld [vmem:[%s3225 + $0x8] sm:$0xf]
      %v3229 = vld [vmem:[%s3225 + $0xc] sm:$0xf]
      %v3230 = vld [vmem:[%s3225 + $0x10] sm:$0xf]
      %v3231 = vld [vmem:[%s3225 + $0x14] sm:$0xf]
      %v3232 = vld [vmem:[%s3225 + $0x18] sm:$0xf]
      %v3233 = vld [vmem:[%s3225 + $0x1c] sm:$0xf]
      %v3234 = vld [vmem:[%s3225 + $0x20] sm:$0xf]
      %v3235 = vld [vmem:[%s3225 + $0x24] sm:$0xf]
      %v3236 = vld [vmem:[%s3225 + $0x28] sm:$0xf]
      %v3237 = vld [vmem:[%s3225 + $0x2c] sm:$0xf]
      %v3238 = vld [vmem:[%s3225 + $0x30] sm:$0xf]
      %v3239 = vld [vmem:[%s3225 + $0x34] sm:$0xf]
      %v3240 = vld [vmem:[%s3225 + $0x38] sm:$0xf]
      %v3241 = vld [vmem:[%s3225 + $0x3c] sm:$0xf]
      %v3242 = vld [vmem:[%s3225 + $0x40] sm:$0xf]
      %v3243 = vld [vmem:[%s3225 + $0x44] sm:$0xf]
      %v3244 = vld [vmem:[%s3225 + $0x48] sm:$0xf]
      %v3245 = vld [vmem:[%s3225 + $0x4c] sm:$0xf]
      %v3246 = vld [vmem:[%s3225 + $0x50] sm:$0xf]
      %v3247 = vld [vmem:[%s3225 + $0x54] sm:$0xf]
      %v3248 = vld [vmem:[%s3225 + $0x58] sm:$0xf]
      %v3249 = vld [vmem:[%s3225 + $0x5c] sm:$0xf]
      %v3250 = vld [vmem:[%s3225 + $0x60] sm:$0xf]
      %v3251 = vld [vmem:[%s3225 + $0x64] sm:$0xf]
      %v3252 = vld [vmem:[%s3225 + $0x68] sm:$0xf]
      %v3253 = vld [vmem:[%s3225 + $0x6c] sm:$0xf]
      %v3254 = vld [vmem:[%s3225 + $0x70] sm:$0xf]
      %v3255 = vld [vmem:[%s3225 + $0x74] sm:$0xf]
      %v3256 = vld [vmem:[%s3225 + $0x78] sm:$0xf]
      %v3257 = vld [vmem:[%s3225 + $0x7c] sm:$0xf]
      %v3258 = vld [vmem:[%s3225 + $0x80] sm:$0xf]
      %v3259 = vld [vmem:[%s3225 + $0x84] sm:$0xf]
      %v3260 = vld [vmem:[%s3225 + $0x88] sm:$0xf]
      %v3261 = vld [vmem:[%s3225 + $0x8c] sm:$0xf]
      %v3262 = vld [vmem:[%s3225 + $0x90] sm:$0xf]
      %v3263 = vld [vmem:[%s3225 + $0x94] sm:$0xf]
      %v3264 = vld [vmem:[%s3225 + $0x98] sm:$0xf]
      %v3265 = vld [vmem:[%s3225 + $0x9c] sm:$0xf]
      %v3266 = vld [vmem:[%s3225 + $0xa0] sm:$0xf]
      %v3267 = vld [vmem:[%s3225 + $0xa4] sm:$0xf]
      %v3268 = vld [vmem:[%s3225 + $0xa8] sm:$0xf]
      %v3269 = vld [vmem:[%s3225 + $0xac] sm:$0xf]
      %v3270 = vld [vmem:[%s3225 + $0xb0] sm:$0xf]
      %v3271 = vld [vmem:[%s3225 + $0xb4] sm:$0xf]
      %v3272 = vld [vmem:[%s3225 + $0xb8] sm:$0xf]
      %v3273 = vld [vmem:[%s3225 + $0xbc] sm:$0xf]
      %v3274 = vld [vmem:[%s3225 + $0xc0] sm:$0xf]
      %v3275 = vld [vmem:[%s3225 + $0xc4] sm:$0xf]
      %v3276 = vld [vmem:[%s3225 + $0xc8] sm:$0xf]
      %v3277 = vld [vmem:[%s3225 + $0xcc] sm:$0xf]
      %v3278 = vld [vmem:[%s3225 + $0xd0] sm:$0xf]
      %v3279 = vld [vmem:[%s3225 + $0xd4] sm:$0xf]
      %v3280 = vld [vmem:[%s3225 + $0xd8] sm:$0xf]
      %v3281 = vld [vmem:[%s3225 + $0xdc] sm:$0xf]
      %v3282 = vld [vmem:[%s3225 + $0xe0] sm:$0xf]
      %v3283 = vld [vmem:[%s3225 + $0xe4] sm:$0xf]
      %v3284 = vld [vmem:[%s3225 + $0xe8] sm:$0xf]
      %v3285 = vld [vmem:[%s3225 + $0xec] sm:$0xf]
      %v3286 = vld [vmem:[%s3225 + $0xf0] sm:$0xf]
      %v3287 = vld [vmem:[%s3225 + $0xf4] sm:$0xf]
      %v3288 = vld [vmem:[%s3225 + $0xf8] sm:$0xf]
      %v3289 = vld [vmem:[%s3225 + $0xfc] sm:$0xf]
      %3291 = vst [vmem:[#allocation1] ss:$4 sm:$0xff] %v3220
      %s3293 = scalar_lea.vmem [#allocation1], 1
      %3294 = vst [vmem:[%s3293] ss:$4 sm:$0xff] %v3224
      %v3295 = vld.sshfl [vmem:[#allocation1] sm:$0xff pattern:$0x73625140]
      %v3296 = vld.sshfl [vmem:[#allocation1 + $0x8] sm:$0xff pattern:$0x73625140]
      %v3297 = vld.sshfl [vmem:[#allocation1 + $0x10] sm:$0xff pattern:$0x73625140]
      %v3298 = vld.sshfl [vmem:[#allocation1 + $0x18] sm:$0xff pattern:$0x73625140]
      %v3367 = vunpack.c.l.b16 %v3226
      %v3368 = vunpack.c.l.b16 %v3227
      %v3369 = vunpack.c.l.b16 %v3228
      %v3370 = vunpack.c.l.b16 %v3229
      %v3371 = vunpack.c.l.b16 %v3230
      %v3372 = vunpack.c.l.b16 %v3231
      %v3373 = vunpack.c.l.b16 %v3232
      %v3374 = vunpack.c.l.b16 %v3233
      %v3375 = vunpack.c.l.b16 %v3234
      %v3376 = vunpack.c.l.b16 %v3235
      %v3377 = vunpack.c.l.b16 %v3236
      %v3378 = vunpack.c.l.b16 %v3237
      %v3379 = vunpack.c.l.b16 %v3238
      %v3380 = vunpack.c.l.b16 %v3239
      %v3381 = vunpack.c.l.b16 %v3240
      %v3382 = vunpack.c.l.b16 %v3241
      %v3383 = vunpack.c.l.b16 %v3242
      %v3384 = vunpack.c.l.b16 %v3243
      %v3385 = vunpack.c.l.b16 %v3244
      %v3386 = vunpack.c.l.b16 %v3245
      %v3387 = vunpack.c.l.b16 %v3246
      %v3388 = vunpack.c.l.b16 %v3247
      %v3389 = vunpack.c.l.b16 %v3248
      %v3390 = vunpack.c.l.b16 %v3249
      %v3391 = vunpack.c.l.b16 %v3250
      %v3392 = vunpack.c.l.b16 %v3251
      %v3393 = vunpack.c.l.b16 %v3252
      %v3394 = vunpack.c.l.b16 %v3253
      %v3395 = vunpack.c.l.b16 %v3254
      %v3396 = vunpack.c.l.b16 %v3255
      %v3397 = vunpack.c.l.b16 %v3256
      %v3398 = vunpack.c.l.b16 %v3257
      %v3399 = vunpack.c.l.b16 %v3258
      %v3400 = vunpack.c.l.b16 %v3259
      %v3401 = vunpack.c.l.b16 %v3260
      %v3402 = vunpack.c.l.b16 %v3261
      %v3403 = vunpack.c.l.b16 %v3262
      %v3404 = vunpack.c.l.b16 %v3263
      %v3405 = vunpack.c.l.b16 %v3264
      %v3406 = vunpack.c.l.b16 %v3265
      %v3407 = vunpack.c.l.b16 %v3266
      %v3408 = vunpack.c.l.b16 %v3267
      %v3409 = vunpack.c.l.b16 %v3268
      %v3410 = vunpack.c.l.b16 %v3269
      %v3411 = vunpack.c.l.b16 %v3270
      %v3412 = vunpack.c.l.b16 %v3271
      %v3413 = vunpack.c.l.b16 %v3272
      %v3414 = vunpack.c.l.b16 %v3273
      %v3415 = vunpack.c.l.b16 %v3274
      %v3416 = vunpack.c.l.b16 %v3275
      %v3417 = vunpack.c.l.b16 %v3276
      %v3418 = vunpack.c.l.b16 %v3277
      %v3419 = vunpack.c.l.b16 %v3278
      %v3420 = vunpack.c.l.b16 %v3279
      %v3421 = vunpack.c.l.b16 %v3280
      %v3422 = vunpack.c.l.b16 %v3281
      %v3423 = vunpack.c.l.b16 %v3282
      %v3424 = vunpack.c.l.b16 %v3283
      %v3425 = vunpack.c.l.b16 %v3284
      %v3426 = vunpack.c.l.b16 %v3285
      %v3427 = vunpack.c.l.b16 %v3286
      %v3428 = vunpack.c.l.b16 %v3287
      %v3429 = vunpack.c.l.b16 %v3288
      %v3430 = vunpack.c.l.b16 %v3289
      %v3431 = vpack.c.b16 %v3368, %v3367
      %v3432 = vpack.c.b16 %v3370, %v3369
      %v3433 = vpack.c.b16 %v3372, %v3371
      %v3434 = vpack.c.b16 %v3374, %v3373
      %v3435 = vpack.c.b16 %v3376, %v3375
      %v3436 = vpack.c.b16 %v3378, %v3377
      %v3437 = vpack.c.b16 %v3380, %v3379
      %v3438 = vpack.c.b16 %v3382, %v3381
      %v3439 = vpack.c.b16 %v3384, %v3383
      %v3440 = vpack.c.b16 %v3386, %v3385
      %v3441 = vpack.c.b16 %v3388, %v3387
      %v3442 = vpack.c.b16 %v3390, %v3389
      %v3443 = vpack.c.b16 %v3392, %v3391
      %v3444 = vpack.c.b16 %v3394, %v3393
      %v3445 = vpack.c.b16 %v3396, %v3395
      %v3446 = vpack.c.b16 %v3398, %v3397
      %v3447 = vpack.c.b16 %v3400, %v3399
      %v3448 = vpack.c.b16 %v3402, %v3401
      %v3449 = vpack.c.b16 %v3404, %v3403
      %v3450 = vpack.c.b16 %v3406, %v3405
      %v3451 = vpack.c.b16 %v3408, %v3407
      %v3452 = vpack.c.b16 %v3410, %v3409
      %v3453 = vpack.c.b16 %v3412, %v3411
      %v3454 = vpack.c.b16 %v3414, %v3413
      %v3455 = vpack.c.b16 %v3416, %v3415
      %v3456 = vpack.c.b16 %v3418, %v3417
      %v3457 = vpack.c.b16 %v3420, %v3419
      %v3458 = vpack.c.b16 %v3422, %v3421
      %v3459 = vpack.c.b16 %v3424, %v3423
      %v3460 = vpack.c.b16 %v3426, %v3425
      %v3461 = vpack.c.b16 %v3428, %v3427
      %v3462 = vpack.c.b16 %v3430, %v3429
      %3495 = vmatpush.bf16.msra.mxu0 %v3438
      %3496 = vmatpush.bf16.msra.mxu0 %v3437
      %3497 = vmatpush.bf16.msra.mxu0 %v3436
      %3498 = vmatpush.bf16.msra.mxu0 %v3435
      %3499 = vmatpush.bf16.msra.mxu0 %v3434
      %3500 = vmatpush.bf16.msra.mxu0 %v3433
      %3501 = vmatpush.bf16.msra.mxu0 %v3432
      %3502 = vmatpush.bf16.msra.mxu0 %v3431
      %3503 = vmatmul.bf16.gmra.mxu0 %v3295
      %v3504 = vpop.f32.mrf.mxu0
      %v3505 = vadd.f32 0.0, %v3504
      %v3506 = vpop.f32.mrf.mxu0
      %3507 = vdwg.mxu0
      %3508 = vmatpush.bf16.msra.mxu0 %v3446
      %3509 = vmatpush.bf16.msra.mxu0 %v3445
      %3510 = vmatpush.bf16.msra.mxu0 %v3444
      %3511 = vmatpush.bf16.msra.mxu0 %v3443
      %3512 = vmatpush.bf16.msra.mxu0 %v3442
      %3513 = vmatpush.bf16.msra.mxu0 %v3441
      %3514 = vmatpush.bf16.msra.mxu0 %v3440
      %3515 = vmatpush.bf16.msra.mxu0 %v3439
      %3516 = vmatmul.bf16.gmra.mxu0 %v3296
      %v3517 = vpop.f32.mrf.mxu0
      %v3518 = vadd.f32 %v3505, %v3517
      %v3519 = vpop.f32.mrf.mxu0
      %3520 = vdwg.mxu0
      %3521 = vmatpush.bf16.msra.mxu0 %v3454
      %3522 = vmatpush.bf16.msra.mxu0 %v3453
      %3523 = vmatpush.bf16.msra.mxu0 %v3452
      %3524 = vmatpush.bf16.msra.mxu0 %v3451
      %3525 = vmatpush.bf16.msra.mxu0 %v3450
      %3526 = vmatpush.bf16.msra.mxu0 %v3449
      %3527 = vmatpush.bf16.msra.mxu0 %v3448
      %3528 = vmatpush.bf16.msra.mxu0 %v3447
      %3529 = vmatmul.bf16.gmra.mxu0 %v3297
      %v3530 = vpop.f32.mrf.mxu0
      %v3531 = vadd.f32 %v3518, %v3530
      %v3532 = vpop.f32.mrf.mxu0
      %3533 = vdwg.mxu0
      %3534 = vmatpush.bf16.msra.mxu0 %v3462
      %3535 = vmatpush.bf16.msra.mxu0 %v3461
      %3536 = vmatpush.bf16.msra.mxu0 %v3460
      %3537 = vmatpush.bf16.msra.mxu0 %v3459
      %3538 = vmatpush.bf16.msra.mxu0 %v3458
      %3539 = vmatpush.bf16.msra.mxu0 %v3457
      %3540 = vmatpush.bf16.msra.mxu0 %v3456
      %3541 = vmatpush.bf16.msra.mxu0 %v3455
      %3542 = vmatmul.bf16.gmra.mxu0 %v3298
      %v3543 = vpop.f32.mrf.mxu0
      %v3544 = vadd.f32 %v3531, %v3543
      %v3545 = vpop.f32.mrf.mxu0
      %3546 = vdwg.mxu0
      %v3547 = vadd.f32 %v3176, %v3544
      %v3548 = vld [vmem:[%s2] sm:$0x1]
      %v3550 = vperm.slane %v3548, 0
      %v3552 = vadd.f32 %v3547, %v3550
      %v3554 = vrot.slane %v3552, 4
      %v3556 = vpack.c.bf16 %v3552, %v3552
      %v3557 = vpack.c.bf16 %v3554, %v3554
      %3558 = vst [vmem:[%s206] sm:$0x3] %v3556
      %3559 = vst [vmem:[%s206 + $0x2] sm:$0x3] %v3557
      %s3560 = smul.u32 2, %s19
      %p3561 = scmp.lt.s32.totalorder %s18, 1
      %s3562 = scalar_select %p3561, %s18, 1
      %p3563 = scmp.lt.s32.totalorder %s3560, 3
      %s3564 = scalar_select %p3563, %s3560, 3
      %s3565 = smul.addr %s3562, 4
      %s3566 = sadd.s32 %s3564, %s3565
      %s3567 = smul.addr %s3566, 2
      %s3568 = scalar_lea.vmem %s3, %s3567
      // Predicated region
      $region33: #{matterport_forward.10} parent=31 // pred_check
        %p3569 = pneg %p116
      $region34: #{matterport_forward.10} parent=31 // pred_check_branch
        %3571 = sbr.rel (%p3569) target = $region36
      $region35: #{matterport_forward.10} parent=31 // pred_region
        %s3572 = smul.u32 2, %s19
      $region36: #{matterport_forward.10} parent=31 // pred_fallthru
        _
    $region32: #{matterport_forward.10} parent=5 // pred_fallthru
      _
    %p3573 = scmp.le.s32.totalorder 2, %s9
    // Predicated region
    $region37: #{matterport_forward.10} parent=5 // pred_check
      %p3574 = pneg %p3573
    $region38: #{matterport_forward.10} parent=5 // pred_check_branch
      %3576 = sbr.rel (%p3574) target = $region40
    $region39: #{matterport_forward.10} parent=5 // pred_region
      %s3577 = ssub.s32 %s9, 2
      // Predicated region
      $region41: #{matterport_forward.10} parent=39 // pred_check
        %p3578 = pneg %p122
      $region42: #{matterport_forward.10} parent=39 // pred_check_branch
        %3580 = sbr.rel (%p3578) target = $region44
      $region43: #{matterport_forward.10} parent=39 // pred_region
        %s3581 = smul.u32 2, %s21
        %p3582 = scmp.lt.s32.totalorder %s20, 1
        %s3583 = scalar_select %p3582, %s20, 1
        %p3584 = scmp.lt.s32.totalorder %s3581, 3
        %s3585 = scalar_select %p3584, %s3581, 3
        %s3586 = smul.addr %s3583, 4
        %s3587 = sadd.s32 %s3585, %s3586
        %s3588 = smul.addr %s3587, 2
        %s3589 = scalar_lea.vmem %s3, %s3588
      $region44: #{matterport_forward.10} parent=39 // pred_fallthru
        _
    $region40: #{matterport_forward.10} parent=5 // pred_fallthru
      _
  $region6: #{matterport_forward.10} parent=0 // loop_footer
    %s13 = sadd.s32 1, %s9
  $region7: #{matterport_forward.10} parent=0 // loop_footer_branch
    %8 = sbr.rel target = $region3
  $region8: #{matterport_forward.10} parent=0 // loop_exit
    _

</llo_original>
